<compile_context>
chip_gen: v7x
topology: tpu7x:2x2x1
jax: 0.10.0
libtpu: 0.0.40
codegen_flags: <defaults>
</compile_context>

<pallas_src>
import jax
import jax.numpy as jnp
from jax.experimental import pallas as pl
from jax.experimental.pallas import tpu as pltpu

# ----------------------------- model hyper-params (small) -----------------------------
BATCH = 2
SEQ = 8
HIDDEN = 32
NUM_HEADS = 4
HEAD_DIM = HIDDEN // NUM_HEADS
INTERMEDIATE = 64
NUM_LAYERS = 2
VOCAB = 100
TYPE_VOCAB = 2
NUM_CLASSES = 5
LN_EPS = 1e-12
DROPOUT_RATE = 0.3   # nn.Dropout(0.3) is identity at eval time
LANE = 128           # lane-dense padded feature width

# --------------------------- packed-slab static layout --------------------------------
# bf16 weight slab (N_MATS, 128, 128): per layer [wqkv, wi, wf], then [wpool, wfc]
N_MATS = 3 * NUM_LAYERS + 2
W_POOL = 3 * NUM_LAYERS
W_FC = 3 * NUM_LAYERS + 1
# f32 small-param slab (N_ROWS, 128): [emb_g, emb_b] + per layer
#   [bqkv, bo, ln1_g, ln1_b, bi, bf, ln2_g, ln2_b] + [bpool, bfc]
N_ROWS = 2 + 8 * NUM_LAYERS + 2
S_POOL_B = 2 + 8 * NUM_LAYERS
S_FC_B = S_POOL_B + 1


# ----------------------------------- fused kernel --------------------------------------
def _fused_classifier_kernel(emb_ref, bias_ref, w_ref, wo_ref, sm_ref, out_ref):
    """Whole BERT-encoder + pooler + fc forward, resident in VMEM.

    emb:  (R, 128) f32 summed embeddings, zero-padded beyond HIDDEN, R = batch*seq
    bias: (R, R) f32 additive attention bias (batch-block-diagonal + key padding)
    w:    (N_MATS, 128, 128) bf16 weight slab (K and N zero-padded to 128)
    wo:   (NUM_LAYERS, HIDDEN, 128) bf16 attention output projections
    sm:   (N_ROWS, 128) f32 biases / LayerNorm params
    out:  (R, 128) f32; rows b*SEQ hold the per-sequence logits, cols [:NUM_CLASSES]
    """
    sm = sm_ref[...]                                   # small params, loaded once

    def row(i):                                        # (1, 128) f32
        return sm[i:i + 1, :]

    def layernorm(x, gi, bi):
        # x is (R, 128) with lanes >= HIDDEN identically zero, so lane sums equal
        # sums over the HIDDEN real features; gamma/beta padded lanes are zero so
        # the padded lanes of the result stay exactly zero.
        s1 = jnp.sum(x, axis=-1, keepdims=True)
        s2 = jnp.sum(x * x, axis=-1, keepdims=True)
        m = s1 * (1.0 / HIDDEN)
        v = jnp.maximum(s2 * (1.0 / HIDDEN) - m * m, 0.0)
        return (x - m) * jax.lax.rsqrt(v + LN_EPS) * row(gi) + row(bi)

    def mm(a, w):
        # bf16 MXU operands (weights pre-cast at pack time), f32 accumulation
        return jnp.dot(a.astype(jnp.bfloat16), w, preferred_element_type=jnp.float32)

    r = emb_ref.shape[0]
    bias = bias_ref[...][None, :, :]                   # (1, R, R) f32, broadcast over heads

    x = layernorm(emb_ref[...], 0, 1)                  # (R, 128) f32

    for l in range(NUM_LAYERS):
        s0 = 2 + 8 * l

        # ---- fused Q|K|V projection (1/sqrt(head_dim) folded into Q at pack time) ----
        qkv = mm(x, w_ref[3 * l]) + row(s0 + 0)                              # (R, 128) f32
        hq = jnp.transpose(qkv.reshape(r, LANE // HEAD_DIM, HEAD_DIM), (1, 0, 2))  # (16, R, 8)
        q = hq[:NUM_HEADS].astype(jnp.bfloat16)
        k = hq[NUM_HEADS:2 * NUM_HEADS].astype(jnp.bfloat16)
        v = hq[2 * NUM_HEADS:3 * NUM_HEADS].astype(jnp.bfloat16)

        # ---- head-batched attention, explicit softmax (EUP reciprocal) ----
        s = jnp.einsum('hqd,hkd->hqk', q, k,
                       preferred_element_type=jnp.float32) + bias            # (H, R, R) f32
        e = jnp.exp(s - jnp.max(s, axis=-1, keepdims=True))
        p = e * pl.reciprocal(jnp.sum(e, axis=-1, keepdims=True), approx=True)
        ctx = jnp.einsum('hqk,hkd->hqd', p.astype(jnp.bfloat16), v,
                         preferred_element_type=jnp.float32)                 # (H, R, 8)
        ctx = jnp.transpose(ctx, (1, 0, 2)).reshape(r, HIDDEN)               # (R, HIDDEN)

        attn = mm(ctx, wo_ref[l]) + row(s0 + 1)                              # (R, 128)
        x = layernorm(attn + x, s0 + 2, s0 + 3)

        # ---- FFN on the full 128-lane tile (padded lanes are gelu(0) == 0) ----
        # TODO(synk): HF BERT uses exact (erf) GELU; tanh approx used for robust TPU lowering.
        h1 = jax.nn.gelu(mm(x, w_ref[3 * l + 1]) + row(s0 + 4), approximate=True)
        ffn = mm(h1, w_ref[3 * l + 2]) + row(s0 + 5)
        x = layernorm(ffn + x, s0 + 6, s0 + 7)

    # ---- pooler (dense + tanh) and classifier head, applied to every row ----
    # (only CLS rows are read by the wrapper; extra rows are free at this size)
    pooled = jnp.tanh(mm(x, w_ref[W_POOL]) + row(S_POOL_B))
    out_ref[...] = mm(pooled, w_ref[W_FC]) + row(S_FC_B)        # (R, 128) dense store


# ------------------------------- parameter initialization ------------------------------
def _dense_params(key, fan_in, fan_out):
    kw, _ = jax.random.split(key)
    w = 0.02 * jax.random.normal(kw, (fan_in, fan_out), jnp.float32)
    b = jnp.zeros((fan_out,), jnp.float32)
    return w, b


def init_params(seed=0):
    key = jax.random.PRNGKey(seed)
    keys = jax.random.split(key, 8 + NUM_LAYERS)
    p = {}
    p["word_emb"] = 0.02 * jax.random.normal(keys[0], (VOCAB, HIDDEN), jnp.float32)
    p["pos_emb"] = 0.02 * jax.random.normal(keys[1], (SEQ, HIDDEN), jnp.float32)
    p["type_emb"] = 0.02 * jax.random.normal(keys[2], (TYPE_VOCAB, HIDDEN), jnp.float32)
    p["emb_ln_g"] = jnp.ones((HIDDEN,), jnp.float32)
    p["emb_ln_b"] = jnp.zeros((HIDDEN,), jnp.float32)
    layers = []
    for li in range(NUM_LAYERS):
        lk = jax.random.split(keys[3 + li], 6)
        lp = {}
        lp["q_w"], lp["q_b"] = _dense_params(lk[0], HIDDEN, HIDDEN)
        lp["k_w"], lp["k_b"] = _dense_params(lk[1], HIDDEN, HIDDEN)
        lp["v_w"], lp["v_b"] = _dense_params(lk[2], HIDDEN, HIDDEN)
        lp["o_w"], lp["o_b"] = _dense_params(lk[3], HIDDEN, HIDDEN)
        lp["i_w"], lp["i_b"] = _dense_params(lk[4], HIDDEN, INTERMEDIATE)
        lp["f_w"], lp["f_b"] = _dense_params(lk[5], INTERMEDIATE, HIDDEN)
        lp["ln1_g"] = jnp.ones((HIDDEN,), jnp.float32)
        lp["ln1_b"] = jnp.zeros((HIDDEN,), jnp.float32)
        lp["ln2_g"] = jnp.ones((HIDDEN,), jnp.float32)
        lp["ln2_b"] = jnp.zeros((HIDDEN,), jnp.float32)
        layers.append(lp)
    p["layers"] = layers
    p["pool_w"], p["pool_b"] = _dense_params(keys[3 + NUM_LAYERS], HIDDEN, HIDDEN)
    p["fc_w"], p["fc_b"] = _dense_params(keys[4 + NUM_LAYERS], HIDDEN, NUM_CLASSES)
    return p


def _pad2(w):
    return jnp.pad(w, ((0, LANE - w.shape[0]), (0, LANE - w.shape[1])))


def _pad1(v):
    return jnp.pad(v, (0, LANE - v.shape[0]))


def pack_params(p):
    """Coalesce all parameters into 3 VMEM-resident slabs (one DMA each):
       * w_slab : (N_MATS, 128, 128) bf16 — wqkv/wi/wf per layer + wpool + wfc,
                  K and N zero-padded to 128 (padded rows/cols only touch zeros).
       * wo     : (NUM_LAYERS, HIDDEN, 128) bf16 — attention output projections.
       * smalls : (N_ROWS, 128) f32 — all biases + LayerNorm gammas/betas.
       The 1/sqrt(head_dim) score scale is folded into Q weights and Q bias."""
    scale = 1.0 / (HEAD_DIM ** 0.5)
    mats, wo = [], []
    rows = [_pad1(p["emb_ln_g"]), _pad1(p["emb_ln_b"])]
    for lp in p["layers"]:
        qkv_w = jnp.concatenate([lp["q_w"] * scale, lp["k_w"], lp["v_w"]], axis=1)
        qkv_b = jnp.concatenate([lp["q_b"] * scale, lp["k_b"], lp["v_b"]])
        mats += [_pad2(qkv_w), _pad2(lp["i_w"]), _pad2(lp["f_w"])]
        wo.append(jnp.pad(lp["o_w"], ((0, 0), (0, LANE - HIDDEN))))
        rows += [_pad1(qkv_b), _pad1(lp["o_b"]),
                 _pad1(lp["ln1_g"]), _pad1(lp["ln1_b"]),
                 _pad1(lp["i_b"]), _pad1(lp["f_b"]),
                 _pad1(lp["ln2_g"]), _pad1(lp["ln2_b"])]
    mats += [_pad2(p["pool_w"]), _pad2(p["fc_w"])]
    rows += [_pad1(p["pool_b"]), _pad1(p["fc_b"])]
    return {
        "word_emb": p["word_emb"],
        "pos_emb": p["pos_emb"],
        "type_emb": p["type_emb"],
        "w_slab": jnp.stack(mats).astype(jnp.bfloat16),       # (N_MATS, 128, 128)
        "wo": jnp.stack(wo).astype(jnp.bfloat16),              # (L, HIDDEN, 128)
        "smalls": jnp.stack(rows).astype(jnp.float32),         # (N_ROWS, 128)
    }


# -------------------------------------- forward ----------------------------------------
def classifier_forward(packed, ids, mask):
    """Equivalent of Classifier.forward(ids, mask) -> logits (B, NUM_CLASSES)."""
    b, s = ids.shape
    r = b * s

    # --- embeddings (gathers are host-side glue; LayerNorm happens in-kernel) ---
    word = packed["word_emb"][ids]                                  # (B, S, H)
    pos = packed["pos_emb"][jnp.arange(s)][None, :, :]              # (1, S, H)
    typ = packed["type_emb"][0][None, None, :]                      # token_type_ids == 0
    emb = (word + pos + typ).reshape(r, HIDDEN).astype(jnp.float32)
    emb = jnp.pad(emb, ((0, 0), (0, LANE - HIDDEN)))                # lane-dense (R, 128)

    # --- additive attention bias (f32), batch-block-diagonal + key-padding mask ---
    row_batch = jnp.repeat(jnp.arange(b), s)
    same_batch = row_batch[:, None] == row_batch[None, :]
    key_keep = mask.reshape(r) > 0
    bias = jnp.where(same_batch & key_keep[None, :], 0.0, -1e9).astype(jnp.float32)

    out = pl.pallas_call(
        _fused_classifier_kernel,
        out_shape=jax.ShapeDtypeStruct((r, LANE), jnp.float32),
        # grid=() runs on one TensorCore; fine at R=16.
        # TODO(synk): at real Bio_ClinicalBERT size add a "parallel" batch grid axis
        # (second v7x TC) and an "arbitrary" per-layer axis with BlockSpec-pipelined
        # weight DMA sized against v7x's 64 MiB VMEM.
        compiler_params=pltpu.CompilerParams(vmem_limit_bytes=16 * 1024 * 1024),
    )(emb, bias, packed["w_slab"], packed["wo"], packed["smalls"])

    # CLS token of each sequence sits at row b*SEQ; logits occupy the first
    # NUM_CLASSES lanes of the padded output.  nn.Dropout(0.3) is identity at eval.
    return out[::s, :NUM_CLASSES]


# ---------------------------------------- main ------------------------------------------
if __name__ == "__main__":
    key = jax.random.PRNGKey(0)
    kid, _ = jax.random.split(key)
    ids = jax.random.randint(kid, (BATCH, SEQ), 0, VOCAB, dtype=jnp.int32)
    # attention mask: last 2 tokens of the second sequence are padding
    mask = jnp.ones((BATCH, SEQ), jnp.int32).at[1, -2:].set(0)

    params = init_params(seed=0)
    packed = pack_params(params)

    fwd = jax.jit(classifier_forward)
    logits = jax.block_until_ready(fwd(packed, ids, mask))
    assert logits.shape == (BATCH, NUM_CLASSES)
    assert bool(jnp.all(jnp.isfinite(logits)))
    print("KERNEL_OK")
</pallas_src>

<mosaic_0001>
module attributes {stable_mosaic.version = 11 : i64} {
  func.func @_fused_classifier_kernel(%arg0: memref<16x128xf32, #tpu.memory_space<vmem>>, %arg1: memref<16x16xf32, #tpu.memory_space<vmem>>, %arg2: memref<8x128x128xbf16, #tpu.memory_space<vmem>>, %arg3: memref<2x32x128xbf16, #tpu.memory_space<vmem>>, %arg4: memref<20x128xf32, #tpu.memory_space<vmem>>, %arg5: memref<16x128xf32, #tpu.memory_space<vmem>>) attributes {dimension_semantics = [], scalar_prefetch = 0 : i64, scratch_operands = 0 : i64, tpu.core_type = #tpu.core_type<tc>} {
    %c0 = arith.constant 0 : index
    %c0_0 = arith.constant 0 : index
    %0 = vector.load %arg4[%c0, %c0_0] : memref<20x128xf32, #tpu.memory_space<vmem>>, vector<20x128xf32>
    %c0_1 = arith.constant 0 : index
    %c0_2 = arith.constant 0 : index
    %1 = vector.load %arg1[%c0_1, %c0_2] : memref<16x16xf32, #tpu.memory_space<vmem>>, vector<16x16xf32>
    %2 = vector.shape_cast %1 : vector<16x16xf32> to vector<1x16x16xf32>
    %c0_3 = arith.constant 0 : index
    %c0_4 = arith.constant 0 : index
    %3 = vector.load %arg0[%c0_3, %c0_4] : memref<16x128xf32, #tpu.memory_space<vmem>>, vector<16x128xf32>
    %cst = arith.constant dense<0.000000e+00> : vector<16xf32>
    %4 = vector.multi_reduction <add>, %3, %cst [1] : vector<16x128xf32> to vector<16xf32>
    %5 = vector.shape_cast %4 : vector<16xf32> to vector<16x1xf32>
    %6 = arith.mulf %3, %3 : vector<16x128xf32>
    %cst_5 = arith.constant dense<0.000000e+00> : vector<16xf32>
    %7 = vector.multi_reduction <add>, %6, %cst_5 [1] : vector<16x128xf32> to vector<16xf32>
    %8 = vector.shape_cast %7 : vector<16xf32> to vector<16x1xf32>
    %cst_6 = arith.constant 3.125000e-02 : f32
    %9 = vector.broadcast %cst_6 : f32 to vector<16x1xf32>
    %10 = arith.mulf %5, %9 : vector<16x1xf32>
    %cst_7 = arith.constant 3.125000e-02 : f32
    %11 = vector.broadcast %cst_7 : f32 to vector<16x1xf32>
    %12 = arith.mulf %8, %11 : vector<16x1xf32>
    %13 = arith.mulf %10, %10 : vector<16x1xf32>
    %14 = arith.subf %12, %13 : vector<16x1xf32>
    %cst_8 = arith.constant 0.000000e+00 : f32
    %15 = vector.broadcast %cst_8 : f32 to vector<16x1xf32>
    %16 = arith.maximumf %14, %15 : vector<16x1xf32>
    %17 = vector.broadcast %10 : vector<16x1xf32> to vector<16x128xf32>
    %18 = arith.subf %3, %17 : vector<16x128xf32>
    %cst_9 = arith.constant 9.99999996E-13 : f32
    %19 = vector.broadcast %cst_9 : f32 to vector<16x1xf32>
    %20 = arith.addf %16, %19 : vector<16x1xf32>
    %21 = math.rsqrt %20 : vector<16x1xf32>
    %22 = vector.broadcast %21 : vector<16x1xf32> to vector<16x128xf32>
    %23 = arith.mulf %18, %22 : vector<16x128xf32>
    %24 = vector.extract_strided_slice %0 {offsets = [0, 0], sizes = [1, 128], strides = [1, 1]} : vector<20x128xf32> to vector<1x128xf32>
    %25 = vector.broadcast %24 : vector<1x128xf32> to vector<16x128xf32>
    %26 = arith.mulf %23, %25 : vector<16x128xf32>
    %27 = vector.extract_strided_slice %0 {offsets = [1, 0], sizes = [1, 128], strides = [1, 1]} : vector<20x128xf32> to vector<1x128xf32>
    %28 = vector.broadcast %27 : vector<1x128xf32> to vector<16x128xf32>
    %29 = arith.addf %26, %28 : vector<16x128xf32>
    %c0_10 = arith.constant 0 : index
    %c0_11 = arith.constant 0 : index
    %c0_12 = arith.constant 0 : index
    %30 = vector.load %arg2[%c0_10, %c0_11, %c0_12] : memref<8x128x128xbf16, #tpu.memory_space<vmem>>, vector<1x128x128xbf16>
    %31 = vector.shape_cast %30 : vector<1x128x128xbf16> to vector<128x128xbf16>
    %32 = arith.truncf %29 : vector<16x128xf32> to vector<16x128xbf16>
    %cst_13 = arith.constant dense<0.000000e+00> : vector<16x128xf32>
    %33 = tpu.matmul %32, %31, %cst_13 {dimension_numbers = #tpu.dot_dimension_numbers<[1], [0], [0], [1], [0, 0, 1, 1], [], []>} : vector<16x128xbf16>, vector<128x128xbf16>, vector<16x128xf32> -> vector<16x128xf32>
    %34 = vector.extract_strided_slice %0 {offsets = [2, 0], sizes = [1, 128], strides = [1, 1]} : vector<20x128xf32> to vector<1x128xf32>
    %35 = vector.broadcast %34 : vector<1x128xf32> to vector<16x128xf32>
    %36 = arith.addf %33, %35 : vector<16x128xf32>
    %37 = vector.shape_cast %36 : vector<16x128xf32> to vector<16x16x8xf32>
    %38 = tpu.transpose %37, [1, 0, 2] : vector<16x16x8xf32> -> vector<16x16x8xf32>
    %39 = vector.extract_strided_slice %38 {offsets = [0, 0, 0], sizes = [4, 16, 8], strides = [1, 1, 1]} : vector<16x16x8xf32> to vector<4x16x8xf32>
    %40 = arith.truncf %39 : vector<4x16x8xf32> to vector<4x16x8xbf16>
    %41 = vector.extract_strided_slice %38 {offsets = [4, 0, 0], sizes = [4, 16, 8], strides = [1, 1, 1]} : vector<16x16x8xf32> to vector<4x16x8xf32>
    %42 = arith.truncf %41 : vector<4x16x8xf32> to vector<4x16x8xbf16>
    %43 = vector.extract_strided_slice %38 {offsets = [8, 0, 0], sizes = [4, 16, 8], strides = [1, 1, 1]} : vector<16x16x8xf32> to vector<4x16x8xf32>
    %44 = arith.truncf %43 : vector<4x16x8xf32> to vector<4x16x8xbf16>
    "tpu.trace_start"() <{level = 10 : i32, message = "hqd,hkd->hqk"}> : () -> ()
    %cst_14 = arith.constant dense<0.000000e+00> : vector<4x16x16xf32>
    %45 = tpu.matmul %40, %42, %cst_14 {dimension_numbers = #tpu.dot_dimension_numbers<[2], [2], [1], [1], [0, 0, 0, 1, 1, 1], [0], [0]>} : vector<4x16x8xbf16>, vector<4x16x8xbf16>, vector<4x16x16xf32> -> vector<4x16x16xf32>
    "tpu.trace_stop"() : () -> ()
    %46 = vector.broadcast %2 : vector<1x16x16xf32> to vector<4x16x16xf32>
    %47 = arith.addf %45, %46 : vector<4x16x16xf32>
    %cst_15 = arith.constant dense<0xFF800000> : vector<4x16xf32>
    %48 = vector.multi_reduction <maximumf>, %47, %cst_15 [2] : vector<4x16x16xf32> to vector<4x16xf32>
    %49 = vector.shape_cast %48 : vector<4x16xf32> to vector<4x16x1xf32>
    %50 = vector.broadcast %49 : vector<4x16x1xf32> to vector<4x16x16xf32>
    %51 = arith.subf %47, %50 : vector<4x16x16xf32>
    %52 = math.exp %51 : vector<4x16x16xf32>
    %cst_16 = arith.constant dense<0.000000e+00> : vector<4x16xf32>
    %53 = vector.multi_reduction <add>, %52, %cst_16 [2] : vector<4x16x16xf32> to vector<4x16xf32>
    %54 = vector.shape_cast %53 : vector<4x16xf32> to vector<4x16x1xf32>
    %55 = tpu.reciprocal %54 {approx = true} : vector<4x16x1xf32> -> vector<4x16x1xf32>
    %56 = vector.broadcast %55 : vector<4x16x1xf32> to vector<4x16x16xf32>
    %57 = arith.mulf %52, %56 : vector<4x16x16xf32>
    %58 = arith.truncf %57 : vector<4x16x16xf32> to vector<4x16x16xbf16>
    "tpu.trace_start"() <{level = 10 : i32, message = "hqk,hkd->hqd"}> : () -> ()
    %cst_17 = arith.constant dense<0.000000e+00> : vector<4x16x8xf32>
    %59 = tpu.matmul %58, %44, %cst_17 {dimension_numbers = #tpu.dot_dimension_numbers<[2], [1], [1], [2], [0, 0, 0, 1, 1, 2], [0], [0]>} : vector<4x16x16xbf16>, vector<4x16x8xbf16>, vector<4x16x8xf32> -> vector<4x16x8xf32>
    "tpu.trace_stop"() : () -> ()
    %60 = tpu.transpose %59, [1, 0, 2] : vector<4x16x8xf32> -> vector<16x4x8xf32>
    %61 = vector.shape_cast %60 : vector<16x4x8xf32> to vector<16x32xf32>
    %c0_18 = arith.constant 0 : index
    %c0_19 = arith.constant 0 : index
    %c0_20 = arith.constant 0 : index
    %62 = vector.load %arg3[%c0_18, %c0_19, %c0_20] : memref<2x32x128xbf16, #tpu.memory_space<vmem>>, vector<1x32x128xbf16>
    %63 = vector.shape_cast %62 : vector<1x32x128xbf16> to vector<32x128xbf16>
    %64 = arith.truncf %61 : vector<16x32xf32> to vector<16x32xbf16>
    %cst_21 = arith.constant dense<0.000000e+00> : vector<16x128xf32>
    %65 = tpu.matmul %64, %63, %cst_21 {dimension_numbers = #tpu.dot_dimension_numbers<[1], [0], [0], [1], [0, 0, 1, 1], [], []>} : vector<16x32xbf16>, vector<32x128xbf16>, vector<16x128xf32> -> vector<16x128xf32>
    %66 = vector.extract_strided_slice %0 {offsets = [3, 0], sizes = [1, 128], strides = [1, 1]} : vector<20x128xf32> to vector<1x128xf32>
    %67 = vector.broadcast %66 : vector<1x128xf32> to vector<16x128xf32>
    %68 = arith.addf %65, %67 : vector<16x128xf32>
    %69 = arith.addf %68, %29 : vector<16x128xf32>
    %cst_22 = arith.constant dense<0.000000e+00> : vector<16xf32>
    %70 = vector.multi_reduction <add>, %69, %cst_22 [1] : vector<16x128xf32> to vector<16xf32>
    %71 = vector.shape_cast %70 : vector<16xf32> to vector<16x1xf32>
    %72 = arith.mulf %69, %69 : vector<16x128xf32>
    %cst_23 = arith.constant dense<0.000000e+00> : vector<16xf32>
    %73 = vector.multi_reduction <add>, %72, %cst_23 [1] : vector<16x128xf32> to vector<16xf32>
    %74 = vector.shape_cast %73 : vector<16xf32> to vector<16x1xf32>
    %cst_24 = arith.constant 3.125000e-02 : f32
    %75 = vector.broadcast %cst_24 : f32 to vector<16x1xf32>
    %76 = arith.mulf %71, %75 : vector<16x1xf32>
    %cst_25 = arith.constant 3.125000e-02 : f32
    %77 = vector.broadcast %cst_25 : f32 to vector<16x1xf32>
    %78 = arith.mulf %74, %77 : vector<16x1xf32>
    %79 = arith.mulf %76, %76 : vector<16x1xf32>
    %80 = arith.subf %78, %79 : vector<16x1xf32>
    %cst_26 = arith.constant 0.000000e+00 : f32
    %81 = vector.broadcast %cst_26 : f32 to vector<16x1xf32>
    %82 = arith.maximumf %80, %81 : vector<16x1xf32>
    %83 = vector.broadcast %76 : vector<16x1xf32> to vector<16x128xf32>
    %84 = arith.subf %69, %83 : vector<16x128xf32>
    %cst_27 = arith.constant 9.99999996E-13 : f32
    %85 = vector.broadcast %cst_27 : f32 to vector<16x1xf32>
    %86 = arith.addf %82, %85 : vector<16x1xf32>
    %87 = math.rsqrt %86 : vector<16x1xf32>
    %88 = vector.broadcast %87 : vector<16x1xf32> to vector<16x128xf32>
    %89 = arith.mulf %84, %88 : vector<16x128xf32>
    %90 = vector.extract_strided_slice %0 {offsets = [4, 0], sizes = [1, 128], strides = [1, 1]} : vector<20x128xf32> to vector<1x128xf32>
    %91 = vector.broadcast %90 : vector<1x128xf32> to vector<16x128xf32>
    %92 = arith.mulf %89, %91 : vector<16x128xf32>
    %93 = vector.extract_strided_slice %0 {offsets = [5, 0], sizes = [1, 128], strides = [1, 1]} : vector<20x128xf32> to vector<1x128xf32>
    %94 = vector.broadcast %93 : vector<1x128xf32> to vector<16x128xf32>
    %95 = arith.addf %92, %94 : vector<16x128xf32>
    %c1 = arith.constant 1 : index
    %c0_28 = arith.constant 0 : index
    %c0_29 = arith.constant 0 : index
    %96 = vector.load %arg2[%c1, %c0_28, %c0_29] : memref<8x128x128xbf16, #tpu.memory_space<vmem>>, vector<1x128x128xbf16>
    %97 = vector.shape_cast %96 : vector<1x128x128xbf16> to vector<128x128xbf16>
    %98 = arith.truncf %95 : vector<16x128xf32> to vector<16x128xbf16>
    %cst_30 = arith.constant dense<0.000000e+00> : vector<16x128xf32>
    %99 = tpu.matmul %98, %97, %cst_30 {dimension_numbers = #tpu.dot_dimension_numbers<[1], [0], [0], [1], [0, 0, 1, 1], [], []>} : vector<16x128xbf16>, vector<128x128xbf16>, vector<16x128xf32> -> vector<16x128xf32>
    %100 = vector.extract_strided_slice %0 {offsets = [6, 0], sizes = [1, 128], strides = [1, 1]} : vector<20x128xf32> to vector<1x128xf32>
    %101 = vector.broadcast %100 : vector<1x128xf32> to vector<16x128xf32>
    %102 = arith.addf %99, %101 : vector<16x128xf32>
    %103 = arith.mulf %102, %102 : vector<16x128xf32>
    %104 = arith.mulf %102, %103 : vector<16x128xf32>
    %cst_31 = arith.constant 4.471500e-02 : f32
    %105 = vector.broadcast %cst_31 : f32 to vector<16x128xf32>
    %106 = arith.mulf %105, %104 : vector<16x128xf32>
    %107 = arith.addf %102, %106 : vector<16x128xf32>
    %cst_32 = arith.constant 0.797884583 : f32
    %108 = vector.broadcast %cst_32 : f32 to vector<16x128xf32>
    %109 = arith.mulf %108, %107 : vector<16x128xf32>
    %110 = math.tanh %109 : vector<16x128xf32>
    %cst_33 = arith.constant 1.000000e+00 : f32
    %111 = vector.broadcast %cst_33 : f32 to vector<16x128xf32>
    %112 = arith.addf %111, %110 : vector<16x128xf32>
    %cst_34 = arith.constant 5.000000e-01 : f32
    %113 = vector.broadcast %cst_34 : f32 to vector<16x128xf32>
    %114 = arith.mulf %113, %112 : vector<16x128xf32>
    %115 = arith.mulf %102, %114 : vector<16x128xf32>
    %c2 = arith.constant 2 : index
    %c0_35 = arith.constant 0 : index
    %c0_36 = arith.constant 0 : index
    %116 = vector.load %arg2[%c2, %c0_35, %c0_36] : memref<8x128x128xbf16, #tpu.memory_space<vmem>>, vector<1x128x128xbf16>
    %117 = vector.shape_cast %116 : vector<1x128x128xbf16> to vector<128x128xbf16>
    %118 = arith.truncf %115 : vector<16x128xf32> to vector<16x128xbf16>
    %cst_37 = arith.constant dense<0.000000e+00> : vector<16x128xf32>
    %119 = tpu.matmul %118, %117, %cst_37 {dimension_numbers = #tpu.dot_dimension_numbers<[1], [0], [0], [1], [0, 0, 1, 1], [], []>} : vector<16x128xbf16>, vector<128x128xbf16>, vector<16x128xf32> -> vector<16x128xf32>
    %120 = vector.extract_strided_slice %0 {offsets = [7, 0], sizes = [1, 128], strides = [1, 1]} : vector<20x128xf32> to vector<1x128xf32>
    %121 = vector.broadcast %120 : vector<1x128xf32> to vector<16x128xf32>
    %122 = arith.addf %119, %121 : vector<16x128xf32>
    %123 = arith.addf %122, %95 : vector<16x128xf32>
    %cst_38 = arith.constant dense<0.000000e+00> : vector<16xf32>
    %124 = vector.multi_reduction <add>, %123, %cst_38 [1] : vector<16x128xf32> to vector<16xf32>
    %125 = vector.shape_cast %124 : vector<16xf32> to vector<16x1xf32>
    %126 = arith.mulf %123, %123 : vector<16x128xf32>
    %cst_39 = arith.constant dense<0.000000e+00> : vector<16xf32>
    %127 = vector.multi_reduction <add>, %126, %cst_39 [1] : vector<16x128xf32> to vector<16xf32>
    %128 = vector.shape_cast %127 : vector<16xf32> to vector<16x1xf32>
    %cst_40 = arith.constant 3.125000e-02 : f32
    %129 = vector.broadcast %cst_40 : f32 to vector<16x1xf32>
    %130 = arith.mulf %125, %129 : vector<16x1xf32>
    %cst_41 = arith.constant 3.125000e-02 : f32
    %131 = vector.broadcast %cst_41 : f32 to vector<16x1xf32>
    %132 = arith.mulf %128, %131 : vector<16x1xf32>
    %133 = arith.mulf %130, %130 : vector<16x1xf32>
    %134 = arith.subf %132, %133 : vector<16x1xf32>
    %cst_42 = arith.constant 0.000000e+00 : f32
    %135 = vector.broadcast %cst_42 : f32 to vector<16x1xf32>
    %136 = arith.maximumf %134, %135 : vector<16x1xf32>
    %137 = vector.broadcast %130 : vector<16x1xf32> to vector<16x128xf32>
    %138 = arith.subf %123, %137 : vector<16x128xf32>
    %cst_43 = arith.constant 9.99999996E-13 : f32
    %139 = vector.broadcast %cst_43 : f32 to vector<16x1xf32>
    %140 = arith.addf %136, %139 : vector<16x1xf32>
    %141 = math.rsqrt %140 : vector<16x1xf32>
    %142 = vector.broadcast %141 : vector<16x1xf32> to vector<16x128xf32>
    %143 = arith.mulf %138, %142 : vector<16x128xf32>
    %144 = vector.extract_strided_slice %0 {offsets = [8, 0], sizes = [1, 128], strides = [1, 1]} : vector<20x128xf32> to vector<1x128xf32>
    %145 = vector.broadcast %144 : vector<1x128xf32> to vector<16x128xf32>
    %146 = arith.mulf %143, %145 : vector<16x128xf32>
    %147 = vector.extract_strided_slice %0 {offsets = [9, 0], sizes = [1, 128], strides = [1, 1]} : vector<20x128xf32> to vector<1x128xf32>
    %148 = vector.broadcast %147 : vector<1x128xf32> to vector<16x128xf32>
    %149 = arith.addf %146, %148 : vector<16x128xf32>
    %c3 = arith.constant 3 : index
    %c0_44 = arith.constant 0 : index
    %c0_45 = arith.constant 0 : index
    %150 = vector.load %arg2[%c3, %c0_44, %c0_45] : memref<8x128x128xbf16, #tpu.memory_space<vmem>>, vector<1x128x128xbf16>
    %151 = vector.shape_cast %150 : vector<1x128x128xbf16> to vector<128x128xbf16>
    %152 = arith.truncf %149 : vector<16x128xf32> to vector<16x128xbf16>
    %cst_46 = arith.constant dense<0.000000e+00> : vector<16x128xf32>
    %153 = tpu.matmul %152, %151, %cst_46 {dimension_numbers = #tpu.dot_dimension_numbers<[1], [0], [0], [1], [0, 0, 1, 1], [], []>} : vector<16x128xbf16>, vector<128x128xbf16>, vector<16x128xf32> -> vector<16x128xf32>
    %154 = vector.extract_strided_slice %0 {offsets = [10, 0], sizes = [1, 128], strides = [1, 1]} : vector<20x128xf32> to vector<1x128xf32>
    %155 = vector.broadcast %154 : vector<1x128xf32> to vector<16x128xf32>
    %156 = arith.addf %153, %155 : vector<16x128xf32>
    %157 = vector.shape_cast %156 : vector<16x128xf32> to vector<16x16x8xf32>
    %158 = tpu.transpose %157, [1, 0, 2] : vector<16x16x8xf32> -> vector<16x16x8xf32>
    %159 = vector.extract_strided_slice %158 {offsets = [0, 0, 0], sizes = [4, 16, 8], strides = [1, 1, 1]} : vector<16x16x8xf32> to vector<4x16x8xf32>
    %160 = arith.truncf %159 : vector<4x16x8xf32> to vector<4x16x8xbf16>
    %161 = vector.extract_strided_slice %158 {offsets = [4, 0, 0], sizes = [4, 16, 8], strides = [1, 1, 1]} : vector<16x16x8xf32> to vector<4x16x8xf32>
    %162 = arith.truncf %161 : vector<4x16x8xf32> to vector<4x16x8xbf16>
    %163 = vector.extract_strided_slice %158 {offsets = [8, 0, 0], sizes = [4, 16, 8], strides = [1, 1, 1]} : vector<16x16x8xf32> to vector<4x16x8xf32>
    %164 = arith.truncf %163 : vector<4x16x8xf32> to vector<4x16x8xbf16>
    "tpu.trace_start"() <{level = 10 : i32, message = "hqd,hkd->hqk"}> : () -> ()
    %cst_47 = arith.constant dense<0.000000e+00> : vector<4x16x16xf32>
    %165 = tpu.matmul %160, %162, %cst_47 {dimension_numbers = #tpu.dot_dimension_numbers<[2], [2], [1], [1], [0, 0, 0, 1, 1, 1], [0], [0]>} : vector<4x16x8xbf16>, vector<4x16x8xbf16>, vector<4x16x16xf32> -> vector<4x16x16xf32>
    "tpu.trace_stop"() : () -> ()
    %166 = vector.broadcast %2 : vector<1x16x16xf32> to vector<4x16x16xf32>
    %167 = arith.addf %165, %166 : vector<4x16x16xf32>
    %cst_48 = arith.constant dense<0xFF800000> : vector<4x16xf32>
    %168 = vector.multi_reduction <maximumf>, %167, %cst_48 [2] : vector<4x16x16xf32> to vector<4x16xf32>
    %169 = vector.shape_cast %168 : vector<4x16xf32> to vector<4x16x1xf32>
    %170 = vector.broadcast %169 : vector<4x16x1xf32> to vector<4x16x16xf32>
    %171 = arith.subf %167, %170 : vector<4x16x16xf32>
    %172 = math.exp %171 : vector<4x16x16xf32>
    %cst_49 = arith.constant dense<0.000000e+00> : vector<4x16xf32>
    %173 = vector.multi_reduction <add>, %172, %cst_49 [2] : vector<4x16x16xf32> to vector<4x16xf32>
    %174 = vector.shape_cast %173 : vector<4x16xf32> to vector<4x16x1xf32>
    %175 = tpu.reciprocal %174 {approx = true} : vector<4x16x1xf32> -> vector<4x16x1xf32>
    %176 = vector.broadcast %175 : vector<4x16x1xf32> to vector<4x16x16xf32>
    %177 = arith.mulf %172, %176 : vector<4x16x16xf32>
    %178 = arith.truncf %177 : vector<4x16x16xf32> to vector<4x16x16xbf16>
    "tpu.trace_start"() <{level = 10 : i32, message = "hqk,hkd->hqd"}> : () -> ()
    %cst_50 = arith.constant dense<0.000000e+00> : vector<4x16x8xf32>
    %179 = tpu.matmul %178, %164, %cst_50 {dimension_numbers = #tpu.dot_dimension_numbers<[2], [1], [1], [2], [0, 0, 0, 1, 1, 2], [0], [0]>} : vector<4x16x16xbf16>, vector<4x16x8xbf16>, vector<4x16x8xf32> -> vector<4x16x8xf32>
    "tpu.trace_stop"() : () -> ()
    %180 = tpu.transpose %179, [1, 0, 2] : vector<4x16x8xf32> -> vector<16x4x8xf32>
    %181 = vector.shape_cast %180 : vector<16x4x8xf32> to vector<16x32xf32>
    %c1_51 = arith.constant 1 : index
    %c0_52 = arith.constant 0 : index
    %c0_53 = arith.constant 0 : index
    %182 = vector.load %arg3[%c1_51, %c0_52, %c0_53] : memref<2x32x128xbf16, #tpu.memory_space<vmem>>, vector<1x32x128xbf16>
    %183 = vector.shape_cast %182 : vector<1x32x128xbf16> to vector<32x128xbf16>
    %184 = arith.truncf %181 : vector<16x32xf32> to vector<16x32xbf16>
    %cst_54 = arith.constant dense<0.000000e+00> : vector<16x128xf32>
    %185 = tpu.matmul %184, %183, %cst_54 {dimension_numbers = #tpu.dot_dimension_numbers<[1], [0], [0], [1], [0, 0, 1, 1], [], []>} : vector<16x32xbf16>, vector<32x128xbf16>, vector<16x128xf32> -> vector<16x128xf32>
    %186 = vector.extract_strided_slice %0 {offsets = [11, 0], sizes = [1, 128], strides = [1, 1]} : vector<20x128xf32> to vector<1x128xf32>
    %187 = vector.broadcast %186 : vector<1x128xf32> to vector<16x128xf32>
    %188 = arith.addf %185, %187 : vector<16x128xf32>
    %189 = arith.addf %188, %149 : vector<16x128xf32>
    %cst_55 = arith.constant dense<0.000000e+00> : vector<16xf32>
    %190 = vector.multi_reduction <add>, %189, %cst_55 [1] : vector<16x128xf32> to vector<16xf32>
    %191 = vector.shape_cast %190 : vector<16xf32> to vector<16x1xf32>
    %192 = arith.mulf %189, %189 : vector<16x128xf32>
    %cst_56 = arith.constant dense<0.000000e+00> : vector<16xf32>
    %193 = vector.multi_reduction <add>, %192, %cst_56 [1] : vector<16x128xf32> to vector<16xf32>
    %194 = vector.shape_cast %193 : vector<16xf32> to vector<16x1xf32>
    %cst_57 = arith.constant 3.125000e-02 : f32
    %195 = vector.broadcast %cst_57 : f32 to vector<16x1xf32>
    %196 = arith.mulf %191, %195 : vector<16x1xf32>
    %cst_58 = arith.constant 3.125000e-02 : f32
    %197 = vector.broadcast %cst_58 : f32 to vector<16x1xf32>
    %198 = arith.mulf %194, %197 : vector<16x1xf32>
    %199 = arith.mulf %196, %196 : vector<16x1xf32>
    %200 = arith.subf %198, %199 : vector<16x1xf32>
    %cst_59 = arith.constant 0.000000e+00 : f32
    %201 = vector.broadcast %cst_59 : f32 to vector<16x1xf32>
    %202 = arith.maximumf %200, %201 : vector<16x1xf32>
    %203 = vector.broadcast %196 : vector<16x1xf32> to vector<16x128xf32>
    %204 = arith.subf %189, %203 : vector<16x128xf32>
    %cst_60 = arith.constant 9.99999996E-13 : f32
    %205 = vector.broadcast %cst_60 : f32 to vector<16x1xf32>
    %206 = arith.addf %202, %205 : vector<16x1xf32>
    %207 = math.rsqrt %206 : vector<16x1xf32>
    %208 = vector.broadcast %207 : vector<16x1xf32> to vector<16x128xf32>
    %209 = arith.mulf %204, %208 : vector<16x128xf32>
    %210 = vector.extract_strided_slice %0 {offsets = [12, 0], sizes = [1, 128], strides = [1, 1]} : vector<20x128xf32> to vector<1x128xf32>
    %211 = vector.broadcast %210 : vector<1x128xf32> to vector<16x128xf32>
    %212 = arith.mulf %209, %211 : vector<16x128xf32>
    %213 = vector.extract_strided_slice %0 {offsets = [13, 0], sizes = [1, 128], strides = [1, 1]} : vector<20x128xf32> to vector<1x128xf32>
    %214 = vector.broadcast %213 : vector<1x128xf32> to vector<16x128xf32>
    %215 = arith.addf %212, %214 : vector<16x128xf32>
    %c4 = arith.constant 4 : index
    %c0_61 = arith.constant 0 : index
    %c0_62 = arith.constant 0 : index
    %216 = vector.load %arg2[%c4, %c0_61, %c0_62] : memref<8x128x128xbf16, #tpu.memory_space<vmem>>, vector<1x128x128xbf16>
    %217 = vector.shape_cast %216 : vector<1x128x128xbf16> to vector<128x128xbf16>
    %218 = arith.truncf %215 : vector<16x128xf32> to vector<16x128xbf16>
    %cst_63 = arith.constant dense<0.000000e+00> : vector<16x128xf32>
    %219 = tpu.matmul %218, %217, %cst_63 {dimension_numbers = #tpu.dot_dimension_numbers<[1], [0], [0], [1], [0, 0, 1, 1], [], []>} : vector<16x128xbf16>, vector<128x128xbf16>, vector<16x128xf32> -> vector<16x128xf32>
    %220 = vector.extract_strided_slice %0 {offsets = [14, 0], sizes = [1, 128], strides = [1, 1]} : vector<20x128xf32> to vector<1x128xf32>
    %221 = vector.broadcast %220 : vector<1x128xf32> to vector<16x128xf32>
    %222 = arith.addf %219, %221 : vector<16x128xf32>
    %223 = arith.mulf %222, %222 : vector<16x128xf32>
    %224 = arith.mulf %222, %223 : vector<16x128xf32>
    %cst_64 = arith.constant 4.471500e-02 : f32
    %225 = vector.broadcast %cst_64 : f32 to vector<16x128xf32>
    %226 = arith.mulf %225, %224 : vector<16x128xf32>
    %227 = arith.addf %222, %226 : vector<16x128xf32>
    %cst_65 = arith.constant 0.797884583 : f32
    %228 = vector.broadcast %cst_65 : f32 to vector<16x128xf32>
    %229 = arith.mulf %228, %227 : vector<16x128xf32>
    %230 = math.tanh %229 : vector<16x128xf32>
    %cst_66 = arith.constant 1.000000e+00 : f32
    %231 = vector.broadcast %cst_66 : f32 to vector<16x128xf32>
    %232 = arith.addf %231, %230 : vector<16x128xf32>
    %cst_67 = arith.constant 5.000000e-01 : f32
    %233 = vector.broadcast %cst_67 : f32 to vector<16x128xf32>
    %234 = arith.mulf %233, %232 : vector<16x128xf32>
    %235 = arith.mulf %222, %234 : vector<16x128xf32>
    %c5 = arith.constant 5 : index
    %c0_68 = arith.constant 0 : index
    %c0_69 = arith.constant 0 : index
    %236 = vector.load %arg2[%c5, %c0_68, %c0_69] : memref<8x128x128xbf16, #tpu.memory_space<vmem>>, vector<1x128x128xbf16>
    %237 = vector.shape_cast %236 : vector<1x128x128xbf16> to vector<128x128xbf16>
    %238 = arith.truncf %235 : vector<16x128xf32> to vector<16x128xbf16>
    %cst_70 = arith.constant dense<0.000000e+00> : vector<16x128xf32>
    %239 = tpu.matmul %238, %237, %cst_70 {dimension_numbers = #tpu.dot_dimension_numbers<[1], [0], [0], [1], [0, 0, 1, 1], [], []>} : vector<16x128xbf16>, vector<128x128xbf16>, vector<16x128xf32> -> vector<16x128xf32>
    %240 = vector.extract_strided_slice %0 {offsets = [15, 0], sizes = [1, 128], strides = [1, 1]} : vector<20x128xf32> to vector<1x128xf32>
    %241 = vector.broadcast %240 : vector<1x128xf32> to vector<16x128xf32>
    %242 = arith.addf %239, %241 : vector<16x128xf32>
    %243 = arith.addf %242, %215 : vector<16x128xf32>
    %cst_71 = arith.constant dense<0.000000e+00> : vector<16xf32>
    %244 = vector.multi_reduction <add>, %243, %cst_71 [1] : vector<16x128xf32> to vector<16xf32>
    %245 = vector.shape_cast %244 : vector<16xf32> to vector<16x1xf32>
    %246 = arith.mulf %243, %243 : vector<16x128xf32>
    %cst_72 = arith.constant dense<0.000000e+00> : vector<16xf32>
    %247 = vector.multi_reduction <add>, %246, %cst_72 [1] : vector<16x128xf32> to vector<16xf32>
    %248 = vector.shape_cast %247 : vector<16xf32> to vector<16x1xf32>
    %cst_73 = arith.constant 3.125000e-02 : f32
    %249 = vector.broadcast %cst_73 : f32 to vector<16x1xf32>
    %250 = arith.mulf %245, %249 : vector<16x1xf32>
    %cst_74 = arith.constant 3.125000e-02 : f32
    %251 = vector.broadcast %cst_74 : f32 to vector<16x1xf32>
    %252 = arith.mulf %248, %251 : vector<16x1xf32>
    %253 = arith.mulf %250, %250 : vector<16x1xf32>
    %254 = arith.subf %252, %253 : vector<16x1xf32>
    %cst_75 = arith.constant 0.000000e+00 : f32
    %255 = vector.broadcast %cst_75 : f32 to vector<16x1xf32>
    %256 = arith.maximumf %254, %255 : vector<16x1xf32>
    %257 = vector.broadcast %250 : vector<16x1xf32> to vector<16x128xf32>
    %258 = arith.subf %243, %257 : vector<16x128xf32>
    %cst_76 = arith.constant 9.99999996E-13 : f32
    %259 = vector.broadcast %cst_76 : f32 to vector<16x1xf32>
    %260 = arith.addf %256, %259 : vector<16x1xf32>
    %261 = math.rsqrt %260 : vector<16x1xf32>
    %262 = vector.broadcast %261 : vector<16x1xf32> to vector<16x128xf32>
    %263 = arith.mulf %258, %262 : vector<16x128xf32>
    %264 = vector.extract_strided_slice %0 {offsets = [16, 0], sizes = [1, 128], strides = [1, 1]} : vector<20x128xf32> to vector<1x128xf32>
    %265 = vector.broadcast %264 : vector<1x128xf32> to vector<16x128xf32>
    %266 = arith.mulf %263, %265 : vector<16x128xf32>
    %267 = vector.extract_strided_slice %0 {offsets = [17, 0], sizes = [1, 128], strides = [1, 1]} : vector<20x128xf32> to vector<1x128xf32>
    %268 = vector.broadcast %267 : vector<1x128xf32> to vector<16x128xf32>
    %269 = arith.addf %266, %268 : vector<16x128xf32>
    %c6 = arith.constant 6 : index
    %c0_77 = arith.constant 0 : index
    %c0_78 = arith.constant 0 : index
    %270 = vector.load %arg2[%c6, %c0_77, %c0_78] : memref<8x128x128xbf16, #tpu.memory_space<vmem>>, vector<1x128x128xbf16>
    %271 = vector.shape_cast %270 : vector<1x128x128xbf16> to vector<128x128xbf16>
    %272 = arith.truncf %269 : vector<16x128xf32> to vector<16x128xbf16>
    %cst_79 = arith.constant dense<0.000000e+00> : vector<16x128xf32>
    %273 = tpu.matmul %272, %271, %cst_79 {dimension_numbers = #tpu.dot_dimension_numbers<[1], [0], [0], [1], [0, 0, 1, 1], [], []>} : vector<16x128xbf16>, vector<128x128xbf16>, vector<16x128xf32> -> vector<16x128xf32>
    %274 = vector.extract_strided_slice %0 {offsets = [18, 0], sizes = [1, 128], strides = [1, 1]} : vector<20x128xf32> to vector<1x128xf32>
    %275 = vector.broadcast %274 : vector<1x128xf32> to vector<16x128xf32>
    %276 = arith.addf %273, %275 : vector<16x128xf32>
    %277 = math.tanh %276 : vector<16x128xf32>
    %c7 = arith.constant 7 : index
    %c0_80 = arith.constant 0 : index
    %c0_81 = arith.constant 0 : index
    %278 = vector.load %arg2[%c7, %c0_80, %c0_81] : memref<8x128x128xbf16, #tpu.memory_space<vmem>>, vector<1x128x128xbf16>
    %279 = vector.shape_cast %278 : vector<1x128x128xbf16> to vector<128x128xbf16>
    %280 = arith.truncf %277 : vector<16x128xf32> to vector<16x128xbf16>
    %cst_82 = arith.constant dense<0.000000e+00> : vector<16x128xf32>
    %281 = tpu.matmul %280, %279, %cst_82 {dimension_numbers = #tpu.dot_dimension_numbers<[1], [0], [0], [1], [0, 0, 1, 1], [], []>} : vector<16x128xbf16>, vector<128x128xbf16>, vector<16x128xf32> -> vector<16x128xf32>
    %282 = vector.extract_strided_slice %0 {offsets = [19, 0], sizes = [1, 128], strides = [1, 1]} : vector<20x128xf32> to vector<1x128xf32>
    %283 = vector.broadcast %282 : vector<1x128xf32> to vector<16x128xf32>
    %284 = arith.addf %281, %283 : vector<16x128xf32>
    %c0_83 = arith.constant 0 : index
    %c0_84 = arith.constant 0 : index
    %285 = vector.load %arg5[%c0_83, %c0_84] : memref<16x128xf32, #tpu.memory_space<vmem>>, vector<16x128xf32>
    tpu.vector_store %arg5[%c0_83, %c0_84], %284 {strides = array<i32>} : memref<16x128xf32, #tpu.memory_space<vmem>>, vector<16x128xf32>,
    return
  }
}

</mosaic_0001>

<llo_original>
// kernel: classifier_forward.1
$region0: #{classifier_forward.1}
  #allocation0 [shape = 'u32[]', space=smem, size = 0x4, offset = 0x4, fixed_abs, tag = 'smem constant byte address 0x4 - core index']
  #allocation1 [shape = 'u32[144,128]{1,0:T(1,128)}', space=vmem, size = 0x12000, scoped, tag = 'internal scratch']
  %s0 = inlined_call_operand.vmem [shape: f32[16,128], index: 0, kind: input, shape index: {}]
  %s1 = inlined_call_operand.vmem [shape: f32[16,16], index: 1, kind: input, shape index: {}]
  %s2 = inlined_call_operand.hbm [shape: bf16[8,128,128], index: 2, kind: input, shape index: {}]
  %s3 = inlined_call_operand.vmem [shape: bf16[2,32,128], index: 3, kind: input, shape index: {}]
  %s4 = inlined_call_operand.vmem [shape: f32[20,128], index: 4, kind: input, shape index: {}]
  %s5 = inlined_call_operand.vmem [shape: f32[16,128], index: 5, kind: output, shape index: {}]
  %s6 = sld [smem:[#allocation0]]
  $region34: #{classifier_forward.1} parent=0
    _
  %s8 = ssub.s32 1, %s6
  %s9 = scalar_select 0, %s8, %s6
  $region1: #{classifier_forward.1} parent=0
    #allocation2 [shape = 'u8[262144]{0}', space=vmem, size = 0x40000, scoped, tag = 'input window, operand 2, single buffered']
    #allocation3 [shape = 's32[1]{0}', space=sflag, size = 0x4, scoped, tag = 'scoped memory for classifier_forward.1']
    %10 = vsyncpa [#allocation3], 0
    // Predicated region
    $region2: #{classifier_forward.1} parent=1 // pred_check
      _
    $region3: #{classifier_forward.1} parent=1 // pred_check_branch
      %12 = sbr.rel (0) target = $region5
    $region4: #{classifier_forward.1} parent=1 // pred_region
      _
    $region5: #{classifier_forward.1} parent=1 // pred_fallthru
      _
    // Predicated region
    $region6: #{classifier_forward.1} parent=1 // pred_check
      _
    $region7: #{classifier_forward.1} parent=1 // pred_check_branch
      %14 = sbr.rel (0) target = $region9
    $region8: #{classifier_forward.1} parent=1 // pred_region
      _
    $region9: #{classifier_forward.1} parent=1 // pred_fallthru
      _
    // Predicated region
    $region10: #{classifier_forward.1} parent=1 // pred_check
      _
    $region11: #{classifier_forward.1} parent=1 // pred_check_branch
      %16 = sbr.rel (0) target = $region13
    $region12: #{classifier_forward.1} parent=1 // pred_region
      %s18 = ssub.s32 8192, 8192
      %19 = vsyncadd [#allocation3], %s18
      %s20 = sshll.u32 [#allocation2], 4
      %s21 = int_to_ptr.vmem [resolvable:$true] %s20
      %26 = dma.hbm_to_vmem [thread:$0]  %s2, 8192, %s21, [#allocation3], 64, 64, 4
    $region13: #{classifier_forward.1} parent=1 // pred_fallthru
      _
    // Predicated region
    $region14: #{classifier_forward.1} parent=1 // pred_check
      _
    $region15: #{classifier_forward.1} parent=1 // pred_check_branch
      %28 = sbr.rel (0) target = $region17
    $region16: #{classifier_forward.1} parent=1 // pred_region
      _
    $region17: #{classifier_forward.1} parent=1 // pred_fallthru
      _
    // Predicated region
    $region18: #{classifier_forward.1} parent=1 // pred_check
      _
    $region19: #{classifier_forward.1} parent=1 // pred_check_branch
      %30 = sbr.rel (0) target = $region21
    $region20: #{classifier_forward.1} parent=1 // pred_region
      _
    $region21: #{classifier_forward.1} parent=1 // pred_fallthru
      _
    // Predicated region
    $region22: #{classifier_forward.1} parent=1 // pred_check
      _
    $region23: #{classifier_forward.1} parent=1 // pred_check_branch
      %32 = sbr.rel (0) target = $region25
    $region24: #{classifier_forward.1} parent=1 // pred_region
      %33 = dma.done [#allocation3], 8192
    $region25: #{classifier_forward.1} parent=1 // pred_fallthru
      _
    %v35 = vld [vmem:[%s4] sm:$0xff]
    %v36 = vld [vmem:[%s4 + $0x8] sm:$0xff]
    %v37 = vld [vmem:[%s4 + $0x10] sm:$0xf]
    %v38 = vld [vmem:[%s1] sm:$0xff]
    %v39 = vld [vmem:[%s1 + $0x8] sm:$0xff]
    %v40 = vld [vmem:[%s0] sm:$0xff]
    %v41 = vld [vmem:[%s0 + $0x8] sm:$0xff]
    %42 = vadd.xlane.f32.xlu0 %v40
    %v43 = vpop.xlane.xlu0 %42
    %44 = vadd.xlane.f32.xlu0 %v41
    %v45 = vpop.xlane.xlu0 %44
    %v46 = vmul.f32 %v40, %v40
    %v47 = vmul.f32 %v41, %v41
    %48 = vadd.xlane.f32.xlu0 %v46
    %v49 = vpop.xlane.xlu0 %48
    %50 = vadd.xlane.f32.xlu0 %v47
    %v51 = vpop.xlane.xlu0 %50
    %v52 = vmul.f32 %v43, 0.03125
    %v53 = vmul.f32 %v45, 0.03125
    %v54 = vmul.f32 %v49, 0.03125
    %v55 = vmul.f32 %v51, 0.03125
    %v56 = vmul.f32 %v52, %v52
    %v57 = vmul.f32 %v53, %v53
    %v58 = vsub.f32 %v54, %v56
    %v59 = vsub.f32 %v55, %v57
    %v60 = vmax.f32 %v58, 0.0
    %v61 = vmax.f32 %v59, 0.0
    %v62 = vsub.f32 %v40, %v52
    %v63 = vsub.f32 %v41, %v53
    %v64 = vadd.f32 %v60, 1e-12
    %v65 = vadd.f32 %v61, 1e-12
    %v66 = vrsqrt.pop %v64
    %v67 = vrsqrt.pop %v65
    %v68 = vmul.f32 %v62, %v66
    %v69 = vmul.f32 %v63, %v67
    %v70 = vlaneseq
    %v71 = vshrl.u32 %v70, 7
    %v72 = vsub.s32 0, %v71
    %v73 = vrot.slane %v35, %v72
    %v74 = vmul.f32 %v68, %v73
    %v75 = vmul.f32 %v69, %v73
    %v76 = vlaneseq
    %v77 = vshrl.u32 %v76, 7
    %v78 = vsub.s32 1, %v77
    %v79 = vrot.slane %v35, %v78
    %v80 = vadd.f32 %v74, %v79
    %v81 = vadd.f32 %v75, %v79
    %v82 = vld [vmem:[#allocation2] sm:$0xf]
    %v83 = vld [vmem:[#allocation2 + $0x4] sm:$0xf]
    %v84 = vld [vmem:[#allocation2 + $0x8] sm:$0xf]
    %v85 = vld [vmem:[#allocation2 + $0xc] sm:$0xf]
    %v86 = vld [vmem:[#allocation2 + $0x10] sm:$0xf]
    %v87 = vld [vmem:[#allocation2 + $0x14] sm:$0xf]
    %v88 = vld [vmem:[#allocation2 + $0x18] sm:$0xf]
    %v89 = vld [vmem:[#allocation2 + $0x1c] sm:$0xf]
    %v90 = vld [vmem:[#allocation2 + $0x20] sm:$0xf]
    %v91 = vld [vmem:[#allocation2 + $0x24] sm:$0xf]
    %v92 = vld [vmem:[#allocation2 + $0x28] sm:$0xf]
    %v93 = vld [vmem:[#allocation2 + $0x2c] sm:$0xf]
    %v94 = vld [vmem:[#allocation2 + $0x30] sm:$0xf]
    %v95 = vld [vmem:[#allocation2 + $0x34] sm:$0xf]
    %v96 = vld [vmem:[#allocation2 + $0x38] sm:$0xf]
    %v97 = vld [vmem:[#allocation2 + $0x3c] sm:$0xf]
    %v98 = vpack.c.bf16 %v81, %v80
    %v99 = vlaneseq
    %v100 = vshrl.u32 %v99, 7
    %v101 = vsub.s32 2, %v100
    %v102 = vrot.slane %v35, %v101
    %v119 = vunpack.c.l.b16 %v82
    %v120 = vunpack.c.l.b16 %v83
    %v121 = vunpack.c.l.b16 %v84
    %v122 = vunpack.c.l.b16 %v85
    %v123 = vunpack.c.l.b16 %v86
    %v124 = vunpack.c.l.b16 %v87
    %v125 = vunpack.c.l.b16 %v88
    %v126 = vunpack.c.l.b16 %v89
    %v127 = vunpack.c.l.b16 %v90
    %v128 = vunpack.c.l.b16 %v91
    %v129 = vunpack.c.l.b16 %v92
    %v130 = vunpack.c.l.b16 %v93
    %v131 = vunpack.c.l.b16 %v94
    %v132 = vunpack.c.l.b16 %v95
    %v133 = vunpack.c.l.b16 %v96
    %v134 = vunpack.c.l.b16 %v97
    %v135 = vpack.c.b16 %v120, %v119
    %v136 = vpack.c.b16 %v122, %v121
    %v137 = vpack.c.b16 %v124, %v123
    %v138 = vpack.c.b16 %v126, %v125
    %v139 = vpack.c.b16 %v128, %v127
    %v140 = vpack.c.b16 %v130, %v129
    %v141 = vpack.c.b16 %v132, %v131
    %v142 = vpack.c.b16 %v134, %v133
    %151 = vmatprep.subr.bf16.mxu0 0
    %152 = vmatpush1.bf16.msra.mxu0 %v135
    %153 = vmatprep.subr.bf16.mxu0 0
    %154 = vmatpush1.bf16.msra.mxu0 %v136
    %155 = vmatprep.subr.bf16.mxu0 0
    %156 = vmatpush1.bf16.msra.mxu0 %v137
    %157 = vmatprep.subr.bf16.mxu0 0
    %158 = vmatpush1.bf16.msra.mxu0 %v138
    %159 = vmatprep.subr.bf16.mxu0 0
    %160 = vmatpush1.bf16.msra.mxu0 %v139
    %161 = vmatprep.subr.bf16.mxu0 0
    %162 = vmatpush1.bf16.msra.mxu0 %v140
    %163 = vmatprep.subr.bf16.mxu0 0
    %164 = vmatpush1.bf16.msra.mxu0 %v141
    %165 = vmatprep.subr.bf16.mxu0 0
    %166 = vmatpush1.bf16.msra.mxu0 %v142
    %167 = vmatprep.subr.bf16.mxu0 0
    %168 = vmatpush1.bf16.msra.mxu0 0
    %169 = vmatprep.subr.bf16.mxu0 0
    %170 = vmatpush1.bf16.msra.mxu0 0
    %171 = vmatprep.subr.bf16.mxu0 0
    %172 = vmatpush1.bf16.msra.mxu0 0
    %173 = vmatprep.subr.bf16.mxu0 0
    %174 = vmatpush1.bf16.msra.mxu0 0
    %175 = vmatprep.subr.bf16.mxu0 0
    %176 = vmatpush1.bf16.msra.mxu0 0
    %177 = vmatprep.subr.bf16.mxu0 0
    %178 = vmatpush1.bf16.msra.mxu0 0
    %179 = vmatprep.subr.bf16.mxu0 0
    %180 = vmatpush1.bf16.msra.mxu0 0
    %181 = vmatprep.subr.bf16.mxu0 0
    %182 = vmatpush1.bf16.msra.mxu0 0
    %183 = vmatprep.mubr.bf16.mxu0 0
    %184 = vmatmul.mubr.bf16.gmra.mrb[0].mxu0 %v98
    %v185 = vpop.f32.mrb[0].mxu0
    %v186 = vadd.f32 %v102, %v185
    %v187 = vpop.f32.mrb[0].mxu0
    %v188 = vpop.f32.mrb[0].mxu0
    %v189 = vadd.f32 %v102, %v188
    %v190 = vpop.f32.mrb[0].mxu0
    %191 = vdwg.mxu0
    %194 = vrot.lane.b32.xlu0 %v186, 120
    %v195 = vpop.permute.xlu0 %194
    %196 = vrot.lane.b32.xlu0 %v189, 120
    %v197 = vpop.permute.xlu0 %196
    %200 = vrot.lane.b32.xlu0 %v186, 112
    %v201 = vpop.permute.xlu0 %200
    %202 = vrot.lane.b32.xlu0 %v189, 112
    %v203 = vpop.permute.xlu0 %202
    %206 = vrot.lane.b32.xlu0 %v186, 104
    %v207 = vpop.permute.xlu0 %206
    %208 = vrot.lane.b32.xlu0 %v189, 104
    %v209 = vpop.permute.xlu0 %208
    %212 = vrot.lane.b32.xlu0 %v186, 96
    %v213 = vpop.permute.xlu0 %212
    %214 = vrot.lane.b32.xlu0 %v189, 96
    %v215 = vpop.permute.xlu0 %214
    %218 = vrot.lane.b32.xlu0 %v186, 88
    %v219 = vpop.permute.xlu0 %218
    %220 = vrot.lane.b32.xlu0 %v189, 88
    %v221 = vpop.permute.xlu0 %220
    %224 = vrot.lane.b32.xlu0 %v186, 80
    %v225 = vpop.permute.xlu0 %224
    %226 = vrot.lane.b32.xlu0 %v189, 80
    %v227 = vpop.permute.xlu0 %226
    %230 = vrot.lane.b32.xlu0 %v186, 72
    %v231 = vpop.permute.xlu0 %230
    %232 = vrot.lane.b32.xlu0 %v189, 72
    %v233 = vpop.permute.xlu0 %232
    %236 = vrot.lane.b32.xlu0 %v186, 64
    %v237 = vpop.permute.xlu0 %236
    %238 = vrot.lane.b32.xlu0 %v189, 64
    %v239 = vpop.permute.xlu0 %238
    %242 = vrot.lane.b32.xlu0 %v186, 56
    %v243 = vpop.permute.xlu0 %242
    %244 = vrot.lane.b32.xlu0 %v189, 56
    %v245 = vpop.permute.xlu0 %244
    %248 = vrot.lane.b32.xlu0 %v186, 48
    %v249 = vpop.permute.xlu0 %248
    %250 = vrot.lane.b32.xlu0 %v189, 48
    %v251 = vpop.permute.xlu0 %250
    %254 = vrot.lane.b32.xlu0 %v186, 40
    %v255 = vpop.permute.xlu0 %254
    %256 = vrot.lane.b32.xlu0 %v189, 40
    %v257 = vpop.permute.xlu0 %256
    %260 = vrot.lane.b32.xlu0 %v186, 32
    %v261 = vpop.permute.xlu0 %260
    %262 = vrot.lane.b32.xlu0 %v189, 32
    %v263 = vpop.permute.xlu0 %262
    %266 = vrot.lane.b32.xlu0 %v186, 24
    %v267 = vpop.permute.xlu0 %266
    %268 = vrot.lane.b32.xlu0 %v189, 24
    %v269 = vpop.permute.xlu0 %268
    %272 = vrot.lane.b32.xlu0 %v186, 16
    %v273 = vpop.permute.xlu0 %272
    %274 = vrot.lane.b32.xlu0 %v189, 16
    %v275 = vpop.permute.xlu0 %274
    %278 = vrot.lane.b32.xlu0 %v186, 8
    %v279 = vpop.permute.xlu0 %278
    %280 = vrot.lane.b32.xlu0 %v189, 8
    %v281 = vpop.permute.xlu0 %280
    %v284 = vcombine.low %v186, %v201
    %v285 = vcombine.high %v186, %v201
    %v287 = vunpack.c.l.s4 1983009808
    %v288 = vunpack.c.0.s8 %v287
    %v289 = vlaneseq
    %v290 = vshrl.u32 %v289, 7
    %v291 = vsub.s32 %v288, %v290
    %v292 = vrot.slane %v284, %v291
    %v294 = vunpack.c.l.s4 1983009808
    %v295 = vunpack.c.0.s8 %v294
    %v296 = vlaneseq
    %v297 = vshrl.u32 %v296, 7
    %v298 = vsub.s32 %v295, %v297
    %v299 = vrot.slane %v285, %v298
    %v300 = vcombine.low %v195, %v207
    %v301 = vcombine.high %v195, %v207
    %v303 = vunpack.c.l.s4 1983009808
    %v304 = vunpack.c.0.s8 %v303
    %v305 = vlaneseq
    %v306 = vshrl.u32 %v305, 7
    %v307 = vsub.s32 %v304, %v306
    %v308 = vrot.slane %v300, %v307
    %v310 = vunpack.c.l.s4 1983009808
    %v311 = vunpack.c.0.s8 %v310
    %v312 = vlaneseq
    %v313 = vshrl.u32 %v312, 7
    %v314 = vsub.s32 %v311, %v313
    %v315 = vrot.slane %v301, %v314
    %v316 = vcombine.low %v213, %v225
    %v317 = vcombine.high %v213, %v225
    %v319 = vunpack.c.l.s4 1983009808
    %v320 = vunpack.c.0.s8 %v319
    %v321 = vlaneseq
    %v322 = vshrl.u32 %v321, 7
    %v323 = vsub.s32 %v320, %v322
    %v324 = vrot.slane %v316, %v323
    %v326 = vunpack.c.l.s4 1983009808
    %v327 = vunpack.c.0.s8 %v326
    %v328 = vlaneseq
    %v329 = vshrl.u32 %v328, 7
    %v330 = vsub.s32 %v327, %v329
    %v331 = vrot.slane %v317, %v330
    %v332 = vcombine.low %v219, %v231
    %v333 = vcombine.high %v219, %v231
    %v335 = vunpack.c.l.s4 1983009808
    %v336 = vunpack.c.0.s8 %v335
    %v337 = vlaneseq
    %v338 = vshrl.u32 %v337, 7
    %v339 = vsub.s32 %v336, %v338
    %v340 = vrot.slane %v332, %v339
    %v342 = vunpack.c.l.s4 1983009808
    %v343 = vunpack.c.0.s8 %v342
    %v344 = vlaneseq
    %v345 = vshrl.u32 %v344, 7
    %v346 = vsub.s32 %v343, %v345
    %v347 = vrot.slane %v333, %v346
    %v348 = vcombine.low %v292, %v308
    %v349 = vcombine.high %v292, %v308
    %v351 = vunpack.c.l.s4 1934713408
    %v352 = vunpack.c.0.s8 %v351
    %v353 = vlaneseq
    %v354 = vshrl.u32 %v353, 7
    %v355 = vsub.s32 %v352, %v354
    %v356 = vrot.slane %v348, %v355
    %v358 = vunpack.c.l.s4 1934713408
    %v359 = vunpack.c.0.s8 %v358
    %v360 = vlaneseq
    %v361 = vshrl.u32 %v360, 7
    %v362 = vsub.s32 %v359, %v361
    %v363 = vrot.slane %v349, %v362
    %v364 = vcombine.low %v299, %v315
    %v365 = vcombine.high %v299, %v315
    %v367 = vunpack.c.l.s4 1934713408
    %v368 = vunpack.c.0.s8 %v367
    %v369 = vlaneseq
    %v370 = vshrl.u32 %v369, 7
    %v371 = vsub.s32 %v368, %v370
    %v372 = vrot.slane %v364, %v371
    %v374 = vunpack.c.l.s4 1934713408
    %v375 = vunpack.c.0.s8 %v374
    %v376 = vlaneseq
    %v377 = vshrl.u32 %v376, 7
    %v378 = vsub.s32 %v375, %v377
    %v379 = vrot.slane %v365, %v378
    %v380 = vcombine.low %v324, %v340
    %v381 = vcombine.high %v324, %v340
    %v383 = vunpack.c.l.s4 1934713408
    %v384 = vunpack.c.0.s8 %v383
    %v385 = vlaneseq
    %v386 = vshrl.u32 %v385, 7
    %v387 = vsub.s32 %v384, %v386
    %v388 = vrot.slane %v380, %v387
    %v390 = vunpack.c.l.s4 1934713408
    %v391 = vunpack.c.0.s8 %v390
    %v392 = vlaneseq
    %v393 = vshrl.u32 %v392, 7
    %v394 = vsub.s32 %v391, %v393
    %v395 = vrot.slane %v381, %v394
    %v396 = vcombine.low %v331, %v347
    %v397 = vcombine.high %v331, %v347
    %v399 = vunpack.c.l.s4 1934713408
    %v400 = vunpack.c.0.s8 %v399
    %v401 = vlaneseq
    %v402 = vshrl.u32 %v401, 7
    %v403 = vsub.s32 %v400, %v402
    %v404 = vrot.slane %v396, %v403
    %v406 = vunpack.c.l.s4 1934713408
    %v407 = vunpack.c.0.s8 %v406
    %v408 = vlaneseq
    %v409 = vshrl.u32 %v408, 7
    %v410 = vsub.s32 %v407, %v409
    %v411 = vrot.slane %v397, %v410
    %v412 = vcombine.low %v356, %v388
    %v413 = vcombine.high %v356, %v388
    %v414 = vcombine.low %v363, %v395
    %v415 = vcombine.high %v363, %v395
    %v416 = vcombine.low %v372, %v404
    %v417 = vcombine.high %v372, %v404
    %v418 = vcombine.low %v379, %v411
    %v419 = vcombine.high %v379, %v411
    %v420 = vcombine.low %v237, %v249
    %v421 = vcombine.high %v237, %v249
    %v423 = vunpack.c.l.s4 1983009808
    %v424 = vunpack.c.0.s8 %v423
    %v425 = vlaneseq
    %v426 = vshrl.u32 %v425, 7
    %v427 = vsub.s32 %v424, %v426
    %v428 = vrot.slane %v420, %v427
    %v430 = vunpack.c.l.s4 1983009808
    %v431 = vunpack.c.0.s8 %v430
    %v432 = vlaneseq
    %v433 = vshrl.u32 %v432, 7
    %v434 = vsub.s32 %v431, %v433
    %v435 = vrot.slane %v421, %v434
    %v436 = vcombine.low %v243, %v255
    %v437 = vcombine.high %v243, %v255
    %v439 = vunpack.c.l.s4 1983009808
    %v440 = vunpack.c.0.s8 %v439
    %v441 = vlaneseq
    %v442 = vshrl.u32 %v441, 7
    %v443 = vsub.s32 %v440, %v442
    %v444 = vrot.slane %v436, %v443
    %v446 = vunpack.c.l.s4 1983009808
    %v447 = vunpack.c.0.s8 %v446
    %v448 = vlaneseq
    %v449 = vshrl.u32 %v448, 7
    %v450 = vsub.s32 %v447, %v449
    %v451 = vrot.slane %v437, %v450
    %v452 = vcombine.low %v261, %v273
    %v453 = vcombine.high %v261, %v273
    %v455 = vunpack.c.l.s4 1983009808
    %v456 = vunpack.c.0.s8 %v455
    %v457 = vlaneseq
    %v458 = vshrl.u32 %v457, 7
    %v459 = vsub.s32 %v456, %v458
    %v460 = vrot.slane %v452, %v459
    %v462 = vunpack.c.l.s4 1983009808
    %v463 = vunpack.c.0.s8 %v462
    %v464 = vlaneseq
    %v465 = vshrl.u32 %v464, 7
    %v466 = vsub.s32 %v463, %v465
    %v467 = vrot.slane %v453, %v466
    %v468 = vcombine.low %v267, %v279
    %v469 = vcombine.high %v267, %v279
    %v471 = vunpack.c.l.s4 1983009808
    %v472 = vunpack.c.0.s8 %v471
    %v473 = vlaneseq
    %v474 = vshrl.u32 %v473, 7
    %v475 = vsub.s32 %v472, %v474
    %v476 = vrot.slane %v468, %v475
    %v478 = vunpack.c.l.s4 1983009808
    %v479 = vunpack.c.0.s8 %v478
    %v480 = vlaneseq
    %v481 = vshrl.u32 %v480, 7
    %v482 = vsub.s32 %v479, %v481
    %v483 = vrot.slane %v469, %v482
    %v484 = vcombine.low %v428, %v444
    %v485 = vcombine.high %v428, %v444
    %v487 = vunpack.c.l.s4 1934713408
    %v488 = vunpack.c.0.s8 %v487
    %v489 = vlaneseq
    %v490 = vshrl.u32 %v489, 7
    %v491 = vsub.s32 %v488, %v490
    %v492 = vrot.slane %v484, %v491
    %v494 = vunpack.c.l.s4 1934713408
    %v495 = vunpack.c.0.s8 %v494
    %v496 = vlaneseq
    %v497 = vshrl.u32 %v496, 7
    %v498 = vsub.s32 %v495, %v497
    %v499 = vrot.slane %v485, %v498
    %v500 = vcombine.low %v435, %v451
    %v501 = vcombine.high %v435, %v451
    %v503 = vunpack.c.l.s4 1934713408
    %v504 = vunpack.c.0.s8 %v503
    %v505 = vlaneseq
    %v506 = vshrl.u32 %v505, 7
    %v507 = vsub.s32 %v504, %v506
    %v508 = vrot.slane %v500, %v507
    %v510 = vunpack.c.l.s4 1934713408
    %v511 = vunpack.c.0.s8 %v510
    %v512 = vlaneseq
    %v513 = vshrl.u32 %v512, 7
    %v514 = vsub.s32 %v511, %v513
    %v515 = vrot.slane %v501, %v514
    %v516 = vcombine.low %v460, %v476
    %v517 = vcombine.high %v460, %v476
    %v519 = vunpack.c.l.s4 1934713408
    %v520 = vunpack.c.0.s8 %v519
    %v521 = vlaneseq
    %v522 = vshrl.u32 %v521, 7
    %v523 = vsub.s32 %v520, %v522
    %v524 = vrot.slane %v516, %v523
    %v526 = vunpack.c.l.s4 1934713408
    %v527 = vunpack.c.0.s8 %v526
    %v528 = vlaneseq
    %v529 = vshrl.u32 %v528, 7
    %v530 = vsub.s32 %v527, %v529
    %v531 = vrot.slane %v517, %v530
    %v532 = vcombine.low %v467, %v483
    %v533 = vcombine.high %v467, %v483
    %v535 = vunpack.c.l.s4 1934713408
    %v536 = vunpack.c.0.s8 %v535
    %v537 = vlaneseq
    %v538 = vshrl.u32 %v537, 7
    %v539 = vsub.s32 %v536, %v538
    %v540 = vrot.slane %v532, %v539
    %v542 = vunpack.c.l.s4 1934713408
    %v543 = vunpack.c.0.s8 %v542
    %v544 = vlaneseq
    %v545 = vshrl.u32 %v544, 7
    %v546 = vsub.s32 %v543, %v545
    %v547 = vrot.slane %v533, %v546
    %v548 = vcombine.low %v492, %v524
    %v549 = vcombine.high %v492, %v524
    %v550 = vcombine.low %v499, %v531
    %v551 = vcombine.high %v499, %v531
    %v552 = vcombine.low %v508, %v540
    %v553 = vcombine.high %v508, %v540
    %v554 = vcombine.low %v515, %v547
    %v555 = vcombine.high %v515, %v547
    %v556 = vcombine.low %v189, %v203
    %v557 = vcombine.high %v189, %v203
    %v559 = vunpack.c.l.s4 1983009808
    %v560 = vunpack.c.0.s8 %v559
    %v561 = vlaneseq
    %v562 = vshrl.u32 %v561, 7
    %v563 = vsub.s32 %v560, %v562
    %v564 = vrot.slane %v556, %v563
    %v566 = vunpack.c.l.s4 1983009808
    %v567 = vunpack.c.0.s8 %v566
    %v568 = vlaneseq
    %v569 = vshrl.u32 %v568, 7
    %v570 = vsub.s32 %v567, %v569
    %v571 = vrot.slane %v557, %v570
    %v572 = vcombine.low %v197, %v209
    %v573 = vcombine.high %v197, %v209
    %v575 = vunpack.c.l.s4 1983009808
    %v576 = vunpack.c.0.s8 %v575
    %v577 = vlaneseq
    %v578 = vshrl.u32 %v577, 7
    %v579 = vsub.s32 %v576, %v578
    %v580 = vrot.slane %v572, %v579
    %v582 = vunpack.c.l.s4 1983009808
    %v583 = vunpack.c.0.s8 %v582
    %v584 = vlaneseq
    %v585 = vshrl.u32 %v584, 7
    %v586 = vsub.s32 %v583, %v585
    %v587 = vrot.slane %v573, %v586
    %v588 = vcombine.low %v215, %v227
    %v589 = vcombine.high %v215, %v227
    %v591 = vunpack.c.l.s4 1983009808
    %v592 = vunpack.c.0.s8 %v591
    %v593 = vlaneseq
    %v594 = vshrl.u32 %v593, 7
    %v595 = vsub.s32 %v592, %v594
    %v596 = vrot.slane %v588, %v595
    %v598 = vunpack.c.l.s4 1983009808
    %v599 = vunpack.c.0.s8 %v598
    %v600 = vlaneseq
    %v601 = vshrl.u32 %v600, 7
    %v602 = vsub.s32 %v599, %v601
    %v603 = vrot.slane %v589, %v602
    %v604 = vcombine.low %v221, %v233
    %v605 = vcombine.high %v221, %v233
    %v607 = vunpack.c.l.s4 1983009808
    %v608 = vunpack.c.0.s8 %v607
    %v609 = vlaneseq
    %v610 = vshrl.u32 %v609, 7
    %v611 = vsub.s32 %v608, %v610
    %v612 = vrot.slane %v604, %v611
    %v614 = vunpack.c.l.s4 1983009808
    %v615 = vunpack.c.0.s8 %v614
    %v616 = vlaneseq
    %v617 = vshrl.u32 %v616, 7
    %v618 = vsub.s32 %v615, %v617
    %v619 = vrot.slane %v605, %v618
    %v620 = vcombine.low %v564, %v580
    %v621 = vcombine.high %v564, %v580
    %v623 = vunpack.c.l.s4 1934713408
    %v624 = vunpack.c.0.s8 %v623
    %v625 = vlaneseq
    %v626 = vshrl.u32 %v625, 7
    %v627 = vsub.s32 %v624, %v626
    %v628 = vrot.slane %v620, %v627
    %v630 = vunpack.c.l.s4 1934713408
    %v631 = vunpack.c.0.s8 %v630
    %v632 = vlaneseq
    %v633 = vshrl.u32 %v632, 7
    %v634 = vsub.s32 %v631, %v633
    %v635 = vrot.slane %v621, %v634
    %v636 = vcombine.low %v571, %v587
    %v637 = vcombine.high %v571, %v587
    %v639 = vunpack.c.l.s4 1934713408
    %v640 = vunpack.c.0.s8 %v639
    %v641 = vlaneseq
    %v642 = vshrl.u32 %v641, 7
    %v643 = vsub.s32 %v640, %v642
    %v644 = vrot.slane %v636, %v643
    %v646 = vunpack.c.l.s4 1934713408
    %v647 = vunpack.c.0.s8 %v646
    %v648 = vlaneseq
    %v649 = vshrl.u32 %v648, 7
    %v650 = vsub.s32 %v647, %v649
    %v651 = vrot.slane %v637, %v650
    %v652 = vcombine.low %v596, %v612
    %v653 = vcombine.high %v596, %v612
    %v655 = vunpack.c.l.s4 1934713408
    %v656 = vunpack.c.0.s8 %v655
    %v657 = vlaneseq
    %v658 = vshrl.u32 %v657, 7
    %v659 = vsub.s32 %v656, %v658
    %v660 = vrot.slane %v652, %v659
    %v662 = vunpack.c.l.s4 1934713408
    %v663 = vunpack.c.0.s8 %v662
    %v664 = vlaneseq
    %v665 = vshrl.u32 %v664, 7
    %v666 = vsub.s32 %v663, %v665
    %v667 = vrot.slane %v653, %v666
    %v668 = vcombine.low %v603, %v619
    %v669 = vcombine.high %v603, %v619
    %v671 = vunpack.c.l.s4 1934713408
    %v672 = vunpack.c.0.s8 %v671
    %v673 = vlaneseq
    %v674 = vshrl.u32 %v673, 7
    %v675 = vsub.s32 %v672, %v674
    %v676 = vrot.slane %v668, %v675
    %v678 = vunpack.c.l.s4 1934713408
    %v679 = vunpack.c.0.s8 %v678
    %v680 = vlaneseq
    %v681 = vshrl.u32 %v680, 7
    %v682 = vsub.s32 %v679, %v681
    %v683 = vrot.slane %v669, %v682
    %v684 = vcombine.low %v628, %v660
    %v685 = vcombine.high %v628, %v660
    %v686 = vcombine.low %v635, %v667
    %v687 = vcombine.high %v635, %v667
    %v688 = vcombine.low %v644, %v676
    %v689 = vcombine.high %v644, %v676
    %v690 = vcombine.low %v651, %v683
    %v691 = vcombine.high %v651, %v683
    %v692 = vcombine.low %v239, %v251
    %v693 = vcombine.high %v239, %v251
    %v695 = vunpack.c.l.s4 1983009808
    %v696 = vunpack.c.0.s8 %v695
    %v697 = vlaneseq
    %v698 = vshrl.u32 %v697, 7
    %v699 = vsub.s32 %v696, %v698
    %v700 = vrot.slane %v692, %v699
    %v702 = vunpack.c.l.s4 1983009808
    %v703 = vunpack.c.0.s8 %v702
    %v704 = vlaneseq
    %v705 = vshrl.u32 %v704, 7
    %v706 = vsub.s32 %v703, %v705
    %v707 = vrot.slane %v693, %v706
    %v708 = vcombine.low %v245, %v257
    %v709 = vcombine.high %v245, %v257
    %v711 = vunpack.c.l.s4 1983009808
    %v712 = vunpack.c.0.s8 %v711
    %v713 = vlaneseq
    %v714 = vshrl.u32 %v713, 7
    %v715 = vsub.s32 %v712, %v714
    %v716 = vrot.slane %v708, %v715
    %v718 = vunpack.c.l.s4 1983009808
    %v719 = vunpack.c.0.s8 %v718
    %v720 = vlaneseq
    %v721 = vshrl.u32 %v720, 7
    %v722 = vsub.s32 %v719, %v721
    %v723 = vrot.slane %v709, %v722
    %v724 = vcombine.low %v263, %v275
    %v725 = vcombine.high %v263, %v275
    %v727 = vunpack.c.l.s4 1983009808
    %v728 = vunpack.c.0.s8 %v727
    %v729 = vlaneseq
    %v730 = vshrl.u32 %v729, 7
    %v731 = vsub.s32 %v728, %v730
    %v732 = vrot.slane %v724, %v731
    %v734 = vunpack.c.l.s4 1983009808
    %v735 = vunpack.c.0.s8 %v734
    %v736 = vlaneseq
    %v737 = vshrl.u32 %v736, 7
    %v738 = vsub.s32 %v735, %v737
    %v739 = vrot.slane %v725, %v738
    %v740 = vcombine.low %v269, %v281
    %v741 = vcombine.high %v269, %v281
    %v743 = vunpack.c.l.s4 1983009808
    %v744 = vunpack.c.0.s8 %v743
    %v745 = vlaneseq
    %v746 = vshrl.u32 %v745, 7
    %v747 = vsub.s32 %v744, %v746
    %v748 = vrot.slane %v740, %v747
    %v750 = vunpack.c.l.s4 1983009808
    %v751 = vunpack.c.0.s8 %v750
    %v752 = vlaneseq
    %v753 = vshrl.u32 %v752, 7
    %v754 = vsub.s32 %v751, %v753
    %v755 = vrot.slane %v741, %v754
    %v756 = vcombine.low %v700, %v716
    %v757 = vcombine.high %v700, %v716
    %v759 = vunpack.c.l.s4 1934713408
    %v760 = vunpack.c.0.s8 %v759
    %v761 = vlaneseq
    %v762 = vshrl.u32 %v761, 7
    %v763 = vsub.s32 %v760, %v762
    %v764 = vrot.slane %v756, %v763
    %v766 = vunpack.c.l.s4 1934713408
    %v767 = vunpack.c.0.s8 %v766
    %v768 = vlaneseq
    %v769 = vshrl.u32 %v768, 7
    %v770 = vsub.s32 %v767, %v769
    %v771 = vrot.slane %v757, %v770
    %v772 = vcombine.low %v707, %v723
    %v773 = vcombine.high %v707, %v723
    %v775 = vunpack.c.l.s4 1934713408
    %v776 = vunpack.c.0.s8 %v775
    %v777 = vlaneseq
    %v778 = vshrl.u32 %v777, 7
    %v779 = vsub.s32 %v776, %v778
    %v780 = vrot.slane %v772, %v779
    %v782 = vunpack.c.l.s4 1934713408
    %v783 = vunpack.c.0.s8 %v782
    %v784 = vlaneseq
    %v785 = vshrl.u32 %v784, 7
    %v786 = vsub.s32 %v783, %v785
    %v787 = vrot.slane %v773, %v786
    %v788 = vcombine.low %v732, %v748
    %v789 = vcombine.high %v732, %v748
    %v791 = vunpack.c.l.s4 1934713408
    %v792 = vunpack.c.0.s8 %v791
    %v793 = vlaneseq
    %v794 = vshrl.u32 %v793, 7
    %v795 = vsub.s32 %v792, %v794
    %v796 = vrot.slane %v788, %v795
    %v798 = vunpack.c.l.s4 1934713408
    %v799 = vunpack.c.0.s8 %v798
    %v800 = vlaneseq
    %v801 = vshrl.u32 %v800, 7
    %v802 = vsub.s32 %v799, %v801
    %v803 = vrot.slane %v789, %v802
    %v804 = vcombine.low %v739, %v755
    %v805 = vcombine.high %v739, %v755
    %v807 = vunpack.c.l.s4 1934713408
    %v808 = vunpack.c.0.s8 %v807
    %v809 = vlaneseq
    %v810 = vshrl.u32 %v809, 7
    %v811 = vsub.s32 %v808, %v810
    %v812 = vrot.slane %v804, %v811
    %v814 = vunpack.c.l.s4 1934713408
    %v815 = vunpack.c.0.s8 %v814
    %v816 = vlaneseq
    %v817 = vshrl.u32 %v816, 7
    %v818 = vsub.s32 %v815, %v817
    %v819 = vrot.slane %v805, %v818
    %v820 = vcombine.low %v764, %v796
    %v821 = vcombine.high %v764, %v796
    %v822 = vcombine.low %v771, %v803
    %v823 = vcombine.high %v771, %v803
    %v824 = vcombine.low %v780, %v812
    %v825 = vcombine.high %v780, %v812
    %v826 = vcombine.low %v787, %v819
    %v827 = vcombine.high %v787, %v819
    %v828 = vcombine.low %v412, %v414
    %v829 = vcombine.high %v412, %v414
    %v831 = vunpack.c.l.s4 1983009808
    %v832 = vunpack.c.0.s8 %v831
    %v833 = vlaneseq
    %v834 = vshrl.u32 %v833, 7
    %v835 = vsub.s32 %v832, %v834
    %v836 = vrot.slane %v828, %v835
    %v838 = vunpack.c.l.s4 1983009808
    %v839 = vunpack.c.0.s8 %v838
    %v840 = vlaneseq
    %v841 = vshrl.u32 %v840, 7
    %v842 = vsub.s32 %v839, %v841
    %v843 = vrot.slane %v829, %v842
    %v844 = vcombine.low %v413, %v415
    %v845 = vcombine.high %v413, %v415
    %v847 = vunpack.c.l.s4 1983009808
    %v848 = vunpack.c.0.s8 %v847
    %v849 = vlaneseq
    %v850 = vshrl.u32 %v849, 7
    %v851 = vsub.s32 %v848, %v850
    %v852 = vrot.slane %v844, %v851
    %v854 = vunpack.c.l.s4 1983009808
    %v855 = vunpack.c.0.s8 %v854
    %v856 = vlaneseq
    %v857 = vshrl.u32 %v856, 7
    %v858 = vsub.s32 %v855, %v857
    %v859 = vrot.slane %v845, %v858
    %v860 = vcombine.low %v416, %v418
    %v861 = vcombine.high %v416, %v418
    %v863 = vunpack.c.l.s4 1983009808
    %v864 = vunpack.c.0.s8 %v863
    %v865 = vlaneseq
    %v866 = vshrl.u32 %v865, 7
    %v867 = vsub.s32 %v864, %v866
    %v868 = vrot.slane %v860, %v867
    %v870 = vunpack.c.l.s4 1983009808
    %v871 = vunpack.c.0.s8 %v870
    %v872 = vlaneseq
    %v873 = vshrl.u32 %v872, 7
    %v874 = vsub.s32 %v871, %v873
    %v875 = vrot.slane %v861, %v874
    %v876 = vcombine.low %v417, %v419
    %v877 = vcombine.high %v417, %v419
    %v879 = vunpack.c.l.s4 1983009808
    %v880 = vunpack.c.0.s8 %v879
    %v881 = vlaneseq
    %v882 = vshrl.u32 %v881, 7
    %v883 = vsub.s32 %v880, %v882
    %v884 = vrot.slane %v876, %v883
    %v886 = vunpack.c.l.s4 1983009808
    %v887 = vunpack.c.0.s8 %v886
    %v888 = vlaneseq
    %v889 = vshrl.u32 %v888, 7
    %v890 = vsub.s32 %v887, %v889
    %v891 = vrot.slane %v877, %v890
    %v892 = vcombine.low %v836, %v852
    %v893 = vcombine.high %v836, %v852
    %v895 = vunpack.c.l.s4 1934713408
    %v896 = vunpack.c.0.s8 %v895
    %v897 = vlaneseq
    %v898 = vshrl.u32 %v897, 7
    %v899 = vsub.s32 %v896, %v898
    %v900 = vrot.slane %v892, %v899
    %v902 = vunpack.c.l.s4 1934713408
    %v903 = vunpack.c.0.s8 %v902
    %v904 = vlaneseq
    %v905 = vshrl.u32 %v904, 7
    %v906 = vsub.s32 %v903, %v905
    %v907 = vrot.slane %v893, %v906
    %v908 = vcombine.low %v843, %v859
    %v909 = vcombine.high %v843, %v859
    %v911 = vunpack.c.l.s4 1934713408
    %v912 = vunpack.c.0.s8 %v911
    %v913 = vlaneseq
    %v914 = vshrl.u32 %v913, 7
    %v915 = vsub.s32 %v912, %v914
    %v916 = vrot.slane %v908, %v915
    %v918 = vunpack.c.l.s4 1934713408
    %v919 = vunpack.c.0.s8 %v918
    %v920 = vlaneseq
    %v921 = vshrl.u32 %v920, 7
    %v922 = vsub.s32 %v919, %v921
    %v923 = vrot.slane %v909, %v922
    %v924 = vcombine.low %v868, %v884
    %v925 = vcombine.high %v868, %v884
    %v927 = vunpack.c.l.s4 1934713408
    %v928 = vunpack.c.0.s8 %v927
    %v929 = vlaneseq
    %v930 = vshrl.u32 %v929, 7
    %v931 = vsub.s32 %v928, %v930
    %v932 = vrot.slane %v924, %v931
    %v934 = vunpack.c.l.s4 1934713408
    %v935 = vunpack.c.0.s8 %v934
    %v936 = vlaneseq
    %v937 = vshrl.u32 %v936, 7
    %v938 = vsub.s32 %v935, %v937
    %v939 = vrot.slane %v925, %v938
    %v940 = vcombine.low %v875, %v891
    %v941 = vcombine.high %v875, %v891
    %v943 = vunpack.c.l.s4 1934713408
    %v944 = vunpack.c.0.s8 %v943
    %v945 = vlaneseq
    %v946 = vshrl.u32 %v945, 7
    %v947 = vsub.s32 %v944, %v946
    %v948 = vrot.slane %v940, %v947
    %v950 = vunpack.c.l.s4 1934713408
    %v951 = vunpack.c.0.s8 %v950
    %v952 = vlaneseq
    %v953 = vshrl.u32 %v952, 7
    %v954 = vsub.s32 %v951, %v953
    %v955 = vrot.slane %v941, %v954
    %v956 = vcombine.low %v900, %v932
    %v957 = vcombine.high %v900, %v932
    %v958 = vcombine.low %v907, %v939
    %v959 = vcombine.high %v907, %v939
    %v960 = vcombine.low %v916, %v948
    %v961 = vcombine.high %v916, %v948
    %v962 = vcombine.low %v923, %v955
    %v963 = vcombine.high %v923, %v955
    %v964 = vcombine.low %v684, %v686
    %v965 = vcombine.high %v684, %v686
    %v967 = vunpack.c.l.s4 1983009808
    %v968 = vunpack.c.0.s8 %v967
    %v969 = vlaneseq
    %v970 = vshrl.u32 %v969, 7
    %v971 = vsub.s32 %v968, %v970
    %v972 = vrot.slane %v964, %v971
    %v974 = vunpack.c.l.s4 1983009808
    %v975 = vunpack.c.0.s8 %v974
    %v976 = vlaneseq
    %v977 = vshrl.u32 %v976, 7
    %v978 = vsub.s32 %v975, %v977
    %v979 = vrot.slane %v965, %v978
    %v980 = vcombine.low %v685, %v687
    %v981 = vcombine.high %v685, %v687
    %v983 = vunpack.c.l.s4 1983009808
    %v984 = vunpack.c.0.s8 %v983
    %v985 = vlaneseq
    %v986 = vshrl.u32 %v985, 7
    %v987 = vsub.s32 %v984, %v986
    %v988 = vrot.slane %v980, %v987
    %v990 = vunpack.c.l.s4 1983009808
    %v991 = vunpack.c.0.s8 %v990
    %v992 = vlaneseq
    %v993 = vshrl.u32 %v992, 7
    %v994 = vsub.s32 %v991, %v993
    %v995 = vrot.slane %v981, %v994
    %v996 = vcombine.low %v688, %v690
    %v997 = vcombine.high %v688, %v690
    %v999 = vunpack.c.l.s4 1983009808
    %v1000 = vunpack.c.0.s8 %v999
    %v1001 = vlaneseq
    %v1002 = vshrl.u32 %v1001, 7
    %v1003 = vsub.s32 %v1000, %v1002
    %v1004 = vrot.slane %v996, %v1003
    %v1006 = vunpack.c.l.s4 1983009808
    %v1007 = vunpack.c.0.s8 %v1006
    %v1008 = vlaneseq
    %v1009 = vshrl.u32 %v1008, 7
    %v1010 = vsub.s32 %v1007, %v1009
    %v1011 = vrot.slane %v997, %v1010
    %v1012 = vcombine.low %v689, %v691
    %v1013 = vcombine.high %v689, %v691
    %v1015 = vunpack.c.l.s4 1983009808
    %v1016 = vunpack.c.0.s8 %v1015
    %v1017 = vlaneseq
    %v1018 = vshrl.u32 %v1017, 7
    %v1019 = vsub.s32 %v1016, %v1018
    %v1020 = vrot.slane %v1012, %v1019
    %v1022 = vunpack.c.l.s4 1983009808
    %v1023 = vunpack.c.0.s8 %v1022
    %v1024 = vlaneseq
    %v1025 = vshrl.u32 %v1024, 7
    %v1026 = vsub.s32 %v1023, %v1025
    %v1027 = vrot.slane %v1013, %v1026
    %v1028 = vcombine.low %v972, %v988
    %v1029 = vcombine.high %v972, %v988
    %v1031 = vunpack.c.l.s4 1934713408
    %v1032 = vunpack.c.0.s8 %v1031
    %v1033 = vlaneseq
    %v1034 = vshrl.u32 %v1033, 7
    %v1035 = vsub.s32 %v1032, %v1034
    %v1036 = vrot.slane %v1028, %v1035
    %v1038 = vunpack.c.l.s4 1934713408
    %v1039 = vunpack.c.0.s8 %v1038
    %v1040 = vlaneseq
    %v1041 = vshrl.u32 %v1040, 7
    %v1042 = vsub.s32 %v1039, %v1041
    %v1043 = vrot.slane %v1029, %v1042
    %v1044 = vcombine.low %v979, %v995
    %v1045 = vcombine.high %v979, %v995
    %v1047 = vunpack.c.l.s4 1934713408
    %v1048 = vunpack.c.0.s8 %v1047
    %v1049 = vlaneseq
    %v1050 = vshrl.u32 %v1049, 7
    %v1051 = vsub.s32 %v1048, %v1050
    %v1052 = vrot.slane %v1044, %v1051
    %v1054 = vunpack.c.l.s4 1934713408
    %v1055 = vunpack.c.0.s8 %v1054
    %v1056 = vlaneseq
    %v1057 = vshrl.u32 %v1056, 7
    %v1058 = vsub.s32 %v1055, %v1057
    %v1059 = vrot.slane %v1045, %v1058
    %v1060 = vcombine.low %v1004, %v1020
    %v1061 = vcombine.high %v1004, %v1020
    %v1063 = vunpack.c.l.s4 1934713408
    %v1064 = vunpack.c.0.s8 %v1063
    %v1065 = vlaneseq
    %v1066 = vshrl.u32 %v1065, 7
    %v1067 = vsub.s32 %v1064, %v1066
    %v1068 = vrot.slane %v1060, %v1067
    %v1070 = vunpack.c.l.s4 1934713408
    %v1071 = vunpack.c.0.s8 %v1070
    %v1072 = vlaneseq
    %v1073 = vshrl.u32 %v1072, 7
    %v1074 = vsub.s32 %v1071, %v1073
    %v1075 = vrot.slane %v1061, %v1074
    %v1076 = vcombine.low %v1011, %v1027
    %v1077 = vcombine.high %v1011, %v1027
    %v1079 = vunpack.c.l.s4 1934713408
    %v1080 = vunpack.c.0.s8 %v1079
    %v1081 = vlaneseq
    %v1082 = vshrl.u32 %v1081, 7
    %v1083 = vsub.s32 %v1080, %v1082
    %v1084 = vrot.slane %v1076, %v1083
    %v1086 = vunpack.c.l.s4 1934713408
    %v1087 = vunpack.c.0.s8 %v1086
    %v1088 = vlaneseq
    %v1089 = vshrl.u32 %v1088, 7
    %v1090 = vsub.s32 %v1087, %v1089
    %v1091 = vrot.slane %v1077, %v1090
    %v1092 = vcombine.low %v1036, %v1068
    %v1093 = vcombine.high %v1036, %v1068
    %v1094 = vcombine.low %v1043, %v1075
    %v1095 = vcombine.high %v1043, %v1075
    %v1096 = vcombine.low %v1052, %v1084
    %v1097 = vcombine.high %v1052, %v1084
    %v1098 = vcombine.low %v1059, %v1091
    %v1099 = vcombine.high %v1059, %v1091
    %v1100 = vcombine.low %v548, %v550
    %v1102 = vunpack.c.l.s4 1983009808
    %v1103 = vunpack.c.0.s8 %v1102
    %v1104 = vlaneseq
    %v1105 = vshrl.u32 %v1104, 7
    %v1106 = vsub.s32 %v1103, %v1105
    %v1107 = vrot.slane %v1100, %v1106
    %v1108 = vcombine.low %v549, %v551
    %v1110 = vunpack.c.l.s4 1983009808
    %v1111 = vunpack.c.0.s8 %v1110
    %v1112 = vlaneseq
    %v1113 = vshrl.u32 %v1112, 7
    %v1114 = vsub.s32 %v1111, %v1113
    %v1115 = vrot.slane %v1108, %v1114
    %v1116 = vcombine.low %v552, %v554
    %v1118 = vunpack.c.l.s4 1983009808
    %v1119 = vunpack.c.0.s8 %v1118
    %v1120 = vlaneseq
    %v1121 = vshrl.u32 %v1120, 7
    %v1122 = vsub.s32 %v1119, %v1121
    %v1123 = vrot.slane %v1116, %v1122
    %v1124 = vcombine.low %v553, %v555
    %v1126 = vunpack.c.l.s4 1983009808
    %v1127 = vunpack.c.0.s8 %v1126
    %v1128 = vlaneseq
    %v1129 = vshrl.u32 %v1128, 7
    %v1130 = vsub.s32 %v1127, %v1129
    %v1131 = vrot.slane %v1124, %v1130
    %v1132 = vcombine.low %v1107, %v1115
    %v1133 = vcombine.high %v1107, %v1115
    %v1135 = vunpack.c.l.s4 1934713408
    %v1136 = vunpack.c.0.s8 %v1135
    %v1137 = vlaneseq
    %v1138 = vshrl.u32 %v1137, 7
    %v1139 = vsub.s32 %v1136, %v1138
    %v1140 = vrot.slane %v1132, %v1139
    %v1142 = vunpack.c.l.s4 1934713408
    %v1143 = vunpack.c.0.s8 %v1142
    %v1144 = vlaneseq
    %v1145 = vshrl.u32 %v1144, 7
    %v1146 = vsub.s32 %v1143, %v1145
    %v1147 = vrot.slane %v1133, %v1146
    %v1148 = vcombine.low %v1123, %v1131
    %v1149 = vcombine.high %v1123, %v1131
    %v1151 = vunpack.c.l.s4 1934713408
    %v1152 = vunpack.c.0.s8 %v1151
    %v1153 = vlaneseq
    %v1154 = vshrl.u32 %v1153, 7
    %v1155 = vsub.s32 %v1152, %v1154
    %v1156 = vrot.slane %v1148, %v1155
    %v1158 = vunpack.c.l.s4 1934713408
    %v1159 = vunpack.c.0.s8 %v1158
    %v1160 = vlaneseq
    %v1161 = vshrl.u32 %v1160, 7
    %v1162 = vsub.s32 %v1159, %v1161
    %v1163 = vrot.slane %v1149, %v1162
    %v1164 = vcombine.low %v1140, %v1156
    %v1165 = vcombine.high %v1140, %v1156
    %v1166 = vcombine.low %v1147, %v1163
    %v1167 = vcombine.high %v1147, %v1163
    %v1168 = vcombine.low %v820, %v822
    %v1170 = vunpack.c.l.s4 1983009808
    %v1171 = vunpack.c.0.s8 %v1170
    %v1172 = vlaneseq
    %v1173 = vshrl.u32 %v1172, 7
    %v1174 = vsub.s32 %v1171, %v1173
    %v1175 = vrot.slane %v1168, %v1174
    %v1176 = vcombine.low %v821, %v823
    %v1178 = vunpack.c.l.s4 1983009808
    %v1179 = vunpack.c.0.s8 %v1178
    %v1180 = vlaneseq
    %v1181 = vshrl.u32 %v1180, 7
    %v1182 = vsub.s32 %v1179, %v1181
    %v1183 = vrot.slane %v1176, %v1182
    %v1184 = vcombine.low %v824, %v826
    %v1186 = vunpack.c.l.s4 1983009808
    %v1187 = vunpack.c.0.s8 %v1186
    %v1188 = vlaneseq
    %v1189 = vshrl.u32 %v1188, 7
    %v1190 = vsub.s32 %v1187, %v1189
    %v1191 = vrot.slane %v1184, %v1190
    %v1192 = vcombine.low %v825, %v827
    %v1194 = vunpack.c.l.s4 1983009808
    %v1195 = vunpack.c.0.s8 %v1194
    %v1196 = vlaneseq
    %v1197 = vshrl.u32 %v1196, 7
    %v1198 = vsub.s32 %v1195, %v1197
    %v1199 = vrot.slane %v1192, %v1198
    %v1200 = vcombine.low %v1175, %v1183
    %v1201 = vcombine.high %v1175, %v1183
    %v1203 = vunpack.c.l.s4 1934713408
    %v1204 = vunpack.c.0.s8 %v1203
    %v1205 = vlaneseq
    %v1206 = vshrl.u32 %v1205, 7
    %v1207 = vsub.s32 %v1204, %v1206
    %v1208 = vrot.slane %v1200, %v1207
    %v1210 = vunpack.c.l.s4 1934713408
    %v1211 = vunpack.c.0.s8 %v1210
    %v1212 = vlaneseq
    %v1213 = vshrl.u32 %v1212, 7
    %v1214 = vsub.s32 %v1211, %v1213
    %v1215 = vrot.slane %v1201, %v1214
    %v1216 = vcombine.low %v1191, %v1199
    %v1217 = vcombine.high %v1191, %v1199
    %v1219 = vunpack.c.l.s4 1934713408
    %v1220 = vunpack.c.0.s8 %v1219
    %v1221 = vlaneseq
    %v1222 = vshrl.u32 %v1221, 7
    %v1223 = vsub.s32 %v1220, %v1222
    %v1224 = vrot.slane %v1216, %v1223
    %v1226 = vunpack.c.l.s4 1934713408
    %v1227 = vunpack.c.0.s8 %v1226
    %v1228 = vlaneseq
    %v1229 = vshrl.u32 %v1228, 7
    %v1230 = vsub.s32 %v1227, %v1229
    %v1231 = vrot.slane %v1217, %v1230
    %v1232 = vcombine.low %v1208, %v1224
    %v1233 = vcombine.high %v1208, %v1224
    %v1234 = vcombine.low %v1215, %v1231
    %v1235 = vcombine.high %v1215, %v1231
    %v1236 = vpack.c.bf16 %v1092, %v956
    %v1237 = vpack.c.bf16 %v1093, %v957
    %v1238 = vpack.c.bf16 %v1094, %v958
    %v1239 = vpack.c.bf16 %v1095, %v959
    %v1240 = vpack.c.bf16 %v1096, %v960
    %v1241 = vpack.c.bf16 %v1097, %v961
    %v1242 = vpack.c.bf16 %v1098, %v962
    %v1243 = vpack.c.bf16 %v1099, %v963
    %v1244 = vpack.c.bf16 %v1232, %v1164
    %v1245 = vpack.c.bf16 %v1233, %v1165
    %v1246 = vpack.c.bf16 %v1234, %v1166
    %v1247 = vpack.c.bf16 %v1235, %v1167
    %vm1248 = vcmask 64512
    %v1250 = vsel %vm1248, %v1236, 0
    %v1253 = vsel %vm1248, %v1240, 0
    %1255 = vmatprep.subr.bf16.mxu0 0
    %1256 = vmatpush1.bf16.xpose.msra.mxu0 %v1253
    %1257 = vmatprep.subr.bf16.mxu0 0
    %1258 = vmatpush1.bf16.xpose.msra.mxu0 0
    %1259 = vmatprep.subr.bf16.mxu0 0
    %1260 = vmatpush1.bf16.xpose.msra.mxu0 0
    %1261 = vmatprep.subr.bf16.mxu0 0
    %1262 = vmatpush1.bf16.xpose.msra.mxu0 0
    %1263 = vmatprep.subr.bf16.mxu0 0
    %1264 = vmatpush1.bf16.xpose.msra.mxu0 0
    %1265 = vmatprep.subr.bf16.mxu0 0
    %1266 = vmatpush1.bf16.xpose.msra.mxu0 0
    %1267 = vmatprep.subr.bf16.mxu0 0
    %1268 = vmatpush1.bf16.xpose.msra.mxu0 0
    %1269 = vmatprep.subr.bf16.mxu0 0
    %1270 = vmatpush1.bf16.xpose.msra.mxu0 0
    %1271 = vmatprep.subr.bf16.mxu0 0
    %1272 = vmatpush1.bf16.xpose.msra.mxu0 0
    %1273 = vmatprep.subr.bf16.mxu0 0
    %1274 = vmatpush1.bf16.xpose.msra.mxu0 0
    %1275 = vmatprep.subr.bf16.mxu0 0
    %1276 = vmatpush1.bf16.xpose.msra.mxu0 0
    %1277 = vmatprep.subr.bf16.mxu0 0
    %1278 = vmatpush1.bf16.xpose.msra.mxu0 0
    %1279 = vmatprep.subr.bf16.mxu0 0
    %1280 = vmatpush1.bf16.xpose.msra.mxu0 0
    %1281 = vmatprep.subr.bf16.mxu0 0
    %1282 = vmatpush1.bf16.xpose.msra.mxu0 0
    %1283 = vmatprep.subr.bf16.mxu0 0
    %1284 = vmatpush1.bf16.xpose.msra.mxu0 0
    %1285 = vmatprep.subr.bf16.mxu0 0
    %1286 = vmatpush1.bf16.xpose.msra.mxu0 0
    %1287 = vmatprep.mubr.bf16.mxu0 0
    %1288 = vmatmul.mubr.bf16.gmra.mrb[0].mxu0 %v1250
    %v1289 = vpop.f32.mrb[0].mxu0
    %v1290 = vadd.f32 %v38, %v1289
    %v1291 = vpop.f32.mrb[0].mxu0
    %v1292 = vpop.f32.mrb[0].mxu0
    %v1293 = vadd.f32 %v39, %v1292
    %v1294 = vpop.f32.mrb[0].mxu0
    %1295 = vdwg.mxu0
    %v1297 = vsel %vm1248, %v1237, 0
    %v1300 = vsel %vm1248, %v1241, 0
    %1302 = vmatprep.subr.bf16.mxu0 0
    %1303 = vmatpush1.bf16.xpose.msra.mxu0 %v1300
    %1304 = vmatprep.subr.bf16.mxu0 0
    %1305 = vmatpush1.bf16.xpose.msra.mxu0 0
    %1306 = vmatprep.subr.bf16.mxu0 0
    %1307 = vmatpush1.bf16.xpose.msra.mxu0 0
    %1308 = vmatprep.subr.bf16.mxu0 0
    %1309 = vmatpush1.bf16.xpose.msra.mxu0 0
    %1310 = vmatprep.subr.bf16.mxu0 0
    %1311 = vmatpush1.bf16.xpose.msra.mxu0 0
    %1312 = vmatprep.subr.bf16.mxu0 0
    %1313 = vmatpush1.bf16.xpose.msra.mxu0 0
    %1314 = vmatprep.subr.bf16.mxu0 0
    %1315 = vmatpush1.bf16.xpose.msra.mxu0 0
    %1316 = vmatprep.subr.bf16.mxu0 0
    %1317 = vmatpush1.bf16.xpose.msra.mxu0 0
    %1318 = vmatprep.subr.bf16.mxu0 0
    %1319 = vmatpush1.bf16.xpose.msra.mxu0 0
    %1320 = vmatprep.subr.bf16.mxu0 0
    %1321 = vmatpush1.bf16.xpose.msra.mxu0 0
    %1322 = vmatprep.subr.bf16.mxu0 0
    %1323 = vmatpush1.bf16.xpose.msra.mxu0 0
    %1324 = vmatprep.subr.bf16.mxu0 0
    %1325 = vmatpush1.bf16.xpose.msra.mxu0 0
    %1326 = vmatprep.subr.bf16.mxu0 0
    %1327 = vmatpush1.bf16.xpose.msra.mxu0 0
    %1328 = vmatprep.subr.bf16.mxu0 0
    %1329 = vmatpush1.bf16.xpose.msra.mxu0 0
    %1330 = vmatprep.subr.bf16.mxu0 0
    %1331 = vmatpush1.bf16.xpose.msra.mxu0 0
    %1332 = vmatprep.subr.bf16.mxu0 0
    %1333 = vmatpush1.bf16.xpose.msra.mxu0 0
    %1334 = vmatprep.mubr.bf16.mxu0 0
    %1335 = vmatmul.mubr.bf16.gmra.mrb[0].mxu0 %v1297
    %v1336 = vpop.f32.mrb[0].mxu0
    %v1337 = vadd.f32 %v38, %v1336
    %v1338 = vpop.f32.mrb[0].mxu0
    %v1339 = vpop.f32.mrb[0].mxu0
    %v1340 = vadd.f32 %v39, %v1339
    %v1341 = vpop.f32.mrb[0].mxu0
    %1342 = vdwg.mxu0
    %v1344 = vsel %vm1248, %v1238, 0
    %v1347 = vsel %vm1248, %v1242, 0
    %1349 = vmatprep.subr.bf16.mxu0 0
    %1350 = vmatpush1.bf16.xpose.msra.mxu0 %v1347
    %1351 = vmatprep.subr.bf16.mxu0 0
    %1352 = vmatpush1.bf16.xpose.msra.mxu0 0
    %1353 = vmatprep.subr.bf16.mxu0 0
    %1354 = vmatpush1.bf16.xpose.msra.mxu0 0
    %1355 = vmatprep.subr.bf16.mxu0 0
    %1356 = vmatpush1.bf16.xpose.msra.mxu0 0
    %1357 = vmatprep.subr.bf16.mxu0 0
    %1358 = vmatpush1.bf16.xpose.msra.mxu0 0
    %1359 = vmatprep.subr.bf16.mxu0 0
    %1360 = vmatpush1.bf16.xpose.msra.mxu0 0
    %1361 = vmatprep.subr.bf16.mxu0 0
    %1362 = vmatpush1.bf16.xpose.msra.mxu0 0
    %1363 = vmatprep.subr.bf16.mxu0 0
    %1364 = vmatpush1.bf16.xpose.msra.mxu0 0
    %1365 = vmatprep.subr.bf16.mxu0 0
    %1366 = vmatpush1.bf16.xpose.msra.mxu0 0
    %1367 = vmatprep.subr.bf16.mxu0 0
    %1368 = vmatpush1.bf16.xpose.msra.mxu0 0
    %1369 = vmatprep.subr.bf16.mxu0 0
    %1370 = vmatpush1.bf16.xpose.msra.mxu0 0
    %1371 = vmatprep.subr.bf16.mxu0 0
    %1372 = vmatpush1.bf16.xpose.msra.mxu0 0
    %1373 = vmatprep.subr.bf16.mxu0 0
    %1374 = vmatpush1.bf16.xpose.msra.mxu0 0
    %1375 = vmatprep.subr.bf16.mxu0 0
    %1376 = vmatpush1.bf16.xpose.msra.mxu0 0
    %1377 = vmatprep.subr.bf16.mxu0 0
    %1378 = vmatpush1.bf16.xpose.msra.mxu0 0
    %1379 = vmatprep.subr.bf16.mxu0 0
    %1380 = vmatpush1.bf16.xpose.msra.mxu0 0
    %1381 = vmatprep.mubr.bf16.mxu0 0
    %1382 = vmatmul.mubr.bf16.gmra.mrb[0].mxu0 %v1344
    %v1383 = vpop.f32.mrb[0].mxu0
    %v1384 = vadd.f32 %v38, %v1383
    %v1385 = vpop.f32.mrb[0].mxu0
    %v1386 = vpop.f32.mrb[0].mxu0
    %v1387 = vadd.f32 %v39, %v1386
    %v1388 = vpop.f32.mrb[0].mxu0
    %1389 = vdwg.mxu0
    %v1391 = vsel %vm1248, %v1239, 0
    %v1394 = vsel %vm1248, %v1243, 0
    %1396 = vmatprep.subr.bf16.mxu0 0
    %1397 = vmatpush1.bf16.xpose.msra.mxu0 %v1394
    %1398 = vmatprep.subr.bf16.mxu0 0
    %1399 = vmatpush1.bf16.xpose.msra.mxu0 0
    %1400 = vmatprep.subr.bf16.mxu0 0
    %1401 = vmatpush1.bf16.xpose.msra.mxu0 0
    %1402 = vmatprep.subr.bf16.mxu0 0
    %1403 = vmatpush1.bf16.xpose.msra.mxu0 0
    %1404 = vmatprep.subr.bf16.mxu0 0
    %1405 = vmatpush1.bf16.xpose.msra.mxu0 0
    %1406 = vmatprep.subr.bf16.mxu0 0
    %1407 = vmatpush1.bf16.xpose.msra.mxu0 0
    %1408 = vmatprep.subr.bf16.mxu0 0
    %1409 = vmatpush1.bf16.xpose.msra.mxu0 0
    %1410 = vmatprep.subr.bf16.mxu0 0
    %1411 = vmatpush1.bf16.xpose.msra.mxu0 0
    %1412 = vmatprep.subr.bf16.mxu0 0
    %1413 = vmatpush1.bf16.xpose.msra.mxu0 0
    %1414 = vmatprep.subr.bf16.mxu0 0
    %1415 = vmatpush1.bf16.xpose.msra.mxu0 0
    %1416 = vmatprep.subr.bf16.mxu0 0
    %1417 = vmatpush1.bf16.xpose.msra.mxu0 0
    %1418 = vmatprep.subr.bf16.mxu0 0
    %1419 = vmatpush1.bf16.xpose.msra.mxu0 0
    %1420 = vmatprep.subr.bf16.mxu0 0
    %1421 = vmatpush1.bf16.xpose.msra.mxu0 0
    %1422 = vmatprep.subr.bf16.mxu0 0
    %1423 = vmatpush1.bf16.xpose.msra.mxu0 0
    %1424 = vmatprep.subr.bf16.mxu0 0
    %1425 = vmatpush1.bf16.xpose.msra.mxu0 0
    %1426 = vmatprep.subr.bf16.mxu0 0
    %1427 = vmatpush1.bf16.xpose.msra.mxu0 0
    %1428 = vmatprep.mubr.bf16.mxu0 0
    %1429 = vmatmul.mubr.bf16.gmra.mrb[0].mxu0 %v1391
    %v1430 = vpop.f32.mrb[0].mxu0
    %v1431 = vadd.f32 %v38, %v1430
    %v1432 = vpop.f32.mrb[0].mxu0
    %v1433 = vpop.f32.mrb[0].mxu0
    %v1434 = vadd.f32 %v39, %v1433
    %v1435 = vpop.f32.mrb[0].mxu0
    %1436 = vdwg.mxu0
    %vm1437 = vcmask 130048
    %v1438 = vsel %vm1437, %v1290, -inf
    %1439 = vmax.xlane.f32.xlu0 %v1438
    %v1440 = vpop.xlane.xlu0 %1439
    %v1441 = vsel %vm1437, %v1293, -inf
    %1442 = vmax.xlane.f32.xlu0 %v1441
    %v1443 = vpop.xlane.xlu0 %1442
    %v1444 = vsel %vm1437, %v1337, -inf
    %1445 = vmax.xlane.f32.xlu0 %v1444
    %v1446 = vpop.xlane.xlu0 %1445
    %v1447 = vsel %vm1437, %v1340, -inf
    %1448 = vmax.xlane.f32.xlu0 %v1447
    %v1449 = vpop.xlane.xlu0 %1448
    %v1450 = vsel %vm1437, %v1384, -inf
    %1451 = vmax.xlane.f32.xlu0 %v1450
    %v1452 = vpop.xlane.xlu0 %1451
    %v1453 = vsel %vm1437, %v1387, -inf
    %1454 = vmax.xlane.f32.xlu0 %v1453
    %v1455 = vpop.xlane.xlu0 %1454
    %v1456 = vsel %vm1437, %v1431, -inf
    %1457 = vmax.xlane.f32.xlu0 %v1456
    %v1458 = vpop.xlane.xlu0 %1457
    %v1459 = vsel %vm1437, %v1434, -inf
    %1460 = vmax.xlane.f32.xlu0 %v1459
    %v1461 = vpop.xlane.xlu0 %1460
    %v1462 = vsub.f32 %v1290, %v1440
    %v1463 = vsub.f32 %v1293, %v1443
    %v1464 = vsub.f32 %v1337, %v1446
    %v1465 = vsub.f32 %v1340, %v1449
    %v1466 = vsub.f32 %v1384, %v1452
    %v1467 = vsub.f32 %v1387, %v1455
    %v1468 = vsub.f32 %v1431, %v1458
    %v1469 = vsub.f32 %v1434, %v1461
    %v1470 = vmul.f32 %v1462, 1.442695
    %v1471 = vpow.pop %v1470
    %v1472 = vmul.f32 %v1463, 1.442695
    %v1473 = vpow.pop %v1472
    %v1474 = vmul.f32 %v1464, 1.442695
    %v1475 = vpow.pop %v1474
    %v1476 = vmul.f32 %v1465, 1.442695
    %v1477 = vpow.pop %v1476
    %v1478 = vmul.f32 %v1466, 1.442695
    %v1479 = vpow.pop %v1478
    %v1480 = vmul.f32 %v1467, 1.442695
    %v1481 = vpow.pop %v1480
    %v1482 = vmul.f32 %v1468, 1.442695
    %v1483 = vpow.pop %v1482
    %v1484 = vmul.f32 %v1469, 1.442695
    %v1485 = vpow.pop %v1484
    %v1486 = vsel %vm1437, %v1471, 0.0
    %1487 = vadd.xlane.f32.xlu0 %v1486
    %v1488 = vpop.xlane.xlu0 %1487
    %v1489 = vsel %vm1437, %v1473, 0.0
    %1490 = vadd.xlane.f32.xlu0 %v1489
    %v1491 = vpop.xlane.xlu0 %1490
    %v1492 = vsel %vm1437, %v1475, 0.0
    %1493 = vadd.xlane.f32.xlu0 %v1492
    %v1494 = vpop.xlane.xlu0 %1493
    %v1495 = vsel %vm1437, %v1477, 0.0
    %1496 = vadd.xlane.f32.xlu0 %v1495
    %v1497 = vpop.xlane.xlu0 %1496
    %v1498 = vsel %vm1437, %v1479, 0.0
    %1499 = vadd.xlane.f32.xlu0 %v1498
    %v1500 = vpop.xlane.xlu0 %1499
    %v1501 = vsel %vm1437, %v1481, 0.0
    %1502 = vadd.xlane.f32.xlu0 %v1501
    %v1503 = vpop.xlane.xlu0 %1502
    %v1504 = vsel %vm1437, %v1483, 0.0
    %1505 = vadd.xlane.f32.xlu0 %v1504
    %v1506 = vpop.xlane.xlu0 %1505
    %v1507 = vsel %vm1437, %v1485, 0.0
    %1508 = vadd.xlane.f32.xlu0 %v1507
    %v1509 = vpop.xlane.xlu0 %1508
    %v1510 = vrcp.pop %v1488
    %v1511 = vrcp.pop %v1491
    %v1512 = vrcp.pop %v1494
    %v1513 = vrcp.pop %v1497
    %v1514 = vrcp.pop %v1500
    %v1515 = vrcp.pop %v1503
    %v1516 = vrcp.pop %v1506
    %v1517 = vrcp.pop %v1509
    %v1518 = vmul.f32 %v1471, %v1510
    %v1519 = vmul.f32 %v1473, %v1511
    %v1520 = vmul.f32 %v1475, %v1512
    %v1521 = vmul.f32 %v1477, %v1513
    %v1522 = vmul.f32 %v1479, %v1514
    %v1523 = vmul.f32 %v1481, %v1515
    %v1524 = vmul.f32 %v1483, %v1516
    %v1525 = vmul.f32 %v1485, %v1517
    %v1526 = vpack.c.bf16 %v1519, %v1518
    %v1527 = vpack.c.bf16 %v1521, %v1520
    %v1528 = vpack.c.bf16 %v1523, %v1522
    %v1529 = vpack.c.bf16 %v1525, %v1524
    %v1531 = vsel %vm1437, %v1526, 0
    %1533 = vmatprep.subr.bf16.mxu0 0
    %1534 = vmatpush1.bf16.msra.mxu0 %v1244
    %1535 = vmatprep.subr.bf16.mxu0 0
    %1536 = vmatpush1.bf16.msra.mxu0 0
    %1537 = vmatprep.subr.bf16.mxu0 0
    %1538 = vmatpush1.bf16.msra.mxu0 0
    %1539 = vmatprep.subr.bf16.mxu0 0
    %1540 = vmatpush1.bf16.msra.mxu0 0
    %1541 = vmatprep.subr.bf16.mxu0 0
    %1542 = vmatpush1.bf16.msra.mxu0 0
    %1543 = vmatprep.subr.bf16.mxu0 0
    %1544 = vmatpush1.bf16.msra.mxu0 0
    %1545 = vmatprep.subr.bf16.mxu0 0
    %1546 = vmatpush1.bf16.msra.mxu0 0
    %1547 = vmatprep.subr.bf16.mxu0 0
    %1548 = vmatpush1.bf16.msra.mxu0 0
    %1549 = vmatprep.subr.bf16.mxu0 0
    %1550 = vmatpush1.bf16.msra.mxu0 0
    %1551 = vmatprep.subr.bf16.mxu0 0
    %1552 = vmatpush1.bf16.msra.mxu0 0
    %1553 = vmatprep.subr.bf16.mxu0 0
    %1554 = vmatpush1.bf16.msra.mxu0 0
    %1555 = vmatprep.subr.bf16.mxu0 0
    %1556 = vmatpush1.bf16.msra.mxu0 0
    %1557 = vmatprep.subr.bf16.mxu0 0
    %1558 = vmatpush1.bf16.msra.mxu0 0
    %1559 = vmatprep.subr.bf16.mxu0 0
    %1560 = vmatpush1.bf16.msra.mxu0 0
    %1561 = vmatprep.subr.bf16.mxu0 0
    %1562 = vmatpush1.bf16.msra.mxu0 0
    %1563 = vmatprep.subr.bf16.mxu0 0
    %1564 = vmatpush1.bf16.msra.mxu0 0
    %1565 = vmatprep.mubr.bf16.mxu0 0
    %1566 = vmatmul.mubr.bf16.gmra.mrb[0].mxu0 %v1531
    %v1567 = vpop.f32.mrb[0].mxu0
    %v1568 = vadd.f32 0.0, %v1567
    %v1569 = vpop.f32.mrb[0].mxu0
    %v1570 = vpop.f32.mrb[0].mxu0
    %v1571 = vadd.f32 0.0, %v1570
    %v1572 = vpop.f32.mrb[0].mxu0
    %1573 = vdwg.mxu0
    %v1575 = vsel %vm1437, %v1527, 0
    %1577 = vmatprep.subr.bf16.mxu0 0
    %1578 = vmatpush1.bf16.msra.mxu0 %v1245
    %1579 = vmatprep.subr.bf16.mxu0 0
    %1580 = vmatpush1.bf16.msra.mxu0 0
    %1581 = vmatprep.subr.bf16.mxu0 0
    %1582 = vmatpush1.bf16.msra.mxu0 0
    %1583 = vmatprep.subr.bf16.mxu0 0
    %1584 = vmatpush1.bf16.msra.mxu0 0
    %1585 = vmatprep.subr.bf16.mxu0 0
    %1586 = vmatpush1.bf16.msra.mxu0 0
    %1587 = vmatprep.subr.bf16.mxu0 0
    %1588 = vmatpush1.bf16.msra.mxu0 0
    %1589 = vmatprep.subr.bf16.mxu0 0
    %1590 = vmatpush1.bf16.msra.mxu0 0
    %1591 = vmatprep.subr.bf16.mxu0 0
    %1592 = vmatpush1.bf16.msra.mxu0 0
    %1593 = vmatprep.subr.bf16.mxu0 0
    %1594 = vmatpush1.bf16.msra.mxu0 0
    %1595 = vmatprep.subr.bf16.mxu0 0
    %1596 = vmatpush1.bf16.msra.mxu0 0
    %1597 = vmatprep.subr.bf16.mxu0 0
    %1598 = vmatpush1.bf16.msra.mxu0 0
    %1599 = vmatprep.subr.bf16.mxu0 0
    %1600 = vmatpush1.bf16.msra.mxu0 0
    %1601 = vmatprep.subr.bf16.mxu0 0
    %1602 = vmatpush1.bf16.msra.mxu0 0
    %1603 = vmatprep.subr.bf16.mxu0 0
    %1604 = vmatpush1.bf16.msra.mxu0 0
    %1605 = vmatprep.subr.bf16.mxu0 0
    %1606 = vmatpush1.bf16.msra.mxu0 0
    %1607 = vmatprep.subr.bf16.mxu0 0
    %1608 = vmatpush1.bf16.msra.mxu0 0
    %1609 = vmatprep.mubr.bf16.mxu0 0
    %1610 = vmatmul.mubr.bf16.gmra.mrb[0].mxu0 %v1575
    %v1611 = vpop.f32.mrb[0].mxu0
    %v1612 = vadd.f32 0.0, %v1611
    %v1613 = vpop.f32.mrb[0].mxu0
    %v1614 = vpop.f32.mrb[0].mxu0
    %v1615 = vadd.f32 0.0, %v1614
    %v1616 = vpop.f32.mrb[0].mxu0
    %1617 = vdwg.mxu0
    %v1619 = vsel %vm1437, %v1528, 0
    %1621 = vmatprep.subr.bf16.mxu0 0
    %1622 = vmatpush1.bf16.msra.mxu0 %v1246
    %1623 = vmatprep.subr.bf16.mxu0 0
    %1624 = vmatpush1.bf16.msra.mxu0 0
    %1625 = vmatprep.subr.bf16.mxu0 0
    %1626 = vmatpush1.bf16.msra.mxu0 0
    %1627 = vmatprep.subr.bf16.mxu0 0
    %1628 = vmatpush1.bf16.msra.mxu0 0
    %1629 = vmatprep.subr.bf16.mxu0 0
    %1630 = vmatpush1.bf16.msra.mxu0 0
    %1631 = vmatprep.subr.bf16.mxu0 0
    %1632 = vmatpush1.bf16.msra.mxu0 0
    %1633 = vmatprep.subr.bf16.mxu0 0
    %1634 = vmatpush1.bf16.msra.mxu0 0
    %1635 = vmatprep.subr.bf16.mxu0 0
    %1636 = vmatpush1.bf16.msra.mxu0 0
    %1637 = vmatprep.subr.bf16.mxu0 0
    %1638 = vmatpush1.bf16.msra.mxu0 0
    %1639 = vmatprep.subr.bf16.mxu0 0
    %1640 = vmatpush1.bf16.msra.mxu0 0
    %1641 = vmatprep.subr.bf16.mxu0 0
    %1642 = vmatpush1.bf16.msra.mxu0 0
    %1643 = vmatprep.subr.bf16.mxu0 0
    %1644 = vmatpush1.bf16.msra.mxu0 0
    %1645 = vmatprep.subr.bf16.mxu0 0
    %1646 = vmatpush1.bf16.msra.mxu0 0
    %1647 = vmatprep.subr.bf16.mxu0 0
    %1648 = vmatpush1.bf16.msra.mxu0 0
    %1649 = vmatprep.subr.bf16.mxu0 0
    %1650 = vmatpush1.bf16.msra.mxu0 0
    %1651 = vmatprep.subr.bf16.mxu0 0
    %1652 = vmatpush1.bf16.msra.mxu0 0
    %1653 = vmatprep.mubr.bf16.mxu0 0
    %1654 = vmatmul.mubr.bf16.gmra.mrb[0].mxu0 %v1619
    %v1655 = vpop.f32.mrb[0].mxu0
    %v1656 = vadd.f32 0.0, %v1655
    %v1657 = vpop.f32.mrb[0].mxu0
    %v1658 = vpop.f32.mrb[0].mxu0
    %v1659 = vadd.f32 0.0, %v1658
    %v1660 = vpop.f32.mrb[0].mxu0
    %1661 = vdwg.mxu0
    %v1663 = vsel %vm1437, %v1529, 0
    %1665 = vmatprep.subr.bf16.mxu0 0
    %1666 = vmatpush1.bf16.msra.mxu0 %v1247
    %1667 = vmatprep.subr.bf16.mxu0 0
    %1668 = vmatpush1.bf16.msra.mxu0 0
    %1669 = vmatprep.subr.bf16.mxu0 0
    %1670 = vmatpush1.bf16.msra.mxu0 0
    %1671 = vmatprep.subr.bf16.mxu0 0
    %1672 = vmatpush1.bf16.msra.mxu0 0
    %1673 = vmatprep.subr.bf16.mxu0 0
    %1674 = vmatpush1.bf16.msra.mxu0 0
    %1675 = vmatprep.subr.bf16.mxu0 0
    %1676 = vmatpush1.bf16.msra.mxu0 0
    %1677 = vmatprep.subr.bf16.mxu0 0
    %1678 = vmatpush1.bf16.msra.mxu0 0
    %1679 = vmatprep.subr.bf16.mxu0 0
    %1680 = vmatpush1.bf16.msra.mxu0 0
    %1681 = vmatprep.subr.bf16.mxu0 0
    %1682 = vmatpush1.bf16.msra.mxu0 0
    %1683 = vmatprep.subr.bf16.mxu0 0
    %1684 = vmatpush1.bf16.msra.mxu0 0
    %1685 = vmatprep.subr.bf16.mxu0 0
    %1686 = vmatpush1.bf16.msra.mxu0 0
    %1687 = vmatprep.subr.bf16.mxu0 0
    %1688 = vmatpush1.bf16.msra.mxu0 0
    %1689 = vmatprep.subr.bf16.mxu0 0
    %1690 = vmatpush1.bf16.msra.mxu0 0
    %1691 = vmatprep.subr.bf16.mxu0 0
    %1692 = vmatpush1.bf16.msra.mxu0 0
    %1693 = vmatprep.subr.bf16.mxu0 0
    %1694 = vmatpush1.bf16.msra.mxu0 0
    %1695 = vmatprep.subr.bf16.mxu0 0
    %1696 = vmatpush1.bf16.msra.mxu0 0
    %1697 = vmatprep.mubr.bf16.mxu0 0
    %1698 = vmatmul.mubr.bf16.gmra.mrb[0].mxu0 %v1663
    %v1699 = vpop.f32.mrb[0].mxu0
    %v1700 = vadd.f32 0.0, %v1699
    %v1701 = vpop.f32.mrb[0].mxu0
    %v1702 = vpop.f32.mrb[0].mxu0
    %v1703 = vadd.f32 0.0, %v1702
    %v1704 = vpop.f32.mrb[0].mxu0
    %1705 = vdwg.mxu0
    %v1706 = vcombine.low %v1568, %v1656
    %v1707 = vcombine.high %v1568, %v1656
    %v1709 = vunpack.c.l.s4 1983009808
    %v1710 = vunpack.c.0.s8 %v1709
    %v1711 = vlaneseq
    %v1712 = vshrl.u32 %v1711, 7
    %v1713 = vsub.s32 %v1710, %v1712
    %v1714 = vrot.slane %v1706, %v1713
    %v1716 = vunpack.c.l.s4 1983009808
    %v1717 = vunpack.c.0.s8 %v1716
    %v1718 = vlaneseq
    %v1719 = vshrl.u32 %v1718, 7
    %v1720 = vsub.s32 %v1717, %v1719
    %v1721 = vrot.slane %v1707, %v1720
    %v1722 = vcombine.low %v1612, %v1700
    %v1723 = vcombine.high %v1612, %v1700
    %v1725 = vunpack.c.l.s4 1983009808
    %v1726 = vunpack.c.0.s8 %v1725
    %v1727 = vlaneseq
    %v1728 = vshrl.u32 %v1727, 7
    %v1729 = vsub.s32 %v1726, %v1728
    %v1730 = vrot.slane %v1722, %v1729
    %v1732 = vunpack.c.l.s4 1983009808
    %v1733 = vunpack.c.0.s8 %v1732
    %v1734 = vlaneseq
    %v1735 = vshrl.u32 %v1734, 7
    %v1736 = vsub.s32 %v1733, %v1735
    %v1737 = vrot.slane %v1723, %v1736
    %v1738 = vcombine.low %v1714, %v1730
    %v1739 = vcombine.high %v1714, %v1730
    %v1741 = vunpack.c.l.s4 1934713408
    %v1742 = vunpack.c.0.s8 %v1741
    %v1743 = vlaneseq
    %v1744 = vshrl.u32 %v1743, 7
    %v1745 = vsub.s32 %v1742, %v1744
    %v1746 = vrot.slane %v1738, %v1745
    %v1748 = vunpack.c.l.s4 1934713408
    %v1749 = vunpack.c.0.s8 %v1748
    %v1750 = vlaneseq
    %v1751 = vshrl.u32 %v1750, 7
    %v1752 = vsub.s32 %v1749, %v1751
    %v1753 = vrot.slane %v1739, %v1752
    %v1754 = vcombine.low %v1721, %v1737
    %v1755 = vcombine.high %v1721, %v1737
    %v1757 = vunpack.c.l.s4 1934713408
    %v1758 = vunpack.c.0.s8 %v1757
    %v1759 = vlaneseq
    %v1760 = vshrl.u32 %v1759, 7
    %v1761 = vsub.s32 %v1758, %v1760
    %v1762 = vrot.slane %v1754, %v1761
    %v1764 = vunpack.c.l.s4 1934713408
    %v1765 = vunpack.c.0.s8 %v1764
    %v1766 = vlaneseq
    %v1767 = vshrl.u32 %v1766, 7
    %v1768 = vsub.s32 %v1765, %v1767
    %v1769 = vrot.slane %v1755, %v1768
    %v1770 = vcombine.high %v1746, 0.0
    %v1771 = vcombine.high %v1753, 0.0
    %v1772 = vcombine.high %v1762, 0.0
    %v1773 = vcombine.high %v1769, 0.0
    %v1774 = vcombine.low %v1571, %v1659
    %v1775 = vcombine.high %v1571, %v1659
    %v1777 = vunpack.c.l.s4 1983009808
    %v1778 = vunpack.c.0.s8 %v1777
    %v1779 = vlaneseq
    %v1780 = vshrl.u32 %v1779, 7
    %v1781 = vsub.s32 %v1778, %v1780
    %v1782 = vrot.slane %v1774, %v1781
    %v1784 = vunpack.c.l.s4 1983009808
    %v1785 = vunpack.c.0.s8 %v1784
    %v1786 = vlaneseq
    %v1787 = vshrl.u32 %v1786, 7
    %v1788 = vsub.s32 %v1785, %v1787
    %v1789 = vrot.slane %v1775, %v1788
    %v1790 = vcombine.low %v1615, %v1703
    %v1791 = vcombine.high %v1615, %v1703
    %v1793 = vunpack.c.l.s4 1983009808
    %v1794 = vunpack.c.0.s8 %v1793
    %v1795 = vlaneseq
    %v1796 = vshrl.u32 %v1795, 7
    %v1797 = vsub.s32 %v1794, %v1796
    %v1798 = vrot.slane %v1790, %v1797
    %v1800 = vunpack.c.l.s4 1983009808
    %v1801 = vunpack.c.0.s8 %v1800
    %v1802 = vlaneseq
    %v1803 = vshrl.u32 %v1802, 7
    %v1804 = vsub.s32 %v1801, %v1803
    %v1805 = vrot.slane %v1791, %v1804
    %v1806 = vcombine.low %v1782, %v1798
    %v1807 = vcombine.high %v1782, %v1798
    %v1809 = vunpack.c.l.s4 1934713408
    %v1810 = vunpack.c.0.s8 %v1809
    %v1811 = vlaneseq
    %v1812 = vshrl.u32 %v1811, 7
    %v1813 = vsub.s32 %v1810, %v1812
    %v1814 = vrot.slane %v1806, %v1813
    %v1816 = vunpack.c.l.s4 1934713408
    %v1817 = vunpack.c.0.s8 %v1816
    %v1818 = vlaneseq
    %v1819 = vshrl.u32 %v1818, 7
    %v1820 = vsub.s32 %v1817, %v1819
    %v1821 = vrot.slane %v1807, %v1820
    %v1822 = vcombine.low %v1789, %v1805
    %v1823 = vcombine.high %v1789, %v1805
    %v1825 = vunpack.c.l.s4 1934713408
    %v1826 = vunpack.c.0.s8 %v1825
    %v1827 = vlaneseq
    %v1828 = vshrl.u32 %v1827, 7
    %v1829 = vsub.s32 %v1826, %v1828
    %v1830 = vrot.slane %v1822, %v1829
    %v1832 = vunpack.c.l.s4 1934713408
    %v1833 = vunpack.c.0.s8 %v1832
    %v1834 = vlaneseq
    %v1835 = vshrl.u32 %v1834, 7
    %v1836 = vsub.s32 %v1833, %v1835
    %v1837 = vrot.slane %v1823, %v1836
    %v1838 = vcombine.high %v1814, 0.0
    %v1839 = vcombine.high %v1821, 0.0
    %v1840 = vcombine.high %v1830, 0.0
    %v1841 = vcombine.high %v1837, 0.0
    %v1842 = vcombine.low %v1746, %v1753
    %v1844 = vunpack.c.l.s4 1983009808
    %v1845 = vunpack.c.0.s8 %v1844
    %v1846 = vlaneseq
    %v1847 = vshrl.u32 %v1846, 7
    %v1848 = vsub.s32 %v1845, %v1847
    %v1849 = vrot.slane %v1842, %v1848
    %v1850 = vcombine.low %v1770, %v1771
    %v1852 = vunpack.c.l.s4 1983009808
    %v1853 = vunpack.c.0.s8 %v1852
    %v1854 = vlaneseq
    %v1855 = vshrl.u32 %v1854, 7
    %v1856 = vsub.s32 %v1853, %v1855
    %v1857 = vrot.slane %v1850, %v1856
    %v1858 = vcombine.low %v1762, %v1769
    %v1860 = vunpack.c.l.s4 1983009808
    %v1861 = vunpack.c.0.s8 %v1860
    %v1862 = vlaneseq
    %v1863 = vshrl.u32 %v1862, 7
    %v1864 = vsub.s32 %v1861, %v1863
    %v1865 = vrot.slane %v1858, %v1864
    %v1866 = vcombine.low %v1772, %v1773
    %v1868 = vunpack.c.l.s4 1983009808
    %v1869 = vunpack.c.0.s8 %v1868
    %v1870 = vlaneseq
    %v1871 = vshrl.u32 %v1870, 7
    %v1872 = vsub.s32 %v1869, %v1871
    %v1873 = vrot.slane %v1866, %v1872
    %v1874 = vcombine.low %v1849, %v1857
    %v1875 = vcombine.high %v1849, %v1857
    %v1877 = vunpack.c.l.s4 1934713408
    %v1878 = vunpack.c.0.s8 %v1877
    %v1879 = vlaneseq
    %v1880 = vshrl.u32 %v1879, 7
    %v1881 = vsub.s32 %v1878, %v1880
    %v1882 = vrot.slane %v1874, %v1881
    %v1884 = vunpack.c.l.s4 1934713408
    %v1885 = vunpack.c.0.s8 %v1884
    %v1886 = vlaneseq
    %v1887 = vshrl.u32 %v1886, 7
    %v1888 = vsub.s32 %v1885, %v1887
    %v1889 = vrot.slane %v1875, %v1888
    %v1890 = vcombine.low %v1865, %v1873
    %v1891 = vcombine.high %v1865, %v1873
    %v1893 = vunpack.c.l.s4 1934713408
    %v1894 = vunpack.c.0.s8 %v1893
    %v1895 = vlaneseq
    %v1896 = vshrl.u32 %v1895, 7
    %v1897 = vsub.s32 %v1894, %v1896
    %v1898 = vrot.slane %v1890, %v1897
    %v1900 = vunpack.c.l.s4 1934713408
    %v1901 = vunpack.c.0.s8 %v1900
    %v1902 = vlaneseq
    %v1903 = vshrl.u32 %v1902, 7
    %v1904 = vsub.s32 %v1901, %v1903
    %v1905 = vrot.slane %v1891, %v1904
    %v1906 = vcombine.low %v1882, %v1898
    %v1907 = vcombine.high %v1882, %v1898
    %v1908 = vcombine.low %v1889, %v1905
    %v1909 = vcombine.high %v1889, %v1905
    %v1910 = vcombine.low %v1814, %v1821
    %v1912 = vunpack.c.l.s4 1983009808
    %v1913 = vunpack.c.0.s8 %v1912
    %v1914 = vlaneseq
    %v1915 = vshrl.u32 %v1914, 7
    %v1916 = vsub.s32 %v1913, %v1915
    %v1917 = vrot.slane %v1910, %v1916
    %v1918 = vcombine.low %v1838, %v1839
    %v1920 = vunpack.c.l.s4 1983009808
    %v1921 = vunpack.c.0.s8 %v1920
    %v1922 = vlaneseq
    %v1923 = vshrl.u32 %v1922, 7
    %v1924 = vsub.s32 %v1921, %v1923
    %v1925 = vrot.slane %v1918, %v1924
    %v1926 = vcombine.low %v1830, %v1837
    %v1928 = vunpack.c.l.s4 1983009808
    %v1929 = vunpack.c.0.s8 %v1928
    %v1930 = vlaneseq
    %v1931 = vshrl.u32 %v1930, 7
    %v1932 = vsub.s32 %v1929, %v1931
    %v1933 = vrot.slane %v1926, %v1932
    %v1934 = vcombine.low %v1840, %v1841
    %v1936 = vunpack.c.l.s4 1983009808
    %v1937 = vunpack.c.0.s8 %v1936
    %v1938 = vlaneseq
    %v1939 = vshrl.u32 %v1938, 7
    %v1940 = vsub.s32 %v1937, %v1939
    %v1941 = vrot.slane %v1934, %v1940
    %v1942 = vcombine.low %v1917, %v1925
    %v1943 = vcombine.high %v1917, %v1925
    %v1945 = vunpack.c.l.s4 1934713408
    %v1946 = vunpack.c.0.s8 %v1945
    %v1947 = vlaneseq
    %v1948 = vshrl.u32 %v1947, 7
    %v1949 = vsub.s32 %v1946, %v1948
    %v1950 = vrot.slane %v1942, %v1949
    %v1952 = vunpack.c.l.s4 1934713408
    %v1953 = vunpack.c.0.s8 %v1952
    %v1954 = vlaneseq
    %v1955 = vshrl.u32 %v1954, 7
    %v1956 = vsub.s32 %v1953, %v1955
    %v1957 = vrot.slane %v1943, %v1956
    %v1958 = vcombine.low %v1933, %v1941
    %v1959 = vcombine.high %v1933, %v1941
    %v1961 = vunpack.c.l.s4 1934713408
    %v1962 = vunpack.c.0.s8 %v1961
    %v1963 = vlaneseq
    %v1964 = vshrl.u32 %v1963, 7
    %v1965 = vsub.s32 %v1962, %v1964
    %v1966 = vrot.slane %v1958, %v1965
    %v1968 = vunpack.c.l.s4 1934713408
    %v1969 = vunpack.c.0.s8 %v1968
    %v1970 = vlaneseq
    %v1971 = vshrl.u32 %v1970, 7
    %v1972 = vsub.s32 %v1969, %v1971
    %v1973 = vrot.slane %v1959, %v1972
    %v1974 = vcombine.low %v1950, %v1966
    %v1975 = vcombine.high %v1950, %v1966
    %v1976 = vcombine.low %v1957, %v1973
    %v1977 = vcombine.high %v1957, %v1973
    %1980 = vrot.lane.b32.xlu0 %v1907, 8
    %v1981 = vpop.permute.xlu0 %1980
    %1982 = vrot.lane.b32.xlu0 %v1975, 8
    %v1983 = vpop.permute.xlu0 %1982
    %1988 = vrot.lane.b32.xlu0 %v1908, 16
    %v1989 = vpop.permute.xlu0 %1988
    %1990 = vrot.lane.b32.xlu0 %v1976, 16
    %v1991 = vpop.permute.xlu0 %1990
    %1996 = vrot.lane.b32.xlu0 %v1909, 24
    %v1997 = vpop.permute.xlu0 %1996
    %1998 = vrot.lane.b32.xlu0 %v1977, 24
    %v1999 = vpop.permute.xlu0 %1998
    %v2002 = vsel %vm1248, %v1906, %v1981
    %v2003 = vsel %vm1248, %v1974, %v1983
    %v2004 = vsel %vm1437, %v2002, %v1989
    %v2005 = vsel %vm1437, %v2003, %v1991
    %vm2006 = vcmask 195584
    %v2007 = vsel %vm2006, %v2004, %v1997
    %v2008 = vsel %vm2006, %v2005, %v1999
    %v2009 = vld [vmem:[%s3] sm:$0xf]
    %v2010 = vld [vmem:[%s3 + $0x4] sm:$0xf]
    %v2011 = vld [vmem:[%s3 + $0x8] sm:$0xf]
    %v2012 = vld [vmem:[%s3 + $0xc] sm:$0xf]
    %v2013 = vpack.c.bf16 %v2008, %v2007
    %v2014 = vlaneseq
    %v2015 = vshrl.u32 %v2014, 7
    %v2016 = vsub.s32 3, %v2015
    %v2017 = vrot.slane %v35, %v2016
    %v2022 = vunpack.c.l.b16 %v2009
    %v2023 = vunpack.c.l.b16 %v2010
    %v2024 = vunpack.c.l.b16 %v2011
    %v2025 = vunpack.c.l.b16 %v2012
    %v2026 = vpack.c.b16 %v2023, %v2022
    %v2027 = vpack.c.b16 %v2025, %v2024
    %vm2030 = vcmask 261120
    %v2032 = vsel %vm2030, %v2013, 0
    %2034 = vmatprep.subr.bf16.mxu0 0
    %2035 = vmatpush1.bf16.msra.mxu0 %v2026
    %2036 = vmatprep.subr.bf16.mxu0 0
    %2037 = vmatpush1.bf16.msra.mxu0 %v2027
    %2038 = vmatprep.subr.bf16.mxu0 0
    %2039 = vmatpush1.bf16.msra.mxu0 0
    %2040 = vmatprep.subr.bf16.mxu0 0
    %2041 = vmatpush1.bf16.msra.mxu0 0
    %2042 = vmatprep.subr.bf16.mxu0 0
    %2043 = vmatpush1.bf16.msra.mxu0 0
    %2044 = vmatprep.subr.bf16.mxu0 0
    %2045 = vmatpush1.bf16.msra.mxu0 0
    %2046 = vmatprep.subr.bf16.mxu0 0
    %2047 = vmatpush1.bf16.msra.mxu0 0
    %2048 = vmatprep.subr.bf16.mxu0 0
    %2049 = vmatpush1.bf16.msra.mxu0 0
    %2050 = vmatprep.subr.bf16.mxu0 0
    %2051 = vmatpush1.bf16.msra.mxu0 0
    %2052 = vmatprep.subr.bf16.mxu0 0
    %2053 = vmatpush1.bf16.msra.mxu0 0
    %2054 = vmatprep.subr.bf16.mxu0 0
    %2055 = vmatpush1.bf16.msra.mxu0 0
    %2056 = vmatprep.subr.bf16.mxu0 0
    %2057 = vmatpush1.bf16.msra.mxu0 0
    %2058 = vmatprep.subr.bf16.mxu0 0
    %2059 = vmatpush1.bf16.msra.mxu0 0
    %2060 = vmatprep.subr.bf16.mxu0 0
    %2061 = vmatpush1.bf16.msra.mxu0 0
    %2062 = vmatprep.subr.bf16.mxu0 0
    %2063 = vmatpush1.bf16.msra.mxu0 0
    %2064 = vmatprep.subr.bf16.mxu0 0
    %2065 = vmatpush1.bf16.msra.mxu0 0
    %2066 = vmatprep.mubr.bf16.mxu0 0
    %2067 = vmatmul.mubr.bf16.gmra.mrb[0].mxu0 %v2032
    %v2068 = vpop.f32.mrb[0].mxu0
    %v2069 = vadd.f32 %v2017, %v2068
    %v2070 = vpop.f32.mrb[0].mxu0
    %v2071 = vpop.f32.mrb[0].mxu0
    %v2072 = vadd.f32 %v2017, %v2071
    %v2073 = vpop.f32.mrb[0].mxu0
    %2074 = vdwg.mxu0
    %v2075 = vadd.f32 %v2069, %v80
    %v2076 = vadd.f32 %v2072, %v81
    %2077 = vadd.xlane.f32.xlu0 %v2075
    %v2078 = vpop.xlane.xlu0 %2077
    %2079 = vadd.xlane.f32.xlu0 %v2076
    %v2080 = vpop.xlane.xlu0 %2079
    %v2081 = vmul.f32 %v2075, %v2075
    %v2082 = vmul.f32 %v2076, %v2076
    %2083 = vadd.xlane.f32.xlu0 %v2081
    %v2084 = vpop.xlane.xlu0 %2083
    %2085 = vadd.xlane.f32.xlu0 %v2082
    %v2086 = vpop.xlane.xlu0 %2085
    %v2087 = vmul.f32 %v2078, 0.03125
    %v2088 = vmul.f32 %v2080, 0.03125
    %v2089 = vmul.f32 %v2084, 0.03125
    %v2090 = vmul.f32 %v2086, 0.03125
    %v2091 = vmul.f32 %v2087, %v2087
    %v2092 = vmul.f32 %v2088, %v2088
    %v2093 = vsub.f32 %v2089, %v2091
    %v2094 = vsub.f32 %v2090, %v2092
    %v2095 = vmax.f32 %v2093, 0.0
    %v2096 = vmax.f32 %v2094, 0.0
    %v2097 = vsub.f32 %v2075, %v2087
    %v2098 = vsub.f32 %v2076, %v2088
    %v2099 = vadd.f32 %v2095, 1e-12
    %v2100 = vadd.f32 %v2096, 1e-12
    %v2101 = vrsqrt.pop %v2099
    %v2102 = vrsqrt.pop %v2100
    %v2103 = vmul.f32 %v2097, %v2101
    %v2104 = vmul.f32 %v2098, %v2102
    %v2105 = vlaneseq
    %v2106 = vshrl.u32 %v2105, 7
    %v2107 = vsub.s32 4, %v2106
    %v2108 = vrot.slane %v35, %v2107
    %v2109 = vmul.f32 %v2103, %v2108
    %v2110 = vmul.f32 %v2104, %v2108
    %v2111 = vlaneseq
    %v2112 = vshrl.u32 %v2111, 7
    %v2113 = vsub.s32 5, %v2112
    %v2114 = vrot.slane %v35, %v2113
    %v2115 = vadd.f32 %v2109, %v2114
    %v2116 = vadd.f32 %v2110, %v2114
    %s2117 = scalar_lea.vmem [#allocation2], 64
    %v2118 = vld [vmem:[%s2117] sm:$0xf]
    %v2119 = vld [vmem:[%s2117 + $0x4] sm:$0xf]
    %v2120 = vld [vmem:[%s2117 + $0x8] sm:$0xf]
    %v2121 = vld [vmem:[%s2117 + $0xc] sm:$0xf]
    %v2122 = vld [vmem:[%s2117 + $0x10] sm:$0xf]
    %v2123 = vld [vmem:[%s2117 + $0x14] sm:$0xf]
    %v2124 = vld [vmem:[%s2117 + $0x18] sm:$0xf]
    %v2125 = vld [vmem:[%s2117 + $0x1c] sm:$0xf]
    %v2126 = vld [vmem:[%s2117 + $0x20] sm:$0xf]
    %v2127 = vld [vmem:[%s2117 + $0x24] sm:$0xf]
    %v2128 = vld [vmem:[%s2117 + $0x28] sm:$0xf]
    %v2129 = vld [vmem:[%s2117 + $0x2c] sm:$0xf]
    %v2130 = vld [vmem:[%s2117 + $0x30] sm:$0xf]
    %v2131 = vld [vmem:[%s2117 + $0x34] sm:$0xf]
    %v2132 = vld [vmem:[%s2117 + $0x38] sm:$0xf]
    %v2133 = vld [vmem:[%s2117 + $0x3c] sm:$0xf]
    %v2134 = vpack.c.bf16 %v2116, %v2115
    %v2135 = vlaneseq
    %v2136 = vshrl.u32 %v2135, 7
    %v2137 = vsub.s32 6, %v2136
    %v2138 = vrot.slane %v35, %v2137
    %v2155 = vunpack.c.l.b16 %v2118
    %v2156 = vunpack.c.l.b16 %v2119
    %v2157 = vunpack.c.l.b16 %v2120
    %v2158 = vunpack.c.l.b16 %v2121
    %v2159 = vunpack.c.l.b16 %v2122
    %v2160 = vunpack.c.l.b16 %v2123
    %v2161 = vunpack.c.l.b16 %v2124
    %v2162 = vunpack.c.l.b16 %v2125
    %v2163 = vunpack.c.l.b16 %v2126
    %v2164 = vunpack.c.l.b16 %v2127
    %v2165 = vunpack.c.l.b16 %v2128
    %v2166 = vunpack.c.l.b16 %v2129
    %v2167 = vunpack.c.l.b16 %v2130
    %v2168 = vunpack.c.l.b16 %v2131
    %v2169 = vunpack.c.l.b16 %v2132
    %v2170 = vunpack.c.l.b16 %v2133
    %v2171 = vpack.c.b16 %v2156, %v2155
    %v2172 = vpack.c.b16 %v2158, %v2157
    %v2173 = vpack.c.b16 %v2160, %v2159
    %v2174 = vpack.c.b16 %v2162, %v2161
    %v2175 = vpack.c.b16 %v2164, %v2163
    %v2176 = vpack.c.b16 %v2166, %v2165
    %v2177 = vpack.c.b16 %v2168, %v2167
    %v2178 = vpack.c.b16 %v2170, %v2169
    %2187 = vmatprep.subr.bf16.mxu0 0
    %2188 = vmatpush1.bf16.msra.mxu0 %v2171
    %2189 = vmatprep.subr.bf16.mxu0 0
    %2190 = vmatpush1.bf16.msra.mxu0 %v2172
    %2191 = vmatprep.subr.bf16.mxu0 0
    %2192 = vmatpush1.bf16.msra.mxu0 %v2173
    %2193 = vmatprep.subr.bf16.mxu0 0
    %2194 = vmatpush1.bf16.msra.mxu0 %v2174
    %2195 = vmatprep.subr.bf16.mxu0 0
    %2196 = vmatpush1.bf16.msra.mxu0 %v2175
    %2197 = vmatprep.subr.bf16.mxu0 0
    %2198 = vmatpush1.bf16.msra.mxu0 %v2176
    %2199 = vmatprep.subr.bf16.mxu0 0
    %2200 = vmatpush1.bf16.msra.mxu0 %v2177
    %2201 = vmatprep.subr.bf16.mxu0 0
    %2202 = vmatpush1.bf16.msra.mxu0 %v2178
    %2203 = vmatprep.subr.bf16.mxu0 0
    %2204 = vmatpush1.bf16.msra.mxu0 0
    %2205 = vmatprep.subr.bf16.mxu0 0
    %2206 = vmatpush1.bf16.msra.mxu0 0
    %2207 = vmatprep.subr.bf16.mxu0 0
    %2208 = vmatpush1.bf16.msra.mxu0 0
    %2209 = vmatprep.subr.bf16.mxu0 0
    %2210 = vmatpush1.bf16.msra.mxu0 0
    %2211 = vmatprep.subr.bf16.mxu0 0
    %2212 = vmatpush1.bf16.msra.mxu0 0
    %2213 = vmatprep.subr.bf16.mxu0 0
    %2214 = vmatpush1.bf16.msra.mxu0 0
    %2215 = vmatprep.subr.bf16.mxu0 0
    %2216 = vmatpush1.bf16.msra.mxu0 0
    %2217 = vmatprep.subr.bf16.mxu0 0
    %2218 = vmatpush1.bf16.msra.mxu0 0
    %2219 = vmatprep.mubr.bf16.mxu0 0
    %2220 = vmatmul.mubr.bf16.gmra.mrb[0].mxu0 %v2134
    %v2221 = vpop.f32.mrb[0].mxu0
    %v2222 = vadd.f32 %v2138, %v2221
    %v2223 = vpop.f32.mrb[0].mxu0
    %v2224 = vpop.f32.mrb[0].mxu0
    %v2225 = vadd.f32 %v2138, %v2224
    %v2226 = vpop.f32.mrb[0].mxu0
    %2227 = vdwg.mxu0
    %v2228 = vmul.f32 %v2222, %v2222
    %v2229 = vmul.f32 %v2225, %v2225
    %v2230 = vmul.f32 %v2222, %v2228
    %v2231 = vmul.f32 %v2225, %v2229
    %v2232 = vmul.f32 %v2230, 0.044715
    %v2233 = vmul.f32 %v2231, 0.044715
    %v2234 = vadd.f32 %v2222, %v2232
    %v2235 = vadd.f32 %v2225, %v2233
    %v2236 = vmul.f32 %v2234, 0.7978846
    %v2237 = vmul.f32 %v2235, 0.7978846
    %v2238 = vtanh.pop %v2236
    %v2239 = vtanh.pop %v2237
    %v2240 = vadd.f32 %v2238, 1.0
    %v2241 = vadd.f32 %v2239, 1.0
    %v2242 = vmul.f32 %v2240, 0.5
    %v2243 = vmul.f32 %v2241, 0.5
    %v2244 = vmul.f32 %v2222, %v2242
    %v2245 = vmul.f32 %v2225, %v2243
    %s2246 = scalar_lea.vmem [#allocation2], 128
    %v2247 = vld [vmem:[%s2246] sm:$0xf]
    %v2248 = vld [vmem:[%s2246 + $0x4] sm:$0xf]
    %v2249 = vld [vmem:[%s2246 + $0x8] sm:$0xf]
    %v2250 = vld [vmem:[%s2246 + $0xc] sm:$0xf]
    %v2251 = vld [vmem:[%s2246 + $0x10] sm:$0xf]
    %v2252 = vld [vmem:[%s2246 + $0x14] sm:$0xf]
    %v2253 = vld [vmem:[%s2246 + $0x18] sm:$0xf]
    %v2254 = vld [vmem:[%s2246 + $0x1c] sm:$0xf]
    %v2255 = vld [vmem:[%s2246 + $0x20] sm:$0xf]
    %v2256 = vld [vmem:[%s2246 + $0x24] sm:$0xf]
    %v2257 = vld [vmem:[%s2246 + $0x28] sm:$0xf]
    %v2258 = vld [vmem:[%s2246 + $0x2c] sm:$0xf]
    %v2259 = vld [vmem:[%s2246 + $0x30] sm:$0xf]
    %v2260 = vld [vmem:[%s2246 + $0x34] sm:$0xf]
    %v2261 = vld [vmem:[%s2246 + $0x38] sm:$0xf]
    %v2262 = vld [vmem:[%s2246 + $0x3c] sm:$0xf]
    %v2263 = vpack.c.bf16 %v2245, %v2244
    %v2264 = vlaneseq
    %v2265 = vshrl.u32 %v2264, 7
    %v2266 = vsub.s32 7, %v2265
    %v2267 = vrot.slane %v35, %v2266
    %v2284 = vunpack.c.l.b16 %v2247
    %v2285 = vunpack.c.l.b16 %v2248
    %v2286 = vunpack.c.l.b16 %v2249
    %v2287 = vunpack.c.l.b16 %v2250
    %v2288 = vunpack.c.l.b16 %v2251
    %v2289 = vunpack.c.l.b16 %v2252
    %v2290 = vunpack.c.l.b16 %v2253
    %v2291 = vunpack.c.l.b16 %v2254
    %v2292 = vunpack.c.l.b16 %v2255
    %v2293 = vunpack.c.l.b16 %v2256
    %v2294 = vunpack.c.l.b16 %v2257
    %v2295 = vunpack.c.l.b16 %v2258
    %v2296 = vunpack.c.l.b16 %v2259
    %v2297 = vunpack.c.l.b16 %v2260
    %v2298 = vunpack.c.l.b16 %v2261
    %v2299 = vunpack.c.l.b16 %v2262
    %v2300 = vpack.c.b16 %v2285, %v2284
    %v2301 = vpack.c.b16 %v2287, %v2286
    %v2302 = vpack.c.b16 %v2289, %v2288
    %v2303 = vpack.c.b16 %v2291, %v2290
    %v2304 = vpack.c.b16 %v2293, %v2292
    %v2305 = vpack.c.b16 %v2295, %v2294
    %v2306 = vpack.c.b16 %v2297, %v2296
    %v2307 = vpack.c.b16 %v2299, %v2298
    %2316 = vmatprep.subr.bf16.mxu0 0
    %2317 = vmatpush1.bf16.msra.mxu0 %v2300
    %2318 = vmatprep.subr.bf16.mxu0 0
    %2319 = vmatpush1.bf16.msra.mxu0 %v2301
    %2320 = vmatprep.subr.bf16.mxu0 0
    %2321 = vmatpush1.bf16.msra.mxu0 %v2302
    %2322 = vmatprep.subr.bf16.mxu0 0
    %2323 = vmatpush1.bf16.msra.mxu0 %v2303
    %2324 = vmatprep.subr.bf16.mxu0 0
    %2325 = vmatpush1.bf16.msra.mxu0 %v2304
    %2326 = vmatprep.subr.bf16.mxu0 0
    %2327 = vmatpush1.bf16.msra.mxu0 %v2305
    %2328 = vmatprep.subr.bf16.mxu0 0
    %2329 = vmatpush1.bf16.msra.mxu0 %v2306
    %2330 = vmatprep.subr.bf16.mxu0 0
    %2331 = vmatpush1.bf16.msra.mxu0 %v2307
    %2332 = vmatprep.subr.bf16.mxu0 0
    %2333 = vmatpush1.bf16.msra.mxu0 0
    %2334 = vmatprep.subr.bf16.mxu0 0
    %2335 = vmatpush1.bf16.msra.mxu0 0
    %2336 = vmatprep.subr.bf16.mxu0 0
    %2337 = vmatpush1.bf16.msra.mxu0 0
    %2338 = vmatprep.subr.bf16.mxu0 0
    %2339 = vmatpush1.bf16.msra.mxu0 0
    %2340 = vmatprep.subr.bf16.mxu0 0
    %2341 = vmatpush1.bf16.msra.mxu0 0
    %2342 = vmatprep.subr.bf16.mxu0 0
    %2343 = vmatpush1.bf16.msra.mxu0 0
    %2344 = vmatprep.subr.bf16.mxu0 0
    %2345 = vmatpush1.bf16.msra.mxu0 0
    %2346 = vmatprep.subr.bf16.mxu0 0
    %2347 = vmatpush1.bf16.msra.mxu0 0
    %2348 = vmatprep.mubr.bf16.mxu0 0
    %2349 = vmatmul.mubr.bf16.gmra.mrb[0].mxu0 %v2263
    %v2350 = vpop.f32.mrb[0].mxu0
    %v2351 = vadd.f32 %v2267, %v2350
    %v2352 = vpop.f32.mrb[0].mxu0
    %v2353 = vpop.f32.mrb[0].mxu0
    %v2354 = vadd.f32 %v2267, %v2353
    %v2355 = vpop.f32.mrb[0].mxu0
    %2356 = vdwg.mxu0
    %v2357 = vadd.f32 %v2351, %v2115
    %v2358 = vadd.f32 %v2354, %v2116
    %2359 = vadd.xlane.f32.xlu0 %v2357
    %v2360 = vpop.xlane.xlu0 %2359
    %2361 = vadd.xlane.f32.xlu0 %v2358
    %v2362 = vpop.xlane.xlu0 %2361
    %v2363 = vmul.f32 %v2357, %v2357
    %v2364 = vmul.f32 %v2358, %v2358
    %2365 = vadd.xlane.f32.xlu0 %v2363
    %v2366 = vpop.xlane.xlu0 %2365
    %2367 = vadd.xlane.f32.xlu0 %v2364
    %v2368 = vpop.xlane.xlu0 %2367
    %v2369 = vmul.f32 %v2360, 0.03125
    %v2370 = vmul.f32 %v2362, 0.03125
    %v2371 = vmul.f32 %v2366, 0.03125
    %v2372 = vmul.f32 %v2368, 0.03125
    %v2373 = vmul.f32 %v2369, %v2369
    %v2374 = vmul.f32 %v2370, %v2370
    %v2375 = vsub.f32 %v2371, %v2373
    %v2376 = vsub.f32 %v2372, %v2374
    %v2377 = vmax.f32 %v2375, 0.0
    %v2378 = vmax.f32 %v2376, 0.0
    %v2379 = vsub.f32 %v2357, %v2369
    %v2380 = vsub.f32 %v2358, %v2370
    %v2381 = vadd.f32 %v2377, 1e-12
    %v2382 = vadd.f32 %v2378, 1e-12
    %v2383 = vrsqrt.pop %v2381
    %v2384 = vrsqrt.pop %v2382
    %v2385 = vmul.f32 %v2379, %v2383
    %v2386 = vmul.f32 %v2380, %v2384
    %v2387 = vlaneseq
    %v2388 = vshrl.u32 %v2387, 7
    %v2389 = vsub.s32 0, %v2388
    %v2390 = vrot.slane %v36, %v2389
    %v2391 = vmul.f32 %v2385, %v2390
    %v2392 = vmul.f32 %v2386, %v2390
    %v2393 = vlaneseq
    %v2394 = vshrl.u32 %v2393, 7
    %v2395 = vsub.s32 1, %v2394
    %v2396 = vrot.slane %v36, %v2395
    %v2397 = vadd.f32 %v2391, %v2396
    %v2398 = vadd.f32 %v2392, %v2396
    %s2399 = scalar_lea.vmem [#allocation2], 192
    %v2400 = vld [vmem:[%s2399] sm:$0xf]
    %v2401 = vld [vmem:[%s2399 + $0x4] sm:$0xf]
    %v2402 = vld [vmem:[%s2399 + $0x8] sm:$0xf]
    %v2403 = vld [vmem:[%s2399 + $0xc] sm:$0xf]
    %v2404 = vld [vmem:[%s2399 + $0x10] sm:$0xf]
    %v2405 = vld [vmem:[%s2399 + $0x14] sm:$0xf]
    %v2406 = vld [vmem:[%s2399 + $0x18] sm:$0xf]
    %v2407 = vld [vmem:[%s2399 + $0x1c] sm:$0xf]
    %v2408 = vld [vmem:[%s2399 + $0x20] sm:$0xf]
    %v2409 = vld [vmem:[%s2399 + $0x24] sm:$0xf]
    %v2410 = vld [vmem:[%s2399 + $0x28] sm:$0xf]
    %v2411 = vld [vmem:[%s2399 + $0x2c] sm:$0xf]
    %v2412 = vld [vmem:[%s2399 + $0x30] sm:$0xf]
    %v2413 = vld [vmem:[%s2399 + $0x34] sm:$0xf]
    %v2414 = vld [vmem:[%s2399 + $0x38] sm:$0xf]
    %v2415 = vld [vmem:[%s2399 + $0x3c] sm:$0xf]
    %v2416 = vpack.c.bf16 %v2398, %v2397
    %v2417 = vlaneseq
    %v2418 = vshrl.u32 %v2417, 7
    %v2419 = vsub.s32 2, %v2418
    %v2420 = vrot.slane %v36, %v2419
    %v2437 = vunpack.c.l.b16 %v2400
    %v2438 = vunpack.c.l.b16 %v2401
    %v2439 = vunpack.c.l.b16 %v2402
    %v2440 = vunpack.c.l.b16 %v2403
    %v2441 = vunpack.c.l.b16 %v2404
    %v2442 = vunpack.c.l.b16 %v2405
    %v2443 = vunpack.c.l.b16 %v2406
    %v2444 = vunpack.c.l.b16 %v2407
    %v2445 = vunpack.c.l.b16 %v2408
    %v2446 = vunpack.c.l.b16 %v2409
    %v2447 = vunpack.c.l.b16 %v2410
    %v2448 = vunpack.c.l.b16 %v2411
    %v2449 = vunpack.c.l.b16 %v2412
    %v2450 = vunpack.c.l.b16 %v2413
    %v2451 = vunpack.c.l.b16 %v2414
    %v2452 = vunpack.c.l.b16 %v2415
    %v2453 = vpack.c.b16 %v2438, %v2437
    %v2454 = vpack.c.b16 %v2440, %v2439
    %v2455 = vpack.c.b16 %v2442, %v2441
    %v2456 = vpack.c.b16 %v2444, %v2443
    %v2457 = vpack.c.b16 %v2446, %v2445
    %v2458 = vpack.c.b16 %v2448, %v2447
    %v2459 = vpack.c.b16 %v2450, %v2449
    %v2460 = vpack.c.b16 %v2452, %v2451
    %2469 = vmatprep.subr.bf16.mxu0 0
    %2470 = vmatpush1.bf16.msra.mxu0 %v2453
    %2471 = vmatprep.subr.bf16.mxu0 0
    %2472 = vmatpush1.bf16.msra.mxu0 %v2454
    %2473 = vmatprep.subr.bf16.mxu0 0
    %2474 = vmatpush1.bf16.msra.mxu0 %v2455
    %2475 = vmatprep.subr.bf16.mxu0 0
    %2476 = vmatpush1.bf16.msra.mxu0 %v2456
    %2477 = vmatprep.subr.bf16.mxu0 0
    %2478 = vmatpush1.bf16.msra.mxu0 %v2457
    %2479 = vmatprep.subr.bf16.mxu0 0
    %2480 = vmatpush1.bf16.msra.mxu0 %v2458
    %2481 = vmatprep.subr.bf16.mxu0 0
    %2482 = vmatpush1.bf16.msra.mxu0 %v2459
    %2483 = vmatprep.subr.bf16.mxu0 0
    %2484 = vmatpush1.bf16.msra.mxu0 %v2460
    %2485 = vmatprep.subr.bf16.mxu0 0
    %2486 = vmatpush1.bf16.msra.mxu0 0
    %2487 = vmatprep.subr.bf16.mxu0 0
    %2488 = vmatpush1.bf16.msra.mxu0 0
    %2489 = vmatprep.subr.bf16.mxu0 0
    %2490 = vmatpush1.bf16.msra.mxu0 0
    %2491 = vmatprep.subr.bf16.mxu0 0
    %2492 = vmatpush1.bf16.msra.mxu0 0
    %2493 = vmatprep.subr.bf16.mxu0 0
    %2494 = vmatpush1.bf16.msra.mxu0 0
    %2495 = vmatprep.subr.bf16.mxu0 0
    %2496 = vmatpush1.bf16.msra.mxu0 0
    %2497 = vmatprep.subr.bf16.mxu0 0
    %2498 = vmatpush1.bf16.msra.mxu0 0
    %2499 = vmatprep.subr.bf16.mxu0 0
    %2500 = vmatpush1.bf16.msra.mxu0 0
    %2501 = vmatprep.mubr.bf16.mxu0 0
    %2502 = vmatmul.mubr.bf16.gmra.mrb[0].mxu0 %v2416
    %v2503 = vpop.f32.mrb[0].mxu0
    %v2504 = vadd.f32 %v2420, %v2503
    %v2505 = vpop.f32.mrb[0].mxu0
    %v2506 = vpop.f32.mrb[0].mxu0
    %v2507 = vadd.f32 %v2420, %v2506
    %v2508 = vpop.f32.mrb[0].mxu0
    %2509 = vdwg.mxu0
    %2512 = vrot.lane.b32.xlu0 %v2504, 120
    %v2513 = vpop.permute.xlu0 %2512
    %2514 = vrot.lane.b32.xlu0 %v2507, 120
    %v2515 = vpop.permute.xlu0 %2514
    %2518 = vrot.lane.b32.xlu0 %v2504, 112
    %v2519 = vpop.permute.xlu0 %2518
    %2520 = vrot.lane.b32.xlu0 %v2507, 112
    %v2521 = vpop.permute.xlu0 %2520
    %2524 = vrot.lane.b32.xlu0 %v2504, 104
    %v2525 = vpop.permute.xlu0 %2524
    %2526 = vrot.lane.b32.xlu0 %v2507, 104
    %v2527 = vpop.permute.xlu0 %2526
    %2530 = vrot.lane.b32.xlu0 %v2504, 96
    %v2531 = vpop.permute.xlu0 %2530
    %2532 = vrot.lane.b32.xlu0 %v2507, 96
    %v2533 = vpop.permute.xlu0 %2532
    %2536 = vrot.lane.b32.xlu0 %v2504, 88
    %v2537 = vpop.permute.xlu0 %2536
    %2538 = vrot.lane.b32.xlu0 %v2507, 88
    %v2539 = vpop.permute.xlu0 %2538
    %2542 = vrot.lane.b32.xlu0 %v2504, 80
    %v2543 = vpop.permute.xlu0 %2542
    %2544 = vrot.lane.b32.xlu0 %v2507, 80
    %v2545 = vpop.permute.xlu0 %2544
    %2548 = vrot.lane.b32.xlu0 %v2504, 72
    %v2549 = vpop.permute.xlu0 %2548
    %2550 = vrot.lane.b32.xlu0 %v2507, 72
    %v2551 = vpop.permute.xlu0 %2550
    %2554 = vrot.lane.b32.xlu0 %v2504, 64
    %v2555 = vpop.permute.xlu0 %2554
    %2556 = vrot.lane.b32.xlu0 %v2507, 64
    %v2557 = vpop.permute.xlu0 %2556
    %2560 = vrot.lane.b32.xlu0 %v2504, 56
    %v2561 = vpop.permute.xlu0 %2560
    %2562 = vrot.lane.b32.xlu0 %v2507, 56
    %v2563 = vpop.permute.xlu0 %2562
    %2566 = vrot.lane.b32.xlu0 %v2504, 48
    %v2567 = vpop.permute.xlu0 %2566
    %2568 = vrot.lane.b32.xlu0 %v2507, 48
    %v2569 = vpop.permute.xlu0 %2568
    %2572 = vrot.lane.b32.xlu0 %v2504, 40
    %v2573 = vpop.permute.xlu0 %2572
    %2574 = vrot.lane.b32.xlu0 %v2507, 40
    %v2575 = vpop.permute.xlu0 %2574
    %2578 = vrot.lane.b32.xlu0 %v2504, 32
    %v2579 = vpop.permute.xlu0 %2578
    %2580 = vrot.lane.b32.xlu0 %v2507, 32
    %v2581 = vpop.permute.xlu0 %2580
    %2584 = vrot.lane.b32.xlu0 %v2504, 24
    %v2585 = vpop.permute.xlu0 %2584
    %2586 = vrot.lane.b32.xlu0 %v2507, 24
    %v2587 = vpop.permute.xlu0 %2586
    %2590 = vrot.lane.b32.xlu0 %v2504, 16
    %v2591 = vpop.permute.xlu0 %2590
    %2592 = vrot.lane.b32.xlu0 %v2507, 16
    %v2593 = vpop.permute.xlu0 %2592
    %2596 = vrot.lane.b32.xlu0 %v2504, 8
    %v2597 = vpop.permute.xlu0 %2596
    %2598 = vrot.lane.b32.xlu0 %v2507, 8
    %v2599 = vpop.permute.xlu0 %2598
    %v2602 = vcombine.low %v2504, %v2519
    %v2603 = vcombine.high %v2504, %v2519
    %v2605 = vunpack.c.l.s4 1983009808
    %v2606 = vunpack.c.0.s8 %v2605
    %v2607 = vlaneseq
    %v2608 = vshrl.u32 %v2607, 7
    %v2609 = vsub.s32 %v2606, %v2608
    %v2610 = vrot.slane %v2602, %v2609
    %v2612 = vunpack.c.l.s4 1983009808
    %v2613 = vunpack.c.0.s8 %v2612
    %v2614 = vlaneseq
    %v2615 = vshrl.u32 %v2614, 7
    %v2616 = vsub.s32 %v2613, %v2615
    %v2617 = vrot.slane %v2603, %v2616
    %v2618 = vcombine.low %v2513, %v2525
    %v2619 = vcombine.high %v2513, %v2525
    %v2621 = vunpack.c.l.s4 1983009808
    %v2622 = vunpack.c.0.s8 %v2621
    %v2623 = vlaneseq
    %v2624 = vshrl.u32 %v2623, 7
    %v2625 = vsub.s32 %v2622, %v2624
    %v2626 = vrot.slane %v2618, %v2625
    %v2628 = vunpack.c.l.s4 1983009808
    %v2629 = vunpack.c.0.s8 %v2628
    %v2630 = vlaneseq
    %v2631 = vshrl.u32 %v2630, 7
    %v2632 = vsub.s32 %v2629, %v2631
    %v2633 = vrot.slane %v2619, %v2632
    %v2634 = vcombine.low %v2531, %v2543
    %v2635 = vcombine.high %v2531, %v2543
    %v2637 = vunpack.c.l.s4 1983009808
    %v2638 = vunpack.c.0.s8 %v2637
    %v2639 = vlaneseq
    %v2640 = vshrl.u32 %v2639, 7
    %v2641 = vsub.s32 %v2638, %v2640
    %v2642 = vrot.slane %v2634, %v2641
    %v2644 = vunpack.c.l.s4 1983009808
    %v2645 = vunpack.c.0.s8 %v2644
    %v2646 = vlaneseq
    %v2647 = vshrl.u32 %v2646, 7
    %v2648 = vsub.s32 %v2645, %v2647
    %v2649 = vrot.slane %v2635, %v2648
    %v2650 = vcombine.low %v2537, %v2549
    %v2651 = vcombine.high %v2537, %v2549
    %v2653 = vunpack.c.l.s4 1983009808
    %v2654 = vunpack.c.0.s8 %v2653
    %v2655 = vlaneseq
    %v2656 = vshrl.u32 %v2655, 7
    %v2657 = vsub.s32 %v2654, %v2656
    %v2658 = vrot.slane %v2650, %v2657
    %v2660 = vunpack.c.l.s4 1983009808
    %v2661 = vunpack.c.0.s8 %v2660
    %v2662 = vlaneseq
    %v2663 = vshrl.u32 %v2662, 7
    %v2664 = vsub.s32 %v2661, %v2663
    %v2665 = vrot.slane %v2651, %v2664
    %v2666 = vcombine.low %v2610, %v2626
    %v2667 = vcombine.high %v2610, %v2626
    %v2669 = vunpack.c.l.s4 1934713408
    %v2670 = vunpack.c.0.s8 %v2669
    %v2671 = vlaneseq
    %v2672 = vshrl.u32 %v2671, 7
    %v2673 = vsub.s32 %v2670, %v2672
    %v2674 = vrot.slane %v2666, %v2673
    %v2676 = vunpack.c.l.s4 1934713408
    %v2677 = vunpack.c.0.s8 %v2676
    %v2678 = vlaneseq
    %v2679 = vshrl.u32 %v2678, 7
    %v2680 = vsub.s32 %v2677, %v2679
    %v2681 = vrot.slane %v2667, %v2680
    %v2682 = vcombine.low %v2617, %v2633
    %v2683 = vcombine.high %v2617, %v2633
    %v2685 = vunpack.c.l.s4 1934713408
    %v2686 = vunpack.c.0.s8 %v2685
    %v2687 = vlaneseq
    %v2688 = vshrl.u32 %v2687, 7
    %v2689 = vsub.s32 %v2686, %v2688
    %v2690 = vrot.slane %v2682, %v2689
    %v2692 = vunpack.c.l.s4 1934713408
    %v2693 = vunpack.c.0.s8 %v2692
    %v2694 = vlaneseq
    %v2695 = vshrl.u32 %v2694, 7
    %v2696 = vsub.s32 %v2693, %v2695
    %v2697 = vrot.slane %v2683, %v2696
    %v2698 = vcombine.low %v2642, %v2658
    %v2699 = vcombine.high %v2642, %v2658
    %v2701 = vunpack.c.l.s4 1934713408
    %v2702 = vunpack.c.0.s8 %v2701
    %v2703 = vlaneseq
    %v2704 = vshrl.u32 %v2703, 7
    %v2705 = vsub.s32 %v2702, %v2704
    %v2706 = vrot.slane %v2698, %v2705
    %v2708 = vunpack.c.l.s4 1934713408
    %v2709 = vunpack.c.0.s8 %v2708
    %v2710 = vlaneseq
    %v2711 = vshrl.u32 %v2710, 7
    %v2712 = vsub.s32 %v2709, %v2711
    %v2713 = vrot.slane %v2699, %v2712
    %v2714 = vcombine.low %v2649, %v2665
    %v2715 = vcombine.high %v2649, %v2665
    %v2717 = vunpack.c.l.s4 1934713408
    %v2718 = vunpack.c.0.s8 %v2717
    %v2719 = vlaneseq
    %v2720 = vshrl.u32 %v2719, 7
    %v2721 = vsub.s32 %v2718, %v2720
    %v2722 = vrot.slane %v2714, %v2721
    %v2724 = vunpack.c.l.s4 1934713408
    %v2725 = vunpack.c.0.s8 %v2724
    %v2726 = vlaneseq
    %v2727 = vshrl.u32 %v2726, 7
    %v2728 = vsub.s32 %v2725, %v2727
    %v2729 = vrot.slane %v2715, %v2728
    %v2730 = vcombine.low %v2674, %v2706
    %v2731 = vcombine.high %v2674, %v2706
    %v2732 = vcombine.low %v2681, %v2713
    %v2733 = vcombine.high %v2681, %v2713
    %v2734 = vcombine.low %v2690, %v2722
    %v2735 = vcombine.high %v2690, %v2722
    %v2736 = vcombine.low %v2697, %v2729
    %v2737 = vcombine.high %v2697, %v2729
    %v2738 = vcombine.low %v2555, %v2567
    %v2739 = vcombine.high %v2555, %v2567
    %v2741 = vunpack.c.l.s4 1983009808
    %v2742 = vunpack.c.0.s8 %v2741
    %v2743 = vlaneseq
    %v2744 = vshrl.u32 %v2743, 7
    %v2745 = vsub.s32 %v2742, %v2744
    %v2746 = vrot.slane %v2738, %v2745
    %v2748 = vunpack.c.l.s4 1983009808
    %v2749 = vunpack.c.0.s8 %v2748
    %v2750 = vlaneseq
    %v2751 = vshrl.u32 %v2750, 7
    %v2752 = vsub.s32 %v2749, %v2751
    %v2753 = vrot.slane %v2739, %v2752
    %v2754 = vcombine.low %v2561, %v2573
    %v2755 = vcombine.high %v2561, %v2573
    %v2757 = vunpack.c.l.s4 1983009808
    %v2758 = vunpack.c.0.s8 %v2757
    %v2759 = vlaneseq
    %v2760 = vshrl.u32 %v2759, 7
    %v2761 = vsub.s32 %v2758, %v2760
    %v2762 = vrot.slane %v2754, %v2761
    %v2764 = vunpack.c.l.s4 1983009808
    %v2765 = vunpack.c.0.s8 %v2764
    %v2766 = vlaneseq
    %v2767 = vshrl.u32 %v2766, 7
    %v2768 = vsub.s32 %v2765, %v2767
    %v2769 = vrot.slane %v2755, %v2768
    %v2770 = vcombine.low %v2579, %v2591
    %v2771 = vcombine.high %v2579, %v2591
    %v2773 = vunpack.c.l.s4 1983009808
    %v2774 = vunpack.c.0.s8 %v2773
    %v2775 = vlaneseq
    %v2776 = vshrl.u32 %v2775, 7
    %v2777 = vsub.s32 %v2774, %v2776
    %v2778 = vrot.slane %v2770, %v2777
    %v2780 = vunpack.c.l.s4 1983009808
    %v2781 = vunpack.c.0.s8 %v2780
    %v2782 = vlaneseq
    %v2783 = vshrl.u32 %v2782, 7
    %v2784 = vsub.s32 %v2781, %v2783
    %v2785 = vrot.slane %v2771, %v2784
    %v2786 = vcombine.low %v2585, %v2597
    %v2787 = vcombine.high %v2585, %v2597
    %v2789 = vunpack.c.l.s4 1983009808
    %v2790 = vunpack.c.0.s8 %v2789
    %v2791 = vlaneseq
    %v2792 = vshrl.u32 %v2791, 7
    %v2793 = vsub.s32 %v2790, %v2792
    %v2794 = vrot.slane %v2786, %v2793
    %v2796 = vunpack.c.l.s4 1983009808
    %v2797 = vunpack.c.0.s8 %v2796
    %v2798 = vlaneseq
    %v2799 = vshrl.u32 %v2798, 7
    %v2800 = vsub.s32 %v2797, %v2799
    %v2801 = vrot.slane %v2787, %v2800
    %v2802 = vcombine.low %v2746, %v2762
    %v2803 = vcombine.high %v2746, %v2762
    %v2805 = vunpack.c.l.s4 1934713408
    %v2806 = vunpack.c.0.s8 %v2805
    %v2807 = vlaneseq
    %v2808 = vshrl.u32 %v2807, 7
    %v2809 = vsub.s32 %v2806, %v2808
    %v2810 = vrot.slane %v2802, %v2809
    %v2812 = vunpack.c.l.s4 1934713408
    %v2813 = vunpack.c.0.s8 %v2812
    %v2814 = vlaneseq
    %v2815 = vshrl.u32 %v2814, 7
    %v2816 = vsub.s32 %v2813, %v2815
    %v2817 = vrot.slane %v2803, %v2816
    %v2818 = vcombine.low %v2753, %v2769
    %v2819 = vcombine.high %v2753, %v2769
    %v2821 = vunpack.c.l.s4 1934713408
    %v2822 = vunpack.c.0.s8 %v2821
    %v2823 = vlaneseq
    %v2824 = vshrl.u32 %v2823, 7
    %v2825 = vsub.s32 %v2822, %v2824
    %v2826 = vrot.slane %v2818, %v2825
    %v2828 = vunpack.c.l.s4 1934713408
    %v2829 = vunpack.c.0.s8 %v2828
    %v2830 = vlaneseq
    %v2831 = vshrl.u32 %v2830, 7
    %v2832 = vsub.s32 %v2829, %v2831
    %v2833 = vrot.slane %v2819, %v2832
    %v2834 = vcombine.low %v2778, %v2794
    %v2835 = vcombine.high %v2778, %v2794
    %v2837 = vunpack.c.l.s4 1934713408
    %v2838 = vunpack.c.0.s8 %v2837
    %v2839 = vlaneseq
    %v2840 = vshrl.u32 %v2839, 7
    %v2841 = vsub.s32 %v2838, %v2840
    %v2842 = vrot.slane %v2834, %v2841
    %v2844 = vunpack.c.l.s4 1934713408
    %v2845 = vunpack.c.0.s8 %v2844
    %v2846 = vlaneseq
    %v2847 = vshrl.u32 %v2846, 7
    %v2848 = vsub.s32 %v2845, %v2847
    %v2849 = vrot.slane %v2835, %v2848
    %v2850 = vcombine.low %v2785, %v2801
    %v2851 = vcombine.high %v2785, %v2801
    %v2853 = vunpack.c.l.s4 1934713408
    %v2854 = vunpack.c.0.s8 %v2853
    %v2855 = vlaneseq
    %v2856 = vshrl.u32 %v2855, 7
    %v2857 = vsub.s32 %v2854, %v2856
    %v2858 = vrot.slane %v2850, %v2857
    %v2860 = vunpack.c.l.s4 1934713408
    %v2861 = vunpack.c.0.s8 %v2860
    %v2862 = vlaneseq
    %v2863 = vshrl.u32 %v2862, 7
    %v2864 = vsub.s32 %v2861, %v2863
    %v2865 = vrot.slane %v2851, %v2864
    %v2866 = vcombine.low %v2810, %v2842
    %v2867 = vcombine.high %v2810, %v2842
    %v2868 = vcombine.low %v2817, %v2849
    %v2869 = vcombine.high %v2817, %v2849
    %v2870 = vcombine.low %v2826, %v2858
    %v2871 = vcombine.high %v2826, %v2858
    %v2872 = vcombine.low %v2833, %v2865
    %v2873 = vcombine.high %v2833, %v2865
    %v2874 = vcombine.low %v2507, %v2521
    %v2875 = vcombine.high %v2507, %v2521
    %v2877 = vunpack.c.l.s4 1983009808
    %v2878 = vunpack.c.0.s8 %v2877
    %v2879 = vlaneseq
    %v2880 = vshrl.u32 %v2879, 7
    %v2881 = vsub.s32 %v2878, %v2880
    %v2882 = vrot.slane %v2874, %v2881
    %v2884 = vunpack.c.l.s4 1983009808
    %v2885 = vunpack.c.0.s8 %v2884
    %v2886 = vlaneseq
    %v2887 = vshrl.u32 %v2886, 7
    %v2888 = vsub.s32 %v2885, %v2887
    %v2889 = vrot.slane %v2875, %v2888
    %v2890 = vcombine.low %v2515, %v2527
    %v2891 = vcombine.high %v2515, %v2527
    %v2893 = vunpack.c.l.s4 1983009808
    %v2894 = vunpack.c.0.s8 %v2893
    %v2895 = vlaneseq
    %v2896 = vshrl.u32 %v2895, 7
    %v2897 = vsub.s32 %v2894, %v2896
    %v2898 = vrot.slane %v2890, %v2897
    %v2900 = vunpack.c.l.s4 1983009808
    %v2901 = vunpack.c.0.s8 %v2900
    %v2902 = vlaneseq
    %v2903 = vshrl.u32 %v2902, 7
    %v2904 = vsub.s32 %v2901, %v2903
    %v2905 = vrot.slane %v2891, %v2904
    %v2906 = vcombine.low %v2533, %v2545
    %v2907 = vcombine.high %v2533, %v2545
    %v2909 = vunpack.c.l.s4 1983009808
    %v2910 = vunpack.c.0.s8 %v2909
    %v2911 = vlaneseq
    %v2912 = vshrl.u32 %v2911, 7
    %v2913 = vsub.s32 %v2910, %v2912
    %v2914 = vrot.slane %v2906, %v2913
    %v2916 = vunpack.c.l.s4 1983009808
    %v2917 = vunpack.c.0.s8 %v2916
    %v2918 = vlaneseq
    %v2919 = vshrl.u32 %v2918, 7
    %v2920 = vsub.s32 %v2917, %v2919
    %v2921 = vrot.slane %v2907, %v2920
    %v2922 = vcombine.low %v2539, %v2551
    %v2923 = vcombine.high %v2539, %v2551
    %v2925 = vunpack.c.l.s4 1983009808
    %v2926 = vunpack.c.0.s8 %v2925
    %v2927 = vlaneseq
    %v2928 = vshrl.u32 %v2927, 7
    %v2929 = vsub.s32 %v2926, %v2928
    %v2930 = vrot.slane %v2922, %v2929
    %v2932 = vunpack.c.l.s4 1983009808
    %v2933 = vunpack.c.0.s8 %v2932
    %v2934 = vlaneseq
    %v2935 = vshrl.u32 %v2934, 7
    %v2936 = vsub.s32 %v2933, %v2935
    %v2937 = vrot.slane %v2923, %v2936
    %v2938 = vcombine.low %v2882, %v2898
    %v2939 = vcombine.high %v2882, %v2898
    %v2941 = vunpack.c.l.s4 1934713408
    %v2942 = vunpack.c.0.s8 %v2941
    %v2943 = vlaneseq
    %v2944 = vshrl.u32 %v2943, 7
    %v2945 = vsub.s32 %v2942, %v2944
    %v2946 = vrot.slane %v2938, %v2945
    %v2948 = vunpack.c.l.s4 1934713408
    %v2949 = vunpack.c.0.s8 %v2948
    %v2950 = vlaneseq
    %v2951 = vshrl.u32 %v2950, 7
    %v2952 = vsub.s32 %v2949, %v2951
    %v2953 = vrot.slane %v2939, %v2952
    %v2954 = vcombine.low %v2889, %v2905
    %v2955 = vcombine.high %v2889, %v2905
    %v2957 = vunpack.c.l.s4 1934713408
    %v2958 = vunpack.c.0.s8 %v2957
    %v2959 = vlaneseq
    %v2960 = vshrl.u32 %v2959, 7
    %v2961 = vsub.s32 %v2958, %v2960
    %v2962 = vrot.slane %v2954, %v2961
    %v2964 = vunpack.c.l.s4 1934713408
    %v2965 = vunpack.c.0.s8 %v2964
    %v2966 = vlaneseq
    %v2967 = vshrl.u32 %v2966, 7
    %v2968 = vsub.s32 %v2965, %v2967
    %v2969 = vrot.slane %v2955, %v2968
    %v2970 = vcombine.low %v2914, %v2930
    %v2971 = vcombine.high %v2914, %v2930
    %v2973 = vunpack.c.l.s4 1934713408
    %v2974 = vunpack.c.0.s8 %v2973
    %v2975 = vlaneseq
    %v2976 = vshrl.u32 %v2975, 7
    %v2977 = vsub.s32 %v2974, %v2976
    %v2978 = vrot.slane %v2970, %v2977
    %v2980 = vunpack.c.l.s4 1934713408
    %v2981 = vunpack.c.0.s8 %v2980
    %v2982 = vlaneseq
    %v2983 = vshrl.u32 %v2982, 7
    %v2984 = vsub.s32 %v2981, %v2983
    %v2985 = vrot.slane %v2971, %v2984
    %v2986 = vcombine.low %v2921, %v2937
    %v2987 = vcombine.high %v2921, %v2937
    %v2989 = vunpack.c.l.s4 1934713408
    %v2990 = vunpack.c.0.s8 %v2989
    %v2991 = vlaneseq
    %v2992 = vshrl.u32 %v2991, 7
    %v2993 = vsub.s32 %v2990, %v2992
    %v2994 = vrot.slane %v2986, %v2993
    %v2996 = vunpack.c.l.s4 1934713408
    %v2997 = vunpack.c.0.s8 %v2996
    %v2998 = vlaneseq
    %v2999 = vshrl.u32 %v2998, 7
    %v3000 = vsub.s32 %v2997, %v2999
    %v3001 = vrot.slane %v2987, %v3000
    %v3002 = vcombine.low %v2946, %v2978
    %v3003 = vcombine.high %v2946, %v2978
    %v3004 = vcombine.low %v2953, %v2985
    %v3005 = vcombine.high %v2953, %v2985
    %v3006 = vcombine.low %v2962, %v2994
    %v3007 = vcombine.high %v2962, %v2994
    %v3008 = vcombine.low %v2969, %v3001
    %v3009 = vcombine.high %v2969, %v3001
    %v3010 = vcombine.low %v2557, %v2569
    %v3011 = vcombine.high %v2557, %v2569
    %v3013 = vunpack.c.l.s4 1983009808
    %v3014 = vunpack.c.0.s8 %v3013
    %v3015 = vlaneseq
    %v3016 = vshrl.u32 %v3015, 7
    %v3017 = vsub.s32 %v3014, %v3016
    %v3018 = vrot.slane %v3010, %v3017
    %v3020 = vunpack.c.l.s4 1983009808
    %v3021 = vunpack.c.0.s8 %v3020
    %v3022 = vlaneseq
    %v3023 = vshrl.u32 %v3022, 7
    %v3024 = vsub.s32 %v3021, %v3023
    %v3025 = vrot.slane %v3011, %v3024
    %v3026 = vcombine.low %v2563, %v2575
    %v3027 = vcombine.high %v2563, %v2575
    %v3029 = vunpack.c.l.s4 1983009808
    %v3030 = vunpack.c.0.s8 %v3029
    %v3031 = vlaneseq
    %v3032 = vshrl.u32 %v3031, 7
    %v3033 = vsub.s32 %v3030, %v3032
    %v3034 = vrot.slane %v3026, %v3033
    %v3036 = vunpack.c.l.s4 1983009808
    %v3037 = vunpack.c.0.s8 %v3036
    %v3038 = vlaneseq
    %v3039 = vshrl.u32 %v3038, 7
    %v3040 = vsub.s32 %v3037, %v3039
    %v3041 = vrot.slane %v3027, %v3040
    %v3042 = vcombine.low %v2581, %v2593
    %v3043 = vcombine.high %v2581, %v2593
    %v3045 = vunpack.c.l.s4 1983009808
    %v3046 = vunpack.c.0.s8 %v3045
    %v3047 = vlaneseq
    %v3048 = vshrl.u32 %v3047, 7
    %v3049 = vsub.s32 %v3046, %v3048
    %v3050 = vrot.slane %v3042, %v3049
    %v3052 = vunpack.c.l.s4 1983009808
    %v3053 = vunpack.c.0.s8 %v3052
    %v3054 = vlaneseq
    %v3055 = vshrl.u32 %v3054, 7
    %v3056 = vsub.s32 %v3053, %v3055
    %v3057 = vrot.slane %v3043, %v3056
    %v3058 = vcombine.low %v2587, %v2599
    %v3059 = vcombine.high %v2587, %v2599
    %v3061 = vunpack.c.l.s4 1983009808
    %v3062 = vunpack.c.0.s8 %v3061
    %v3063 = vlaneseq
    %v3064 = vshrl.u32 %v3063, 7
    %v3065 = vsub.s32 %v3062, %v3064
    %v3066 = vrot.slane %v3058, %v3065
    %v3068 = vunpack.c.l.s4 1983009808
    %v3069 = vunpack.c.0.s8 %v3068
    %v3070 = vlaneseq
    %v3071 = vshrl.u32 %v3070, 7
    %v3072 = vsub.s32 %v3069, %v3071
    %v3073 = vrot.slane %v3059, %v3072
    %v3074 = vcombine.low %v3018, %v3034
    %v3075 = vcombine.high %v3018, %v3034
    %v3077 = vunpack.c.l.s4 1934713408
    %v3078 = vunpack.c.0.s8 %v3077
    %v3079 = vlaneseq
    %v3080 = vshrl.u32 %v3079, 7
    %v3081 = vsub.s32 %v3078, %v3080
    %v3082 = vrot.slane %v3074, %v3081
    %v3084 = vunpack.c.l.s4 1934713408
    %v3085 = vunpack.c.0.s8 %v3084
    %v3086 = vlaneseq
    %v3087 = vshrl.u32 %v3086, 7
    %v3088 = vsub.s32 %v3085, %v3087
    %v3089 = vrot.slane %v3075, %v3088
    %v3090 = vcombine.low %v3025, %v3041
    %v3091 = vcombine.high %v3025, %v3041
    %v3093 = vunpack.c.l.s4 1934713408
    %v3094 = vunpack.c.0.s8 %v3093
    %v3095 = vlaneseq
    %v3096 = vshrl.u32 %v3095, 7
    %v3097 = vsub.s32 %v3094, %v3096
    %v3098 = vrot.slane %v3090, %v3097
    %v3100 = vunpack.c.l.s4 1934713408
    %v3101 = vunpack.c.0.s8 %v3100
    %v3102 = vlaneseq
    %v3103 = vshrl.u32 %v3102, 7
    %v3104 = vsub.s32 %v3101, %v3103
    %v3105 = vrot.slane %v3091, %v3104
    %v3106 = vcombine.low %v3050, %v3066
    %v3107 = vcombine.high %v3050, %v3066
    %v3109 = vunpack.c.l.s4 1934713408
    %v3110 = vunpack.c.0.s8 %v3109
    %v3111 = vlaneseq
    %v3112 = vshrl.u32 %v3111, 7
    %v3113 = vsub.s32 %v3110, %v3112
    %v3114 = vrot.slane %v3106, %v3113
    %v3116 = vunpack.c.l.s4 1934713408
    %v3117 = vunpack.c.0.s8 %v3116
    %v3118 = vlaneseq
    %v3119 = vshrl.u32 %v3118, 7
    %v3120 = vsub.s32 %v3117, %v3119
    %v3121 = vrot.slane %v3107, %v3120
    %v3122 = vcombine.low %v3057, %v3073
    %v3123 = vcombine.high %v3057, %v3073
    %v3125 = vunpack.c.l.s4 1934713408
    %v3126 = vunpack.c.0.s8 %v3125
    %v3127 = vlaneseq
    %v3128 = vshrl.u32 %v3127, 7
    %v3129 = vsub.s32 %v3126, %v3128
    %v3130 = vrot.slane %v3122, %v3129
    %v3132 = vunpack.c.l.s4 1934713408
    %v3133 = vunpack.c.0.s8 %v3132
    %v3134 = vlaneseq
    %v3135 = vshrl.u32 %v3134, 7
    %v3136 = vsub.s32 %v3133, %v3135
    %v3137 = vrot.slane %v3123, %v3136
    %v3138 = vcombine.low %v3082, %v3114
    %v3139 = vcombine.high %v3082, %v3114
    %v3140 = vcombine.low %v3089, %v3121
    %v3141 = vcombine.high %v3089, %v3121
    %v3142 = vcombine.low %v3098, %v3130
    %v3143 = vcombine.high %v3098, %v3130
    %v3144 = vcombine.low %v3105, %v3137
    %v3145 = vcombine.high %v3105, %v3137
    %v3146 = vcombine.low %v2730, %v2732
    %v3147 = vcombine.high %v2730, %v2732
    %v3149 = vunpack.c.l.s4 1983009808
    %v3150 = vunpack.c.0.s8 %v3149
    %v3151 = vlaneseq
    %v3152 = vshrl.u32 %v3151, 7
    %v3153 = vsub.s32 %v3150, %v3152
    %v3154 = vrot.slane %v3146, %v3153
    %v3156 = vunpack.c.l.s4 1983009808
    %v3157 = vunpack.c.0.s8 %v3156
    %v3158 = vlaneseq
    %v3159 = vshrl.u32 %v3158, 7
    %v3160 = vsub.s32 %v3157, %v3159
    %v3161 = vrot.slane %v3147, %v3160
    %v3162 = vcombine.low %v2731, %v2733
    %v3163 = vcombine.high %v2731, %v2733
    %v3165 = vunpack.c.l.s4 1983009808
    %v3166 = vunpack.c.0.s8 %v3165
    %v3167 = vlaneseq
    %v3168 = vshrl.u32 %v3167, 7
    %v3169 = vsub.s32 %v3166, %v3168
    %v3170 = vrot.slane %v3162, %v3169
    %v3172 = vunpack.c.l.s4 1983009808
    %v3173 = vunpack.c.0.s8 %v3172
    %v3174 = vlaneseq
    %v3175 = vshrl.u32 %v3174, 7
    %v3176 = vsub.s32 %v3173, %v3175
    %v3177 = vrot.slane %v3163, %v3176
    %v3178 = vcombine.low %v2734, %v2736
    %v3179 = vcombine.high %v2734, %v2736
    %v3181 = vunpack.c.l.s4 1983009808
    %v3182 = vunpack.c.0.s8 %v3181
    %v3183 = vlaneseq
    %v3184 = vshrl.u32 %v3183, 7
    %v3185 = vsub.s32 %v3182, %v3184
    %v3186 = vrot.slane %v3178, %v3185
    %v3188 = vunpack.c.l.s4 1983009808
    %v3189 = vunpack.c.0.s8 %v3188
    %v3190 = vlaneseq
    %v3191 = vshrl.u32 %v3190, 7
    %v3192 = vsub.s32 %v3189, %v3191
    %v3193 = vrot.slane %v3179, %v3192
    %v3194 = vcombine.low %v2735, %v2737
    %v3195 = vcombine.high %v2735, %v2737
    %v3197 = vunpack.c.l.s4 1983009808
    %v3198 = vunpack.c.0.s8 %v3197
    %v3199 = vlaneseq
    %v3200 = vshrl.u32 %v3199, 7
    %v3201 = vsub.s32 %v3198, %v3200
    %v3202 = vrot.slane %v3194, %v3201
    %v3204 = vunpack.c.l.s4 1983009808
    %v3205 = vunpack.c.0.s8 %v3204
    %v3206 = vlaneseq
    %v3207 = vshrl.u32 %v3206, 7
    %v3208 = vsub.s32 %v3205, %v3207
    %v3209 = vrot.slane %v3195, %v3208
    %v3210 = vcombine.low %v3154, %v3170
    %v3211 = vcombine.high %v3154, %v3170
    %v3213 = vunpack.c.l.s4 1934713408
    %v3214 = vunpack.c.0.s8 %v3213
    %v3215 = vlaneseq
    %v3216 = vshrl.u32 %v3215, 7
    %v3217 = vsub.s32 %v3214, %v3216
    %v3218 = vrot.slane %v3210, %v3217
    %v3220 = vunpack.c.l.s4 1934713408
    %v3221 = vunpack.c.0.s8 %v3220
    %v3222 = vlaneseq
    %v3223 = vshrl.u32 %v3222, 7
    %v3224 = vsub.s32 %v3221, %v3223
    %v3225 = vrot.slane %v3211, %v3224
    %v3226 = vcombine.low %v3161, %v3177
    %v3227 = vcombine.high %v3161, %v3177
    %v3229 = vunpack.c.l.s4 1934713408
    %v3230 = vunpack.c.0.s8 %v3229
    %v3231 = vlaneseq
    %v3232 = vshrl.u32 %v3231, 7
    %v3233 = vsub.s32 %v3230, %v3232
    %v3234 = vrot.slane %v3226, %v3233
    %v3236 = vunpack.c.l.s4 1934713408
    %v3237 = vunpack.c.0.s8 %v3236
    %v3238 = vlaneseq
    %v3239 = vshrl.u32 %v3238, 7
    %v3240 = vsub.s32 %v3237, %v3239
    %v3241 = vrot.slane %v3227, %v3240
    %v3242 = vcombine.low %v3186, %v3202
    %v3243 = vcombine.high %v3186, %v3202
    %v3245 = vunpack.c.l.s4 1934713408
    %v3246 = vunpack.c.0.s8 %v3245
    %v3247 = vlaneseq
    %v3248 = vshrl.u32 %v3247, 7
    %v3249 = vsub.s32 %v3246, %v3248
    %v3250 = vrot.slane %v3242, %v3249
    %v3252 = vunpack.c.l.s4 1934713408
    %v3253 = vunpack.c.0.s8 %v3252
    %v3254 = vlaneseq
    %v3255 = vshrl.u32 %v3254, 7
    %v3256 = vsub.s32 %v3253, %v3255
    %v3257 = vrot.slane %v3243, %v3256
    %v3258 = vcombine.low %v3193, %v3209
    %v3259 = vcombine.high %v3193, %v3209
    %v3261 = vunpack.c.l.s4 1934713408
    %v3262 = vunpack.c.0.s8 %v3261
    %v3263 = vlaneseq
    %v3264 = vshrl.u32 %v3263, 7
    %v3265 = vsub.s32 %v3262, %v3264
    %v3266 = vrot.slane %v3258, %v3265
    %v3268 = vunpack.c.l.s4 1934713408
    %v3269 = vunpack.c.0.s8 %v3268
    %v3270 = vlaneseq
    %v3271 = vshrl.u32 %v3270, 7
    %v3272 = vsub.s32 %v3269, %v3271
    %v3273 = vrot.slane %v3259, %v3272
    %v3274 = vcombine.low %v3218, %v3250
    %v3275 = vcombine.high %v3218, %v3250
    %v3276 = vcombine.low %v3225, %v3257
    %v3277 = vcombine.high %v3225, %v3257
    %v3278 = vcombine.low %v3234, %v3266
    %v3279 = vcombine.high %v3234, %v3266
    %v3280 = vcombine.low %v3241, %v3273
    %v3281 = vcombine.high %v3241, %v3273
    %v3282 = vcombine.low %v3002, %v3004
    %v3283 = vcombine.high %v3002, %v3004
    %v3285 = vunpack.c.l.s4 1983009808
    %v3286 = vunpack.c.0.s8 %v3285
    %v3287 = vlaneseq
    %v3288 = vshrl.u32 %v3287, 7
    %v3289 = vsub.s32 %v3286, %v3288
    %v3290 = vrot.slane %v3282, %v3289
    %v3292 = vunpack.c.l.s4 1983009808
    %v3293 = vunpack.c.0.s8 %v3292
    %v3294 = vlaneseq
    %v3295 = vshrl.u32 %v3294, 7
    %v3296 = vsub.s32 %v3293, %v3295
    %v3297 = vrot.slane %v3283, %v3296
    %v3298 = vcombine.low %v3003, %v3005
    %v3299 = vcombine.high %v3003, %v3005
    %v3301 = vunpack.c.l.s4 1983009808
    %v3302 = vunpack.c.0.s8 %v3301
    %v3303 = vlaneseq
    %v3304 = vshrl.u32 %v3303, 7
    %v3305 = vsub.s32 %v3302, %v3304
    %v3306 = vrot.slane %v3298, %v3305
    %v3308 = vunpack.c.l.s4 1983009808
    %v3309 = vunpack.c.0.s8 %v3308
    %v3310 = vlaneseq
    %v3311 = vshrl.u32 %v3310, 7
    %v3312 = vsub.s32 %v3309, %v3311
    %v3313 = vrot.slane %v3299, %v3312
    %v3314 = vcombine.low %v3006, %v3008
    %v3315 = vcombine.high %v3006, %v3008
    %v3317 = vunpack.c.l.s4 1983009808
    %v3318 = vunpack.c.0.s8 %v3317
    %v3319 = vlaneseq
    %v3320 = vshrl.u32 %v3319, 7
    %v3321 = vsub.s32 %v3318, %v3320
    %v3322 = vrot.slane %v3314, %v3321
    %v3324 = vunpack.c.l.s4 1983009808
    %v3325 = vunpack.c.0.s8 %v3324
    %v3326 = vlaneseq
    %v3327 = vshrl.u32 %v3326, 7
    %v3328 = vsub.s32 %v3325, %v3327
    %v3329 = vrot.slane %v3315, %v3328
    %v3330 = vcombine.low %v3007, %v3009
    %v3331 = vcombine.high %v3007, %v3009
    %v3333 = vunpack.c.l.s4 1983009808
    %v3334 = vunpack.c.0.s8 %v3333
    %v3335 = vlaneseq
    %v3336 = vshrl.u32 %v3335, 7
    %v3337 = vsub.s32 %v3334, %v3336
    %v3338 = vrot.slane %v3330, %v3337
    %v3340 = vunpack.c.l.s4 1983009808
    %v3341 = vunpack.c.0.s8 %v3340
    %v3342 = vlaneseq
    %v3343 = vshrl.u32 %v3342, 7
    %v3344 = vsub.s32 %v3341, %v3343
    %v3345 = vrot.slane %v3331, %v3344
    %v3346 = vcombine.low %v3290, %v3306
    %v3347 = vcombine.high %v3290, %v3306
    %v3349 = vunpack.c.l.s4 1934713408
    %v3350 = vunpack.c.0.s8 %v3349
    %v3351 = vlaneseq
    %v3352 = vshrl.u32 %v3351, 7
    %v3353 = vsub.s32 %v3350, %v3352
    %v3354 = vrot.slane %v3346, %v3353
    %v3356 = vunpack.c.l.s4 1934713408
    %v3357 = vunpack.c.0.s8 %v3356
    %v3358 = vlaneseq
    %v3359 = vshrl.u32 %v3358, 7
    %v3360 = vsub.s32 %v3357, %v3359
    %v3361 = vrot.slane %v3347, %v3360
    %v3362 = vcombine.low %v3297, %v3313
    %v3363 = vcombine.high %v3297, %v3313
    %v3365 = vunpack.c.l.s4 1934713408
    %v3366 = vunpack.c.0.s8 %v3365
    %v3367 = vlaneseq
    %v3368 = vshrl.u32 %v3367, 7
    %v3369 = vsub.s32 %v3366, %v3368
    %v3370 = vrot.slane %v3362, %v3369
    %v3372 = vunpack.c.l.s4 1934713408
    %v3373 = vunpack.c.0.s8 %v3372
    %v3374 = vlaneseq
    %v3375 = vshrl.u32 %v3374, 7
    %v3376 = vsub.s32 %v3373, %v3375
    %v3377 = vrot.slane %v3363, %v3376
    %v3378 = vcombine.low %v3322, %v3338
    %v3379 = vcombine.high %v3322, %v3338
    %v3381 = vunpack.c.l.s4 1934713408
    %v3382 = vunpack.c.0.s8 %v3381
    %v3383 = vlaneseq
    %v3384 = vshrl.u32 %v3383, 7
    %v3385 = vsub.s32 %v3382, %v3384
    %v3386 = vrot.slane %v3378, %v3385
    %v3388 = vunpack.c.l.s4 1934713408
    %v3389 = vunpack.c.0.s8 %v3388
    %v3390 = vlaneseq
    %v3391 = vshrl.u32 %v3390, 7
    %v3392 = vsub.s32 %v3389, %v3391
    %v3393 = vrot.slane %v3379, %v3392
    %v3394 = vcombine.low %v3329, %v3345
    %v3395 = vcombine.high %v3329, %v3345
    %v3397 = vunpack.c.l.s4 1934713408
    %v3398 = vunpack.c.0.s8 %v3397
    %v3399 = vlaneseq
    %v3400 = vshrl.u32 %v3399, 7
    %v3401 = vsub.s32 %v3398, %v3400
    %v3402 = vrot.slane %v3394, %v3401
    %v3404 = vunpack.c.l.s4 1934713408
    %v3405 = vunpack.c.0.s8 %v3404
    %v3406 = vlaneseq
    %v3407 = vshrl.u32 %v3406, 7
    %v3408 = vsub.s32 %v3405, %v3407
    %v3409 = vrot.slane %v3395, %v3408
    %v3410 = vcombine.low %v3354, %v3386
    %v3411 = vcombine.high %v3354, %v3386
    %v3412 = vcombine.low %v3361, %v3393
    %v3413 = vcombine.high %v3361, %v3393
    %v3414 = vcombine.low %v3370, %v3402
    %v3415 = vcombine.high %v3370, %v3402
    %v3416 = vcombine.low %v3377, %v3409
    %v3417 = vcombine.high %v3377, %v3409
    %v3418 = vcombine.low %v2866, %v2868
    %v3420 = vunpack.c.l.s4 1983009808
    %v3421 = vunpack.c.0.s8 %v3420
    %v3422 = vlaneseq
    %v3423 = vshrl.u32 %v3422, 7
    %v3424 = vsub.s32 %v3421, %v3423
    %v3425 = vrot.slane %v3418, %v3424
    %v3426 = vcombine.low %v2867, %v2869
    %v3428 = vunpack.c.l.s4 1983009808
    %v3429 = vunpack.c.0.s8 %v3428
    %v3430 = vlaneseq
    %v3431 = vshrl.u32 %v3430, 7
    %v3432 = vsub.s32 %v3429, %v3431
    %v3433 = vrot.slane %v3426, %v3432
    %v3434 = vcombine.low %v2870, %v2872
    %v3436 = vunpack.c.l.s4 1983009808
    %v3437 = vunpack.c.0.s8 %v3436
    %v3438 = vlaneseq
    %v3439 = vshrl.u32 %v3438, 7
    %v3440 = vsub.s32 %v3437, %v3439
    %v3441 = vrot.slane %v3434, %v3440
    %v3442 = vcombine.low %v2871, %v2873
    %v3444 = vunpack.c.l.s4 1983009808
    %v3445 = vunpack.c.0.s8 %v3444
    %v3446 = vlaneseq
    %v3447 = vshrl.u32 %v3446, 7
    %v3448 = vsub.s32 %v3445, %v3447
    %v3449 = vrot.slane %v3442, %v3448
    %v3450 = vcombine.low %v3425, %v3433
    %v3451 = vcombine.high %v3425, %v3433
    %v3453 = vunpack.c.l.s4 1934713408
    %v3454 = vunpack.c.0.s8 %v3453
    %v3455 = vlaneseq
    %v3456 = vshrl.u32 %v3455, 7
    %v3457 = vsub.s32 %v3454, %v3456
    %v3458 = vrot.slane %v3450, %v3457
    %v3460 = vunpack.c.l.s4 1934713408
    %v3461 = vunpack.c.0.s8 %v3460
    %v3462 = vlaneseq
    %v3463 = vshrl.u32 %v3462, 7
    %v3464 = vsub.s32 %v3461, %v3463
    %v3465 = vrot.slane %v3451, %v3464
    %v3466 = vcombine.low %v3441, %v3449
    %v3467 = vcombine.high %v3441, %v3449
    %v3469 = vunpack.c.l.s4 1934713408
    %v3470 = vunpack.c.0.s8 %v3469
    %v3471 = vlaneseq
    %v3472 = vshrl.u32 %v3471, 7
    %v3473 = vsub.s32 %v3470, %v3472
    %v3474 = vrot.slane %v3466, %v3473
    %v3476 = vunpack.c.l.s4 1934713408
    %v3477 = vunpack.c.0.s8 %v3476
    %v3478 = vlaneseq
    %v3479 = vshrl.u32 %v3478, 7
    %v3480 = vsub.s32 %v3477, %v3479
    %v3481 = vrot.slane %v3467, %v3480
    %v3482 = vcombine.low %v3458, %v3474
    %v3483 = vcombine.high %v3458, %v3474
    %v3484 = vcombine.low %v3465, %v3481
    %v3485 = vcombine.high %v3465, %v3481
    %v3486 = vcombine.low %v3138, %v3140
    %v3488 = vunpack.c.l.s4 1983009808
    %v3489 = vunpack.c.0.s8 %v3488
    %v3490 = vlaneseq
    %v3491 = vshrl.u32 %v3490, 7
    %v3492 = vsub.s32 %v3489, %v3491
    %v3493 = vrot.slane %v3486, %v3492
    %v3494 = vcombine.low %v3139, %v3141
    %v3496 = vunpack.c.l.s4 1983009808
    %v3497 = vunpack.c.0.s8 %v3496
    %v3498 = vlaneseq
    %v3499 = vshrl.u32 %v3498, 7
    %v3500 = vsub.s32 %v3497, %v3499
    %v3501 = vrot.slane %v3494, %v3500
    %v3502 = vcombine.low %v3142, %v3144
    %v3504 = vunpack.c.l.s4 1983009808
    %v3505 = vunpack.c.0.s8 %v3504
    %v3506 = vlaneseq
    %v3507 = vshrl.u32 %v3506, 7
    %v3508 = vsub.s32 %v3505, %v3507
    %v3509 = vrot.slane %v3502, %v3508
    %v3510 = vcombine.low %v3143, %v3145
    %v3512 = vunpack.c.l.s4 1983009808
    %v3513 = vunpack.c.0.s8 %v3512
    %v3514 = vlaneseq
    %v3515 = vshrl.u32 %v3514, 7
    %v3516 = vsub.s32 %v3513, %v3515
    %v3517 = vrot.slane %v3510, %v3516
    %v3518 = vcombine.low %v3493, %v3501
    %v3519 = vcombine.high %v3493, %v3501
    %v3521 = vunpack.c.l.s4 1934713408
    %v3522 = vunpack.c.0.s8 %v3521
    %v3523 = vlaneseq
    %v3524 = vshrl.u32 %v3523, 7
    %v3525 = vsub.s32 %v3522, %v3524
    %v3526 = vrot.slane %v3518, %v3525
    %v3528 = vunpack.c.l.s4 1934713408
    %v3529 = vunpack.c.0.s8 %v3528
    %v3530 = vlaneseq
    %v3531 = vshrl.u32 %v3530, 7
    %v3532 = vsub.s32 %v3529, %v3531
    %v3533 = vrot.slane %v3519, %v3532
    %v3534 = vcombine.low %v3509, %v3517
    %v3535 = vcombine.high %v3509, %v3517
    %v3537 = vunpack.c.l.s4 1934713408
    %v3538 = vunpack.c.0.s8 %v3537
    %v3539 = vlaneseq
    %v3540 = vshrl.u32 %v3539, 7
    %v3541 = vsub.s32 %v3538, %v3540
    %v3542 = vrot.slane %v3534, %v3541
    %v3544 = vunpack.c.l.s4 1934713408
    %v3545 = vunpack.c.0.s8 %v3544
    %v3546 = vlaneseq
    %v3547 = vshrl.u32 %v3546, 7
    %v3548 = vsub.s32 %v3545, %v3547
    %v3549 = vrot.slane %v3535, %v3548
    %v3550 = vcombine.low %v3526, %v3542
    %v3551 = vcombine.high %v3526, %v3542
    %v3552 = vcombine.low %v3533, %v3549
    %v3553 = vcombine.high %v3533, %v3549
    %v3554 = vpack.c.bf16 %v3410, %v3274
    %v3555 = vpack.c.bf16 %v3411, %v3275
    %v3556 = vpack.c.bf16 %v3412, %v3276
    %v3557 = vpack.c.bf16 %v3413, %v3277
    %v3558 = vpack.c.bf16 %v3414, %v3278
    %v3559 = vpack.c.bf16 %v3415, %v3279
    %v3560 = vpack.c.bf16 %v3416, %v3280
    %v3561 = vpack.c.bf16 %v3417, %v3281
    %v3562 = vpack.c.bf16 %v3550, %v3482
    %v3563 = vpack.c.bf16 %v3551, %v3483
    %v3564 = vpack.c.bf16 %v3552, %v3484
    %v3565 = vpack.c.bf16 %v3553, %v3485
    %v3567 = vsel %vm1248, %v3554, 0
    %v3570 = vsel %vm1248, %v3558, 0
    %3572 = vmatprep.subr.bf16.mxu0 0
    %3573 = vmatpush1.bf16.xpose.msra.mxu0 %v3570
    %3574 = vmatprep.subr.bf16.mxu0 0
    %3575 = vmatpush1.bf16.xpose.msra.mxu0 0
    %3576 = vmatprep.subr.bf16.mxu0 0
    %3577 = vmatpush1.bf16.xpose.msra.mxu0 0
    %3578 = vmatprep.subr.bf16.mxu0 0
    %3579 = vmatpush1.bf16.xpose.msra.mxu0 0
    %3580 = vmatprep.subr.bf16.mxu0 0
    %3581 = vmatpush1.bf16.xpose.msra.mxu0 0
    %3582 = vmatprep.subr.bf16.mxu0 0
    %3583 = vmatpush1.bf16.xpose.msra.mxu0 0
    %3584 = vmatprep.subr.bf16.mxu0 0
    %3585 = vmatpush1.bf16.xpose.msra.mxu0 0
    %3586 = vmatprep.subr.bf16.mxu0 0
    %3587 = vmatpush1.bf16.xpose.msra.mxu0 0
    %3588 = vmatprep.subr.bf16.mxu0 0
    %3589 = vmatpush1.bf16.xpose.msra.mxu0 0
    %3590 = vmatprep.subr.bf16.mxu0 0
    %3591 = vmatpush1.bf16.xpose.msra.mxu0 0
    %3592 = vmatprep.subr.bf16.mxu0 0
    %3593 = vmatpush1.bf16.xpose.msra.mxu0 0
    %3594 = vmatprep.subr.bf16.mxu0 0
    %3595 = vmatpush1.bf16.xpose.msra.mxu0 0
    %3596 = vmatprep.subr.bf16.mxu0 0
    %3597 = vmatpush1.bf16.xpose.msra.mxu0 0
    %3598 = vmatprep.subr.bf16.mxu0 0
    %3599 = vmatpush1.bf16.xpose.msra.mxu0 0
    %3600 = vmatprep.subr.bf16.mxu0 0
    %3601 = vmatpush1.bf16.xpose.msra.mxu0 0
    %3602 = vmatprep.subr.bf16.mxu0 0
    %3603 = vmatpush1.bf16.xpose.msra.mxu0 0
    %3604 = vmatprep.mubr.bf16.mxu0 0
    %3605 = vmatmul.mubr.bf16.gmra.mrb[0].mxu0 %v3567
    %v3606 = vpop.f32.mrb[0].mxu0
    %v3607 = vadd.f32 %v38, %v3606
    %v3608 = vpop.f32.mrb[0].mxu0
    %v3609 = vpop.f32.mrb[0].mxu0
    %v3610 = vadd.f32 %v39, %v3609
    %v3611 = vpop.f32.mrb[0].mxu0
    %3612 = vdwg.mxu0
    %v3614 = vsel %vm1248, %v3555, 0
    %v3617 = vsel %vm1248, %v3559, 0
    %3619 = vmatprep.subr.bf16.mxu0 0
    %3620 = vmatpush1.bf16.xpose.msra.mxu0 %v3617
    %3621 = vmatprep.subr.bf16.mxu0 0
    %3622 = vmatpush1.bf16.xpose.msra.mxu0 0
    %3623 = vmatprep.subr.bf16.mxu0 0
    %3624 = vmatpush1.bf16.xpose.msra.mxu0 0
    %3625 = vmatprep.subr.bf16.mxu0 0
    %3626 = vmatpush1.bf16.xpose.msra.mxu0 0
    %3627 = vmatprep.subr.bf16.mxu0 0
    %3628 = vmatpush1.bf16.xpose.msra.mxu0 0
    %3629 = vmatprep.subr.bf16.mxu0 0
    %3630 = vmatpush1.bf16.xpose.msra.mxu0 0
    %3631 = vmatprep.subr.bf16.mxu0 0
    %3632 = vmatpush1.bf16.xpose.msra.mxu0 0
    %3633 = vmatprep.subr.bf16.mxu0 0
    %3634 = vmatpush1.bf16.xpose.msra.mxu0 0
    %3635 = vmatprep.subr.bf16.mxu0 0
    %3636 = vmatpush1.bf16.xpose.msra.mxu0 0
    %3637 = vmatprep.subr.bf16.mxu0 0
    %3638 = vmatpush1.bf16.xpose.msra.mxu0 0
    %3639 = vmatprep.subr.bf16.mxu0 0
    %3640 = vmatpush1.bf16.xpose.msra.mxu0 0
    %3641 = vmatprep.subr.bf16.mxu0 0
    %3642 = vmatpush1.bf16.xpose.msra.mxu0 0
    %3643 = vmatprep.subr.bf16.mxu0 0
    %3644 = vmatpush1.bf16.xpose.msra.mxu0 0
    %3645 = vmatprep.subr.bf16.mxu0 0
    %3646 = vmatpush1.bf16.xpose.msra.mxu0 0
    %3647 = vmatprep.subr.bf16.mxu0 0
    %3648 = vmatpush1.bf16.xpose.msra.mxu0 0
    %3649 = vmatprep.subr.bf16.mxu0 0
    %3650 = vmatpush1.bf16.xpose.msra.mxu0 0
    %3651 = vmatprep.mubr.bf16.mxu0 0
    %3652 = vmatmul.mubr.bf16.gmra.mrb[0].mxu0 %v3614
    %v3653 = vpop.f32.mrb[0].mxu0
    %v3654 = vadd.f32 %v38, %v3653
    %v3655 = vpop.f32.mrb[0].mxu0
    %v3656 = vpop.f32.mrb[0].mxu0
    %v3657 = vadd.f32 %v39, %v3656
    %v3658 = vpop.f32.mrb[0].mxu0
    %3659 = vdwg.mxu0
    %v3661 = vsel %vm1248, %v3556, 0
    %v3664 = vsel %vm1248, %v3560, 0
    %3666 = vmatprep.subr.bf16.mxu0 0
    %3667 = vmatpush1.bf16.xpose.msra.mxu0 %v3664
    %3668 = vmatprep.subr.bf16.mxu0 0
    %3669 = vmatpush1.bf16.xpose.msra.mxu0 0
    %3670 = vmatprep.subr.bf16.mxu0 0
    %3671 = vmatpush1.bf16.xpose.msra.mxu0 0
    %3672 = vmatprep.subr.bf16.mxu0 0
    %3673 = vmatpush1.bf16.xpose.msra.mxu0 0
    %3674 = vmatprep.subr.bf16.mxu0 0
    %3675 = vmatpush1.bf16.xpose.msra.mxu0 0
    %3676 = vmatprep.subr.bf16.mxu0 0
    %3677 = vmatpush1.bf16.xpose.msra.mxu0 0
    %3678 = vmatprep.subr.bf16.mxu0 0
    %3679 = vmatpush1.bf16.xpose.msra.mxu0 0
    %3680 = vmatprep.subr.bf16.mxu0 0
    %3681 = vmatpush1.bf16.xpose.msra.mxu0 0
    %3682 = vmatprep.subr.bf16.mxu0 0
    %3683 = vmatpush1.bf16.xpose.msra.mxu0 0
    %3684 = vmatprep.subr.bf16.mxu0 0
    %3685 = vmatpush1.bf16.xpose.msra.mxu0 0
    %3686 = vmatprep.subr.bf16.mxu0 0
    %3687 = vmatpush1.bf16.xpose.msra.mxu0 0
    %3688 = vmatprep.subr.bf16.mxu0 0
    %3689 = vmatpush1.bf16.xpose.msra.mxu0 0
    %3690 = vmatprep.subr.bf16.mxu0 0
    %3691 = vmatpush1.bf16.xpose.msra.mxu0 0
    %3692 = vmatprep.subr.bf16.mxu0 0
    %3693 = vmatpush1.bf16.xpose.msra.mxu0 0
    %3694 = vmatprep.subr.bf16.mxu0 0
    %3695 = vmatpush1.bf16.xpose.msra.mxu0 0
    %3696 = vmatprep.subr.bf16.mxu0 0
    %3697 = vmatpush1.bf16.xpose.msra.mxu0 0
    %3698 = vmatprep.mubr.bf16.mxu0 0
    %3699 = vmatmul.mubr.bf16.gmra.mrb[0].mxu0 %v3661
    %v3700 = vpop.f32.mrb[0].mxu0
    %v3701 = vadd.f32 %v38, %v3700
    %v3702 = vpop.f32.mrb[0].mxu0
    %v3703 = vpop.f32.mrb[0].mxu0
    %v3704 = vadd.f32 %v39, %v3703
    %v3705 = vpop.f32.mrb[0].mxu0
    %3706 = vdwg.mxu0
    %v3708 = vsel %vm1248, %v3557, 0
    %v3711 = vsel %vm1248, %v3561, 0
    %3713 = vmatprep.subr.bf16.mxu0 0
    %3714 = vmatpush1.bf16.xpose.msra.mxu0 %v3711
    %3715 = vmatprep.subr.bf16.mxu0 0
    %3716 = vmatpush1.bf16.xpose.msra.mxu0 0
    %3717 = vmatprep.subr.bf16.mxu0 0
    %3718 = vmatpush1.bf16.xpose.msra.mxu0 0
    %3719 = vmatprep.subr.bf16.mxu0 0
    %3720 = vmatpush1.bf16.xpose.msra.mxu0 0
    %3721 = vmatprep.subr.bf16.mxu0 0
    %3722 = vmatpush1.bf16.xpose.msra.mxu0 0
    %3723 = vmatprep.subr.bf16.mxu0 0
    %3724 = vmatpush1.bf16.xpose.msra.mxu0 0
    %3725 = vmatprep.subr.bf16.mxu0 0
    %3726 = vmatpush1.bf16.xpose.msra.mxu0 0
    %3727 = vmatprep.subr.bf16.mxu0 0
    %3728 = vmatpush1.bf16.xpose.msra.mxu0 0
    %3729 = vmatprep.subr.bf16.mxu0 0
    %3730 = vmatpush1.bf16.xpose.msra.mxu0 0
    %3731 = vmatprep.subr.bf16.mxu0 0
    %3732 = vmatpush1.bf16.xpose.msra.mxu0 0
    %3733 = vmatprep.subr.bf16.mxu0 0
    %3734 = vmatpush1.bf16.xpose.msra.mxu0 0
    %3735 = vmatprep.subr.bf16.mxu0 0
    %3736 = vmatpush1.bf16.xpose.msra.mxu0 0
    %3737 = vmatprep.subr.bf16.mxu0 0
    %3738 = vmatpush1.bf16.xpose.msra.mxu0 0
    %3739 = vmatprep.subr.bf16.mxu0 0
    %3740 = vmatpush1.bf16.xpose.msra.mxu0 0
    %3741 = vmatprep.subr.bf16.mxu0 0
    %3742 = vmatpush1.bf16.xpose.msra.mxu0 0
    %3743 = vmatprep.subr.bf16.mxu0 0
    %3744 = vmatpush1.bf16.xpose.msra.mxu0 0
    %3745 = vmatprep.mubr.bf16.mxu0 0
    %3746 = vmatmul.mubr.bf16.gmra.mrb[0].mxu0 %v3708
    %v3747 = vpop.f32.mrb[0].mxu0
    %v3748 = vadd.f32 %v38, %v3747
    %v3749 = vpop.f32.mrb[0].mxu0
    %v3750 = vpop.f32.mrb[0].mxu0
    %v3751 = vadd.f32 %v39, %v3750
    %v3752 = vpop.f32.mrb[0].mxu0
    %3753 = vdwg.mxu0
    %v3754 = vsel %vm1437, %v3607, -inf
    %3755 = vmax.xlane.f32.xlu0 %v3754
    %v3756 = vpop.xlane.xlu0 %3755
    %v3757 = vsel %vm1437, %v3610, -inf
    %3758 = vmax.xlane.f32.xlu0 %v3757
    %v3759 = vpop.xlane.xlu0 %3758
    %v3760 = vsel %vm1437, %v3654, -inf
    %3761 = vmax.xlane.f32.xlu0 %v3760
    %v3762 = vpop.xlane.xlu0 %3761
    %v3763 = vsel %vm1437, %v3657, -inf
    %3764 = vmax.xlane.f32.xlu0 %v3763
    %v3765 = vpop.xlane.xlu0 %3764
    %v3766 = vsel %vm1437, %v3701, -inf
    %3767 = vmax.xlane.f32.xlu0 %v3766
    %v3768 = vpop.xlane.xlu0 %3767
    %v3769 = vsel %vm1437, %v3704, -inf
    %3770 = vmax.xlane.f32.xlu0 %v3769
    %v3771 = vpop.xlane.xlu0 %3770
    %v3772 = vsel %vm1437, %v3748, -inf
    %3773 = vmax.xlane.f32.xlu0 %v3772
    %v3774 = vpop.xlane.xlu0 %3773
    %v3775 = vsel %vm1437, %v3751, -inf
    %3776 = vmax.xlane.f32.xlu0 %v3775
    %v3777 = vpop.xlane.xlu0 %3776
    %v3778 = vsub.f32 %v3607, %v3756
    %v3779 = vsub.f32 %v3610, %v3759
    %v3780 = vsub.f32 %v3654, %v3762
    %v3781 = vsub.f32 %v3657, %v3765
    %v3782 = vsub.f32 %v3701, %v3768
    %v3783 = vsub.f32 %v3704, %v3771
    %v3784 = vsub.f32 %v3748, %v3774
    %v3785 = vsub.f32 %v3751, %v3777
    %v3786 = vmul.f32 %v3778, 1.442695
    %v3787 = vpow.pop %v3786
    %v3788 = vmul.f32 %v3779, 1.442695
    %v3789 = vpow.pop %v3788
    %v3790 = vmul.f32 %v3780, 1.442695
    %v3791 = vpow.pop %v3790
    %v3792 = vmul.f32 %v3781, 1.442695
    %v3793 = vpow.pop %v3792
    %v3794 = vmul.f32 %v3782, 1.442695
    %v3795 = vpow.pop %v3794
    %v3796 = vmul.f32 %v3783, 1.442695
    %v3797 = vpow.pop %v3796
    %v3798 = vmul.f32 %v3784, 1.442695
    %v3799 = vpow.pop %v3798
    %v3800 = vmul.f32 %v3785, 1.442695
    %v3801 = vpow.pop %v3800
    %v3802 = vsel %vm1437, %v3787, 0.0
    %3803 = vadd.xlane.f32.xlu0 %v3802
    %v3804 = vpop.xlane.xlu0 %3803
    %v3805 = vsel %vm1437, %v3789, 0.0
    %3806 = vadd.xlane.f32.xlu0 %v3805
    %v3807 = vpop.xlane.xlu0 %3806
    %v3808 = vsel %vm1437, %v3791, 0.0
    %3809 = vadd.xlane.f32.xlu0 %v3808
    %v3810 = vpop.xlane.xlu0 %3809
    %v3811 = vsel %vm1437, %v3793, 0.0
    %3812 = vadd.xlane.f32.xlu0 %v3811
    %v3813 = vpop.xlane.xlu0 %3812
    %v3814 = vsel %vm1437, %v3795, 0.0
    %3815 = vadd.xlane.f32.xlu0 %v3814
    %v3816 = vpop.xlane.xlu0 %3815
    %v3817 = vsel %vm1437, %v3797, 0.0
    %3818 = vadd.xlane.f32.xlu0 %v3817
    %v3819 = vpop.xlane.xlu0 %3818
    %v3820 = vsel %vm1437, %v3799, 0.0
    %3821 = vadd.xlane.f32.xlu0 %v3820
    %v3822 = vpop.xlane.xlu0 %3821
    %v3823 = vsel %vm1437, %v3801, 0.0
    %3824 = vadd.xlane.f32.xlu0 %v3823
    %v3825 = vpop.xlane.xlu0 %3824
    %v3826 = vrcp.pop %v3804
    %v3827 = vrcp.pop %v3807
    %v3828 = vrcp.pop %v3810
    %v3829 = vrcp.pop %v3813
    %v3830 = vrcp.pop %v3816
    %v3831 = vrcp.pop %v3819
    %v3832 = vrcp.pop %v3822
    %v3833 = vrcp.pop %v3825
    %v3834 = vmul.f32 %v3787, %v3826
    %v3835 = vmul.f32 %v3789, %v3827
    %v3836 = vmul.f32 %v3791, %v3828
    %v3837 = vmul.f32 %v3793, %v3829
    %v3838 = vmul.f32 %v3795, %v3830
    %v3839 = vmul.f32 %v3797, %v3831
    %v3840 = vmul.f32 %v3799, %v3832
    %v3841 = vmul.f32 %v3801, %v3833
    %v3842 = vpack.c.bf16 %v3835, %v3834
    %v3843 = vpack.c.bf16 %v3837, %v3836
    %v3844 = vpack.c.bf16 %v3839, %v3838
    %v3845 = vpack.c.bf16 %v3841, %v3840
    %v3847 = vsel %vm1437, %v3842, 0
    %3849 = vmatprep.subr.bf16.mxu0 0
    %3850 = vmatpush1.bf16.msra.mxu0 %v3562
    %3851 = vmatprep.subr.bf16.mxu0 0
    %3852 = vmatpush1.bf16.msra.mxu0 0
    %3853 = vmatprep.subr.bf16.mxu0 0
    %3854 = vmatpush1.bf16.msra.mxu0 0
    %3855 = vmatprep.subr.bf16.mxu0 0
    %3856 = vmatpush1.bf16.msra.mxu0 0
    %3857 = vmatprep.subr.bf16.mxu0 0
    %3858 = vmatpush1.bf16.msra.mxu0 0
    %3859 = vmatprep.subr.bf16.mxu0 0
    %3860 = vmatpush1.bf16.msra.mxu0 0
    %3861 = vmatprep.subr.bf16.mxu0 0
    %3862 = vmatpush1.bf16.msra.mxu0 0
    %3863 = vmatprep.subr.bf16.mxu0 0
    %3864 = vmatpush1.bf16.msra.mxu0 0
    %3865 = vmatprep.subr.bf16.mxu0 0
    %3866 = vmatpush1.bf16.msra.mxu0 0
    %3867 = vmatprep.subr.bf16.mxu0 0
    %3868 = vmatpush1.bf16.msra.mxu0 0
    %3869 = vmatprep.subr.bf16.mxu0 0
    %3870 = vmatpush1.bf16.msra.mxu0 0
    %3871 = vmatprep.subr.bf16.mxu0 0
    %3872 = vmatpush1.bf16.msra.mxu0 0
    %3873 = vmatprep.subr.bf16.mxu0 0
    %3874 = vmatpush1.bf16.msra.mxu0 0
    %3875 = vmatprep.subr.bf16.mxu0 0
    %3876 = vmatpush1.bf16.msra.mxu0 0
    %3877 = vmatprep.subr.bf16.mxu0 0
    %3878 = vmatpush1.bf16.msra.mxu0 0
    %3879 = vmatprep.subr.bf16.mxu0 0
    %3880 = vmatpush1.bf16.msra.mxu0 0
    %3881 = vmatprep.mubr.bf16.mxu0 0
    %3882 = vmatmul.mubr.bf16.gmra.mrb[0].mxu0 %v3847
    %v3883 = vpop.f32.mrb[0].mxu0
    %v3884 = vadd.f32 0.0, %v3883
    %v3885 = vpop.f32.mrb[0].mxu0
    %v3886 = vpop.f32.mrb[0].mxu0
    %v3887 = vadd.f32 0.0, %v3886
    %v3888 = vpop.f32.mrb[0].mxu0
    %3889 = vdwg.mxu0
    %v3891 = vsel %vm1437, %v3843, 0
    %3893 = vmatprep.subr.bf16.mxu0 0
    %3894 = vmatpush1.bf16.msra.mxu0 %v3563
    %3895 = vmatprep.subr.bf16.mxu0 0
    %3896 = vmatpush1.bf16.msra.mxu0 0
    %3897 = vmatprep.subr.bf16.mxu0 0
    %3898 = vmatpush1.bf16.msra.mxu0 0
    %3899 = vmatprep.subr.bf16.mxu0 0
    %3900 = vmatpush1.bf16.msra.mxu0 0
    %3901 = vmatprep.subr.bf16.mxu0 0
    %3902 = vmatpush1.bf16.msra.mxu0 0
    %3903 = vmatprep.subr.bf16.mxu0 0
    %3904 = vmatpush1.bf16.msra.mxu0 0
    %3905 = vmatprep.subr.bf16.mxu0 0
    %3906 = vmatpush1.bf16.msra.mxu0 0
    %3907 = vmatprep.subr.bf16.mxu0 0
    %3908 = vmatpush1.bf16.msra.mxu0 0
    %3909 = vmatprep.subr.bf16.mxu0 0
    %3910 = vmatpush1.bf16.msra.mxu0 0
    %3911 = vmatprep.subr.bf16.mxu0 0
    %3912 = vmatpush1.bf16.msra.mxu0 0
    %3913 = vmatprep.subr.bf16.mxu0 0
    %3914 = vmatpush1.bf16.msra.mxu0 0
    %3915 = vmatprep.subr.bf16.mxu0 0
    %3916 = vmatpush1.bf16.msra.mxu0 0
    %3917 = vmatprep.subr.bf16.mxu0 0
    %3918 = vmatpush1.bf16.msra.mxu0 0
    %3919 = vmatprep.subr.bf16.mxu0 0
    %3920 = vmatpush1.bf16.msra.mxu0 0
    %3921 = vmatprep.subr.bf16.mxu0 0
    %3922 = vmatpush1.bf16.msra.mxu0 0
    %3923 = vmatprep.subr.bf16.mxu0 0
    %3924 = vmatpush1.bf16.msra.mxu0 0
    %3925 = vmatprep.mubr.bf16.mxu0 0
    %3926 = vmatmul.mubr.bf16.gmra.mrb[0].mxu0 %v3891
    %v3927 = vpop.f32.mrb[0].mxu0
    %v3928 = vadd.f32 0.0, %v3927
    %v3929 = vpop.f32.mrb[0].mxu0
    %v3930 = vpop.f32.mrb[0].mxu0
    %v3931 = vadd.f32 0.0, %v3930
    %v3932 = vpop.f32.mrb[0].mxu0
    %3933 = vdwg.mxu0
    %v3935 = vsel %vm1437, %v3844, 0
    %3937 = vmatprep.subr.bf16.mxu0 0
    %3938 = vmatpush1.bf16.msra.mxu0 %v3564
    %3939 = vmatprep.subr.bf16.mxu0 0
    %3940 = vmatpush1.bf16.msra.mxu0 0
    %3941 = vmatprep.subr.bf16.mxu0 0
    %3942 = vmatpush1.bf16.msra.mxu0 0
    %3943 = vmatprep.subr.bf16.mxu0 0
    %3944 = vmatpush1.bf16.msra.mxu0 0
    %3945 = vmatprep.subr.bf16.mxu0 0
    %3946 = vmatpush1.bf16.msra.mxu0 0
    %3947 = vmatprep.subr.bf16.mxu0 0
    %3948 = vmatpush1.bf16.msra.mxu0 0
    %3949 = vmatprep.subr.bf16.mxu0 0
    %3950 = vmatpush1.bf16.msra.mxu0 0
    %3951 = vmatprep.subr.bf16.mxu0 0
    %3952 = vmatpush1.bf16.msra.mxu0 0
    %3953 = vmatprep.subr.bf16.mxu0 0
    %3954 = vmatpush1.bf16.msra.mxu0 0
    %3955 = vmatprep.subr.bf16.mxu0 0
    %3956 = vmatpush1.bf16.msra.mxu0 0
    %3957 = vmatprep.subr.bf16.mxu0 0
    %3958 = vmatpush1.bf16.msra.mxu0 0
    %3959 = vmatprep.subr.bf16.mxu0 0
    %3960 = vmatpush1.bf16.msra.mxu0 0
    %3961 = vmatprep.subr.bf16.mxu0 0
    %3962 = vmatpush1.bf16.msra.mxu0 0
    %3963 = vmatprep.subr.bf16.mxu0 0
    %3964 = vmatpush1.bf16.msra.mxu0 0
    %3965 = vmatprep.subr.bf16.mxu0 0
    %3966 = vmatpush1.bf16.msra.mxu0 0
    %3967 = vmatprep.subr.bf16.mxu0 0
    %3968 = vmatpush1.bf16.msra.mxu0 0
    %3969 = vmatprep.mubr.bf16.mxu0 0
    %3970 = vmatmul.mubr.bf16.gmra.mrb[0].mxu0 %v3935
    %v3971 = vpop.f32.mrb[0].mxu0
    %v3972 = vadd.f32 0.0, %v3971
    %v3973 = vpop.f32.mrb[0].mxu0
    %v3974 = vpop.f32.mrb[0].mxu0
    %v3975 = vadd.f32 0.0, %v3974
    %v3976 = vpop.f32.mrb[0].mxu0
    %3977 = vdwg.mxu0
    %v3979 = vsel %vm1437, %v3845, 0
    %3981 = vmatprep.subr.bf16.mxu0 0
    %3982 = vmatpush1.bf16.msra.mxu0 %v3565
    %3983 = vmatprep.subr.bf16.mxu0 0
    %3984 = vmatpush1.bf16.msra.mxu0 0
    %3985 = vmatprep.subr.bf16.mxu0 0
    %3986 = vmatpush1.bf16.msra.mxu0 0
    %3987 = vmatprep.subr.bf16.mxu0 0
    %3988 = vmatpush1.bf16.msra.mxu0 0
    %3989 = vmatprep.subr.bf16.mxu0 0
    %3990 = vmatpush1.bf16.msra.mxu0 0
    %3991 = vmatprep.subr.bf16.mxu0 0
    %3992 = vmatpush1.bf16.msra.mxu0 0
    %3993 = vmatprep.subr.bf16.mxu0 0
    %3994 = vmatpush1.bf16.msra.mxu0 0
    %3995 = vmatprep.subr.bf16.mxu0 0
    %3996 = vmatpush1.bf16.msra.mxu0 0
    %3997 = vmatprep.subr.bf16.mxu0 0
    %3998 = vmatpush1.bf16.msra.mxu0 0
    %3999 = vmatprep.subr.bf16.mxu0 0
    %4000 = vmatpush1.bf16.msra.mxu0 0
    %4001 = vmatprep.subr.bf16.mxu0 0
    %4002 = vmatpush1.bf16.msra.mxu0 0
    %4003 = vmatprep.subr.bf16.mxu0 0
    %4004 = vmatpush1.bf16.msra.mxu0 0
    %4005 = vmatprep.subr.bf16.mxu0 0
    %4006 = vmatpush1.bf16.msra.mxu0 0
    %4007 = vmatprep.subr.bf16.mxu0 0
    %4008 = vmatpush1.bf16.msra.mxu0 0
    %4009 = vmatprep.subr.bf16.mxu0 0
    %4010 = vmatpush1.bf16.msra.mxu0 0
    %4011 = vmatprep.subr.bf16.mxu0 0
    %4012 = vmatpush1.bf16.msra.mxu0 0
    %4013 = vmatprep.mubr.bf16.mxu0 0
    %4014 = vmatmul.mubr.bf16.gmra.mrb[0].mxu0 %v3979
    %v4015 = vpop.f32.mrb[0].mxu0
    %v4016 = vadd.f32 0.0, %v4015
    %v4017 = vpop.f32.mrb[0].mxu0
    %v4018 = vpop.f32.mrb[0].mxu0
    %v4019 = vadd.f32 0.0, %v4018
    %v4020 = vpop.f32.mrb[0].mxu0
    %4021 = vdwg.mxu0
    %v4022 = vcombine.low %v3884, %v3972
    %v4023 = vcombine.high %v3884, %v3972
    %v4025 = vunpack.c.l.s4 1983009808
    %v4026 = vunpack.c.0.s8 %v4025
    %v4027 = vlaneseq
    %v4028 = vshrl.u32 %v4027, 7
    %v4029 = vsub.s32 %v4026, %v4028
    %v4030 = vrot.slane %v4022, %v4029
    %v4032 = vunpack.c.l.s4 1983009808
    %v4033 = vunpack.c.0.s8 %v4032
    %v4034 = vlaneseq
    %v4035 = vshrl.u32 %v4034, 7
    %v4036 = vsub.s32 %v4033, %v4035
    %v4037 = vrot.slane %v4023, %v4036
    %v4038 = vcombine.low %v3928, %v4016
    %v4039 = vcombine.high %v3928, %v4016
    %v4041 = vunpack.c.l.s4 1983009808
    %v4042 = vunpack.c.0.s8 %v4041
    %v4043 = vlaneseq
    %v4044 = vshrl.u32 %v4043, 7
    %v4045 = vsub.s32 %v4042, %v4044
    %v4046 = vrot.slane %v4038, %v4045
    %v4048 = vunpack.c.l.s4 1983009808
    %v4049 = vunpack.c.0.s8 %v4048
    %v4050 = vlaneseq
    %v4051 = vshrl.u32 %v4050, 7
    %v4052 = vsub.s32 %v4049, %v4051
    %v4053 = vrot.slane %v4039, %v4052
    %v4054 = vcombine.low %v4030, %v4046
    %v4055 = vcombine.high %v4030, %v4046
    %v4057 = vunpack.c.l.s4 1934713408
    %v4058 = vunpack.c.0.s8 %v4057
    %v4059 = vlaneseq
    %v4060 = vshrl.u32 %v4059, 7
    %v4061 = vsub.s32 %v4058, %v4060
    %v4062 = vrot.slane %v4054, %v4061
    %v4064 = vunpack.c.l.s4 1934713408
    %v4065 = vunpack.c.0.s8 %v4064
    %v4066 = vlaneseq
    %v4067 = vshrl.u32 %v4066, 7
    %v4068 = vsub.s32 %v4065, %v4067
    %v4069 = vrot.slane %v4055, %v4068
    %v4070 = vcombine.low %v4037, %v4053
    %v4071 = vcombine.high %v4037, %v4053
    %v4073 = vunpack.c.l.s4 1934713408
    %v4074 = vunpack.c.0.s8 %v4073
    %v4075 = vlaneseq
    %v4076 = vshrl.u32 %v4075, 7
    %v4077 = vsub.s32 %v4074, %v4076
    %v4078 = vrot.slane %v4070, %v4077
    %v4080 = vunpack.c.l.s4 1934713408
    %v4081 = vunpack.c.0.s8 %v4080
    %v4082 = vlaneseq
    %v4083 = vshrl.u32 %v4082, 7
    %v4084 = vsub.s32 %v4081, %v4083
    %v4085 = vrot.slane %v4071, %v4084
    %v4086 = vcombine.high %v4062, 0.0
    %v4087 = vcombine.high %v4069, 0.0
    %v4088 = vcombine.high %v4078, 0.0
    %v4089 = vcombine.high %v4085, 0.0
    %v4090 = vcombine.low %v3887, %v3975
    %v4091 = vcombine.high %v3887, %v3975
    %v4093 = vunpack.c.l.s4 1983009808
    %v4094 = vunpack.c.0.s8 %v4093
    %v4095 = vlaneseq
    %v4096 = vshrl.u32 %v4095, 7
    %v4097 = vsub.s32 %v4094, %v4096
    %v4098 = vrot.slane %v4090, %v4097
    %v4100 = vunpack.c.l.s4 1983009808
    %v4101 = vunpack.c.0.s8 %v4100
    %v4102 = vlaneseq
    %v4103 = vshrl.u32 %v4102, 7
    %v4104 = vsub.s32 %v4101, %v4103
    %v4105 = vrot.slane %v4091, %v4104
    %v4106 = vcombine.low %v3931, %v4019
    %v4107 = vcombine.high %v3931, %v4019
    %v4109 = vunpack.c.l.s4 1983009808
    %v4110 = vunpack.c.0.s8 %v4109
    %v4111 = vlaneseq
    %v4112 = vshrl.u32 %v4111, 7
    %v4113 = vsub.s32 %v4110, %v4112
    %v4114 = vrot.slane %v4106, %v4113
    %v4116 = vunpack.c.l.s4 1983009808
    %v4117 = vunpack.c.0.s8 %v4116
    %v4118 = vlaneseq
    %v4119 = vshrl.u32 %v4118, 7
    %v4120 = vsub.s32 %v4117, %v4119
    %v4121 = vrot.slane %v4107, %v4120
    %v4122 = vcombine.low %v4098, %v4114
    %v4123 = vcombine.high %v4098, %v4114
    %v4125 = vunpack.c.l.s4 1934713408
    %v4126 = vunpack.c.0.s8 %v4125
    %v4127 = vlaneseq
    %v4128 = vshrl.u32 %v4127, 7
    %v4129 = vsub.s32 %v4126, %v4128
    %v4130 = vrot.slane %v4122, %v4129
    %v4132 = vunpack.c.l.s4 1934713408
    %v4133 = vunpack.c.0.s8 %v4132
    %v4134 = vlaneseq
    %v4135 = vshrl.u32 %v4134, 7
    %v4136 = vsub.s32 %v4133, %v4135
    %v4137 = vrot.slane %v4123, %v4136
    %v4138 = vcombine.low %v4105, %v4121
    %v4139 = vcombine.high %v4105, %v4121
    %v4141 = vunpack.c.l.s4 1934713408
    %v4142 = vunpack.c.0.s8 %v4141
    %v4143 = vlaneseq
    %v4144 = vshrl.u32 %v4143, 7
    %v4145 = vsub.s32 %v4142, %v4144
    %v4146 = vrot.slane %v4138, %v4145
    %v4148 = vunpack.c.l.s4 1934713408
    %v4149 = vunpack.c.0.s8 %v4148
    %v4150 = vlaneseq
    %v4151 = vshrl.u32 %v4150, 7
    %v4152 = vsub.s32 %v4149, %v4151
    %v4153 = vrot.slane %v4139, %v4152
    %v4154 = vcombine.high %v4130, 0.0
    %v4155 = vcombine.high %v4137, 0.0
    %v4156 = vcombine.high %v4146, 0.0
    %v4157 = vcombine.high %v4153, 0.0
    %v4158 = vcombine.low %v4062, %v4069
    %v4160 = vunpack.c.l.s4 1983009808
    %v4161 = vunpack.c.0.s8 %v4160
    %v4162 = vlaneseq
    %v4163 = vshrl.u32 %v4162, 7
    %v4164 = vsub.s32 %v4161, %v4163
    %v4165 = vrot.slane %v4158, %v4164
    %v4166 = vcombine.low %v4086, %v4087
    %v4168 = vunpack.c.l.s4 1983009808
    %v4169 = vunpack.c.0.s8 %v4168
    %v4170 = vlaneseq
    %v4171 = vshrl.u32 %v4170, 7
    %v4172 = vsub.s32 %v4169, %v4171
    %v4173 = vrot.slane %v4166, %v4172
    %v4174 = vcombine.low %v4078, %v4085
    %v4176 = vunpack.c.l.s4 1983009808
    %v4177 = vunpack.c.0.s8 %v4176
    %v4178 = vlaneseq
    %v4179 = vshrl.u32 %v4178, 7
    %v4180 = vsub.s32 %v4177, %v4179
    %v4181 = vrot.slane %v4174, %v4180
    %v4182 = vcombine.low %v4088, %v4089
    %v4184 = vunpack.c.l.s4 1983009808
    %v4185 = vunpack.c.0.s8 %v4184
    %v4186 = vlaneseq
    %v4187 = vshrl.u32 %v4186, 7
    %v4188 = vsub.s32 %v4185, %v4187
    %v4189 = vrot.slane %v4182, %v4188
    %v4190 = vcombine.low %v4165, %v4173
    %v4191 = vcombine.high %v4165, %v4173
    %v4193 = vunpack.c.l.s4 1934713408
    %v4194 = vunpack.c.0.s8 %v4193
    %v4195 = vlaneseq
    %v4196 = vshrl.u32 %v4195, 7
    %v4197 = vsub.s32 %v4194, %v4196
    %v4198 = vrot.slane %v4190, %v4197
    %v4200 = vunpack.c.l.s4 1934713408
    %v4201 = vunpack.c.0.s8 %v4200
    %v4202 = vlaneseq
    %v4203 = vshrl.u32 %v4202, 7
    %v4204 = vsub.s32 %v4201, %v4203
    %v4205 = vrot.slane %v4191, %v4204
    %v4206 = vcombine.low %v4181, %v4189
    %v4207 = vcombine.high %v4181, %v4189
    %v4209 = vunpack.c.l.s4 1934713408
    %v4210 = vunpack.c.0.s8 %v4209
    %v4211 = vlaneseq
    %v4212 = vshrl.u32 %v4211, 7
    %v4213 = vsub.s32 %v4210, %v4212
    %v4214 = vrot.slane %v4206, %v4213
    %v4216 = vunpack.c.l.s4 1934713408
    %v4217 = vunpack.c.0.s8 %v4216
    %v4218 = vlaneseq
    %v4219 = vshrl.u32 %v4218, 7
    %v4220 = vsub.s32 %v4217, %v4219
    %v4221 = vrot.slane %v4207, %v4220
    %v4222 = vcombine.low %v4198, %v4214
    %v4223 = vcombine.high %v4198, %v4214
    %v4224 = vcombine.low %v4205, %v4221
    %v4225 = vcombine.high %v4205, %v4221
    %v4226 = vcombine.low %v4130, %v4137
    %v4228 = vunpack.c.l.s4 1983009808
    %v4229 = vunpack.c.0.s8 %v4228
    %v4230 = vlaneseq
    %v4231 = vshrl.u32 %v4230, 7
    %v4232 = vsub.s32 %v4229, %v4231
    %v4233 = vrot.slane %v4226, %v4232
    %v4234 = vcombine.low %v4154, %v4155
    %v4236 = vunpack.c.l.s4 1983009808
    %v4237 = vunpack.c.0.s8 %v4236
    %v4238 = vlaneseq
    %v4239 = vshrl.u32 %v4238, 7
    %v4240 = vsub.s32 %v4237, %v4239
    %v4241 = vrot.slane %v4234, %v4240
    %v4242 = vcombine.low %v4146, %v4153
    %v4244 = vunpack.c.l.s4 1983009808
    %v4245 = vunpack.c.0.s8 %v4244
    %v4246 = vlaneseq
    %v4247 = vshrl.u32 %v4246, 7
    %v4248 = vsub.s32 %v4245, %v4247
    %v4249 = vrot.slane %v4242, %v4248
    %v4250 = vcombine.low %v4156, %v4157
    %v4252 = vunpack.c.l.s4 1983009808
    %v4253 = vunpack.c.0.s8 %v4252
    %v4254 = vlaneseq
    %v4255 = vshrl.u32 %v4254, 7
    %v4256 = vsub.s32 %v4253, %v4255
    %v4257 = vrot.slane %v4250, %v4256
    %v4258 = vcombine.low %v4233, %v4241
    %v4259 = vcombine.high %v4233, %v4241
    %v4261 = vunpack.c.l.s4 1934713408
    %v4262 = vunpack.c.0.s8 %v4261
    %v4263 = vlaneseq
    %v4264 = vshrl.u32 %v4263, 7
    %v4265 = vsub.s32 %v4262, %v4264
    %v4266 = vrot.slane %v4258, %v4265
    %v4268 = vunpack.c.l.s4 1934713408
    %v4269 = vunpack.c.0.s8 %v4268
    %v4270 = vlaneseq
    %v4271 = vshrl.u32 %v4270, 7
    %v4272 = vsub.s32 %v4269, %v4271
    %v4273 = vrot.slane %v4259, %v4272
    %v4274 = vcombine.low %v4249, %v4257
    %v4275 = vcombine.high %v4249, %v4257
    %v4277 = vunpack.c.l.s4 1934713408
    %v4278 = vunpack.c.0.s8 %v4277
    %v4279 = vlaneseq
    %v4280 = vshrl.u32 %v4279, 7
    %v4281 = vsub.s32 %v4278, %v4280
    %v4282 = vrot.slane %v4274, %v4281
    %v4284 = vunpack.c.l.s4 1934713408
    %v4285 = vunpack.c.0.s8 %v4284
    %v4286 = vlaneseq
    %v4287 = vshrl.u32 %v4286, 7
    %v4288 = vsub.s32 %v4285, %v4287
    %v4289 = vrot.slane %v4275, %v4288
    %v4290 = vcombine.low %v4266, %v4282
    %v4291 = vcombine.high %v4266, %v4282
    %v4292 = vcombine.low %v4273, %v4289
    %v4293 = vcombine.high %v4273, %v4289
    %4296 = vrot.lane.b32.xlu0 %v4223, 8
    %v4297 = vpop.permute.xlu0 %4296
    %4298 = vrot.lane.b32.xlu0 %v4291, 8
    %v4299 = vpop.permute.xlu0 %4298
    %4304 = vrot.lane.b32.xlu0 %v4224, 16
    %v4305 = vpop.permute.xlu0 %4304
    %4306 = vrot.lane.b32.xlu0 %v4292, 16
    %v4307 = vpop.permute.xlu0 %4306
    %4312 = vrot.lane.b32.xlu0 %v4225, 24
    %v4313 = vpop.permute.xlu0 %4312
    %4314 = vrot.lane.b32.xlu0 %v4293, 24
    %v4315 = vpop.permute.xlu0 %4314
    %v4318 = vsel %vm1248, %v4222, %v4297
    %v4319 = vsel %vm1248, %v4290, %v4299
    %v4320 = vsel %vm1437, %v4318, %v4305
    %v4321 = vsel %vm1437, %v4319, %v4307
    %v4322 = vsel %vm2006, %v4320, %v4313
    %v4323 = vsel %vm2006, %v4321, %v4315
    %s4324 = scalar_lea.vmem %s3, 16
    %v4325 = vld [vmem:[%s4324] sm:$0xf]
    %v4326 = vld [vmem:[%s4324 + $0x4] sm:$0xf]
    %v4327 = vld [vmem:[%s4324 + $0x8] sm:$0xf]
    %v4328 = vld [vmem:[%s4324 + $0xc] sm:$0xf]
    %v4329 = vpack.c.bf16 %v4323, %v4322
    %v4330 = vlaneseq
    %v4331 = vshrl.u32 %v4330, 7
    %v4332 = vsub.s32 3, %v4331
    %v4333 = vrot.slane %v36, %v4332
    %v4338 = vunpack.c.l.b16 %v4325
    %v4339 = vunpack.c.l.b16 %v4326
    %v4340 = vunpack.c.l.b16 %v4327
    %v4341 = vunpack.c.l.b16 %v4328
    %v4342 = vpack.c.b16 %v4339, %v4338
    %v4343 = vpack.c.b16 %v4341, %v4340
    %v4347 = vsel %vm2030, %v4329, 0
    %4349 = vmatprep.subr.bf16.mxu0 0
    %4350 = vmatpush1.bf16.msra.mxu0 %v4342
    %4351 = vmatprep.subr.bf16.mxu0 0
    %4352 = vmatpush1.bf16.msra.mxu0 %v4343
    %4353 = vmatprep.subr.bf16.mxu0 0
    %4354 = vmatpush1.bf16.msra.mxu0 0
    %4355 = vmatprep.subr.bf16.mxu0 0
    %4356 = vmatpush1.bf16.msra.mxu0 0
    %4357 = vmatprep.subr.bf16.mxu0 0
    %4358 = vmatpush1.bf16.msra.mxu0 0
    %4359 = vmatprep.subr.bf16.mxu0 0
    %4360 = vmatpush1.bf16.msra.mxu0 0
    %4361 = vmatprep.subr.bf16.mxu0 0
    %4362 = vmatpush1.bf16.msra.mxu0 0
    %4363 = vmatprep.subr.bf16.mxu0 0
    %4364 = vmatpush1.bf16.msra.mxu0 0
    %4365 = vmatprep.subr.bf16.mxu0 0
    %4366 = vmatpush1.bf16.msra.mxu0 0
    %4367 = vmatprep.subr.bf16.mxu0 0
    %4368 = vmatpush1.bf16.msra.mxu0 0
    %4369 = vmatprep.subr.bf16.mxu0 0
    %4370 = vmatpush1.bf16.msra.mxu0 0
    %4371 = vmatprep.subr.bf16.mxu0 0
    %4372 = vmatpush1.bf16.msra.mxu0 0
    %4373 = vmatprep.subr.bf16.mxu0 0
    %4374 = vmatpush1.bf16.msra.mxu0 0
    %4375 = vmatprep.subr.bf16.mxu0 0
    %4376 = vmatpush1.bf16.msra.mxu0 0
    %4377 = vmatprep.subr.bf16.mxu0 0
    %4378 = vmatpush1.bf16.msra.mxu0 0
    %4379 = vmatprep.subr.bf16.mxu0 0
    %4380 = vmatpush1.bf16.msra.mxu0 0
    %4381 = vmatprep.mubr.bf16.mxu0 0
    %4382 = vmatmul.mubr.bf16.gmra.mrb[0].mxu0 %v4347
    %v4383 = vpop.f32.mrb[0].mxu0
    %v4384 = vadd.f32 %v4333, %v4383
    %v4385 = vpop.f32.mrb[0].mxu0
    %v4386 = vpop.f32.mrb[0].mxu0
    %v4387 = vadd.f32 %v4333, %v4386
    %v4388 = vpop.f32.mrb[0].mxu0
    %4389 = vdwg.mxu0
    %v4390 = vadd.f32 %v4384, %v2397
    %v4391 = vadd.f32 %v4387, %v2398
    %4392 = vadd.xlane.f32.xlu0 %v4390
    %v4393 = vpop.xlane.xlu0 %4392
    %4394 = vadd.xlane.f32.xlu0 %v4391
    %v4395 = vpop.xlane.xlu0 %4394
    %v4396 = vmul.f32 %v4390, %v4390
    %v4397 = vmul.f32 %v4391, %v4391
    %4398 = vadd.xlane.f32.xlu0 %v4396
    %v4399 = vpop.xlane.xlu0 %4398
    %4400 = vadd.xlane.f32.xlu0 %v4397
    %v4401 = vpop.xlane.xlu0 %4400
    %v4402 = vmul.f32 %v4393, 0.03125
    %v4403 = vmul.f32 %v4395, 0.03125
    %v4404 = vmul.f32 %v4399, 0.03125
    %v4405 = vmul.f32 %v4401, 0.03125
    %v4406 = vmul.f32 %v4402, %v4402
    %v4407 = vmul.f32 %v4403, %v4403
    %v4408 = vsub.f32 %v4404, %v4406
    %v4409 = vsub.f32 %v4405, %v4407
    %v4410 = vmax.f32 %v4408, 0.0
    %v4411 = vmax.f32 %v4409, 0.0
    %v4412 = vsub.f32 %v4390, %v4402
    %v4413 = vsub.f32 %v4391, %v4403
    %v4414 = vadd.f32 %v4410, 1e-12
    %v4415 = vadd.f32 %v4411, 1e-12
    %v4416 = vrsqrt.pop %v4414
    %v4417 = vrsqrt.pop %v4415
    %v4418 = vmul.f32 %v4412, %v4416
    %v4419 = vmul.f32 %v4413, %v4417
    %v4420 = vlaneseq
    %v4421 = vshrl.u32 %v4420, 7
    %v4422 = vsub.s32 4, %v4421
    %v4423 = vrot.slane %v36, %v4422
    %v4424 = vmul.f32 %v4418, %v4423
    %v4425 = vmul.f32 %v4419, %v4423
    %v4426 = vlaneseq
    %v4427 = vshrl.u32 %v4426, 7
    %v4428 = vsub.s32 5, %v4427
    %v4429 = vrot.slane %v36, %v4428
    %v4430 = vadd.f32 %v4424, %v4429
    %v4431 = vadd.f32 %v4425, %v4429
    %s4432 = scalar_lea.vmem [#allocation2], 256
    %v4433 = vld [vmem:[%s4432] sm:$0xf]
    %v4434 = vld [vmem:[%s4432 + $0x4] sm:$0xf]
    %v4435 = vld [vmem:[%s4432 + $0x8] sm:$0xf]
    %v4436 = vld [vmem:[%s4432 + $0xc] sm:$0xf]
    %v4437 = vld [vmem:[%s4432 + $0x10] sm:$0xf]
    %v4438 = vld [vmem:[%s4432 + $0x14] sm:$0xf]
    %v4439 = vld [vmem:[%s4432 + $0x18] sm:$0xf]
    %v4440 = vld [vmem:[%s4432 + $0x1c] sm:$0xf]
    %v4441 = vld [vmem:[%s4432 + $0x20] sm:$0xf]
    %v4442 = vld [vmem:[%s4432 + $0x24] sm:$0xf]
    %v4443 = vld [vmem:[%s4432 + $0x28] sm:$0xf]
    %v4444 = vld [vmem:[%s4432 + $0x2c] sm:$0xf]
    %v4445 = vld [vmem:[%s4432 + $0x30] sm:$0xf]
    %v4446 = vld [vmem:[%s4432 + $0x34] sm:$0xf]
    %v4447 = vld [vmem:[%s4432 + $0x38] sm:$0xf]
    %v4448 = vld [vmem:[%s4432 + $0x3c] sm:$0xf]
    %v4449 = vpack.c.bf16 %v4431, %v4430
    %v4450 = vlaneseq
    %v4451 = vshrl.u32 %v4450, 7
    %v4452 = vsub.s32 6, %v4451
    %v4453 = vrot.slane %v36, %v4452
    %v4470 = vunpack.c.l.b16 %v4433
    %v4471 = vunpack.c.l.b16 %v4434
    %v4472 = vunpack.c.l.b16 %v4435
    %v4473 = vunpack.c.l.b16 %v4436
    %v4474 = vunpack.c.l.b16 %v4437
    %v4475 = vunpack.c.l.b16 %v4438
    %v4476 = vunpack.c.l.b16 %v4439
    %v4477 = vunpack.c.l.b16 %v4440
    %v4478 = vunpack.c.l.b16 %v4441
    %v4479 = vunpack.c.l.b16 %v4442
    %v4480 = vunpack.c.l.b16 %v4443
    %v4481 = vunpack.c.l.b16 %v4444
    %v4482 = vunpack.c.l.b16 %v4445
    %v4483 = vunpack.c.l.b16 %v4446
    %v4484 = vunpack.c.l.b16 %v4447
    %v4485 = vunpack.c.l.b16 %v4448
    %v4486 = vpack.c.b16 %v4471, %v4470
    %v4487 = vpack.c.b16 %v4473, %v4472
    %v4488 = vpack.c.b16 %v4475, %v4474
    %v4489 = vpack.c.b16 %v4477, %v4476
    %v4490 = vpack.c.b16 %v4479, %v4478
    %v4491 = vpack.c.b16 %v4481, %v4480
    %v4492 = vpack.c.b16 %v4483, %v4482
    %v4493 = vpack.c.b16 %v4485, %v4484
    %4502 = vmatprep.subr.bf16.mxu0 0
    %4503 = vmatpush1.bf16.msra.mxu0 %v4486
    %4504 = vmatprep.subr.bf16.mxu0 0
    %4505 = vmatpush1.bf16.msra.mxu0 %v4487
    %4506 = vmatprep.subr.bf16.mxu0 0
    %4507 = vmatpush1.bf16.msra.mxu0 %v4488
    %4508 = vmatprep.subr.bf16.mxu0 0
    %4509 = vmatpush1.bf16.msra.mxu0 %v4489
    %4510 = vmatprep.subr.bf16.mxu0 0
    %4511 = vmatpush1.bf16.msra.mxu0 %v4490
    %4512 = vmatprep.subr.bf16.mxu0 0
    %4513 = vmatpush1.bf16.msra.mxu0 %v4491
    %4514 = vmatprep.subr.bf16.mxu0 0
    %4515 = vmatpush1.bf16.msra.mxu0 %v4492
    %4516 = vmatprep.subr.bf16.mxu0 0
    %4517 = vmatpush1.bf16.msra.mxu0 %v4493
    %4518 = vmatprep.subr.bf16.mxu0 0
    %4519 = vmatpush1.bf16.msra.mxu0 0
    %4520 = vmatprep.subr.bf16.mxu0 0
    %4521 = vmatpush1.bf16.msra.mxu0 0
    %4522 = vmatprep.subr.bf16.mxu0 0
    %4523 = vmatpush1.bf16.msra.mxu0 0
    %4524 = vmatprep.subr.bf16.mxu0 0
    %4525 = vmatpush1.bf16.msra.mxu0 0
    %4526 = vmatprep.subr.bf16.mxu0 0
    %4527 = vmatpush1.bf16.msra.mxu0 0
    %4528 = vmatprep.subr.bf16.mxu0 0
    %4529 = vmatpush1.bf16.msra.mxu0 0
    %4530 = vmatprep.subr.bf16.mxu0 0
    %4531 = vmatpush1.bf16.msra.mxu0 0
    %4532 = vmatprep.subr.bf16.mxu0 0
    %4533 = vmatpush1.bf16.msra.mxu0 0
    %4534 = vmatprep.mubr.bf16.mxu0 0
    %4535 = vmatmul.mubr.bf16.gmra.mrb[0].mxu0 %v4449
    %v4536 = vpop.f32.mrb[0].mxu0
    %v4537 = vadd.f32 %v4453, %v4536
    %v4538 = vpop.f32.mrb[0].mxu0
    %v4539 = vpop.f32.mrb[0].mxu0
    %v4540 = vadd.f32 %v4453, %v4539
    %v4541 = vpop.f32.mrb[0].mxu0
    %4542 = vdwg.mxu0
    %v4543 = vmul.f32 %v4537, %v4537
    %v4544 = vmul.f32 %v4540, %v4540
    %v4545 = vmul.f32 %v4537, %v4543
    %v4546 = vmul.f32 %v4540, %v4544
    %v4547 = vmul.f32 %v4545, 0.044715
    %v4548 = vmul.f32 %v4546, 0.044715
    %v4549 = vadd.f32 %v4537, %v4547
    %v4550 = vadd.f32 %v4540, %v4548
    %v4551 = vmul.f32 %v4549, 0.7978846
    %v4552 = vmul.f32 %v4550, 0.7978846
    %v4553 = vtanh.pop %v4551
    %v4554 = vtanh.pop %v4552
    %v4555 = vadd.f32 %v4553, 1.0
    %v4556 = vadd.f32 %v4554, 1.0
    %v4557 = vmul.f32 %v4555, 0.5
    %v4558 = vmul.f32 %v4556, 0.5
    %v4559 = vmul.f32 %v4537, %v4557
    %v4560 = vmul.f32 %v4540, %v4558
    %s4561 = scalar_lea.vmem [#allocation2], 320
    %v4562 = vld [vmem:[%s4561] sm:$0xf]
    %v4563 = vld [vmem:[%s4561 + $0x4] sm:$0xf]
    %v4564 = vld [vmem:[%s4561 + $0x8] sm:$0xf]
    %v4565 = vld [vmem:[%s4561 + $0xc] sm:$0xf]
    %v4566 = vld [vmem:[%s4561 + $0x10] sm:$0xf]
    %v4567 = vld [vmem:[%s4561 + $0x14] sm:$0xf]
    %v4568 = vld [vmem:[%s4561 + $0x18] sm:$0xf]
    %v4569 = vld [vmem:[%s4561 + $0x1c] sm:$0xf]
    %v4570 = vld [vmem:[%s4561 + $0x20] sm:$0xf]
    %v4571 = vld [vmem:[%s4561 + $0x24] sm:$0xf]
    %v4572 = vld [vmem:[%s4561 + $0x28] sm:$0xf]
    %v4573 = vld [vmem:[%s4561 + $0x2c] sm:$0xf]
    %v4574 = vld [vmem:[%s4561 + $0x30] sm:$0xf]
    %v4575 = vld [vmem:[%s4561 + $0x34] sm:$0xf]
    %v4576 = vld [vmem:[%s4561 + $0x38] sm:$0xf]
    %v4577 = vld [vmem:[%s4561 + $0x3c] sm:$0xf]
    %v4578 = vpack.c.bf16 %v4560, %v4559
    %v4579 = vlaneseq
    %v4580 = vshrl.u32 %v4579, 7
    %v4581 = vsub.s32 7, %v4580
    %v4582 = vrot.slane %v36, %v4581
    %v4599 = vunpack.c.l.b16 %v4562
    %v4600 = vunpack.c.l.b16 %v4563
    %v4601 = vunpack.c.l.b16 %v4564
    %v4602 = vunpack.c.l.b16 %v4565
    %v4603 = vunpack.c.l.b16 %v4566
    %v4604 = vunpack.c.l.b16 %v4567
    %v4605 = vunpack.c.l.b16 %v4568
    %v4606 = vunpack.c.l.b16 %v4569
    %v4607 = vunpack.c.l.b16 %v4570
    %v4608 = vunpack.c.l.b16 %v4571
    %v4609 = vunpack.c.l.b16 %v4572
    %v4610 = vunpack.c.l.b16 %v4573
    %v4611 = vunpack.c.l.b16 %v4574
    %v4612 = vunpack.c.l.b16 %v4575
    %v4613 = vunpack.c.l.b16 %v4576
    %v4614 = vunpack.c.l.b16 %v4577
    %v4615 = vpack.c.b16 %v4600, %v4599
    %v4616 = vpack.c.b16 %v4602, %v4601
    %v4617 = vpack.c.b16 %v4604, %v4603
    %v4618 = vpack.c.b16 %v4606, %v4605
    %v4619 = vpack.c.b16 %v4608, %v4607
    %v4620 = vpack.c.b16 %v4610, %v4609
    %v4621 = vpack.c.b16 %v4612, %v4611
    %v4622 = vpack.c.b16 %v4614, %v4613
    %4631 = vmatprep.subr.bf16.mxu0 0
    %4632 = vmatpush1.bf16.msra.mxu0 %v4615
    %4633 = vmatprep.subr.bf16.mxu0 0
    %4634 = vmatpush1.bf16.msra.mxu0 %v4616
    %4635 = vmatprep.subr.bf16.mxu0 0
    %4636 = vmatpush1.bf16.msra.mxu0 %v4617
    %4637 = vmatprep.subr.bf16.mxu0 0
    %4638 = vmatpush1.bf16.msra.mxu0 %v4618
    %4639 = vmatprep.subr.bf16.mxu0 0
    %4640 = vmatpush1.bf16.msra.mxu0 %v4619
    %4641 = vmatprep.subr.bf16.mxu0 0
    %4642 = vmatpush1.bf16.msra.mxu0 %v4620
    %4643 = vmatprep.subr.bf16.mxu0 0
    %4644 = vmatpush1.bf16.msra.mxu0 %v4621
    %4645 = vmatprep.subr.bf16.mxu0 0
    %4646 = vmatpush1.bf16.msra.mxu0 %v4622
    %4647 = vmatprep.subr.bf16.mxu0 0
    %4648 = vmatpush1.bf16.msra.mxu0 0
    %4649 = vmatprep.subr.bf16.mxu0 0
    %4650 = vmatpush1.bf16.msra.mxu0 0
    %4651 = vmatprep.subr.bf16.mxu0 0
    %4652 = vmatpush1.bf16.msra.mxu0 0
    %4653 = vmatprep.subr.bf16.mxu0 0
    %4654 = vmatpush1.bf16.msra.mxu0 0
    %4655 = vmatprep.subr.bf16.mxu0 0
    %4656 = vmatpush1.bf16.msra.mxu0 0
    %4657 = vmatprep.subr.bf16.mxu0 0
    %4658 = vmatpush1.bf16.msra.mxu0 0
    %4659 = vmatprep.subr.bf16.mxu0 0
    %4660 = vmatpush1.bf16.msra.mxu0 0
    %4661 = vmatprep.subr.bf16.mxu0 0
    %4662 = vmatpush1.bf16.msra.mxu0 0
    %4663 = vmatprep.mubr.bf16.mxu0 0
    %4664 = vmatmul.mubr.bf16.gmra.mrb[0].mxu0 %v4578
    %v4665 = vpop.f32.mrb[0].mxu0
    %v4666 = vadd.f32 %v4582, %v4665
    %v4667 = vpop.f32.mrb[0].mxu0
    %v4668 = vpop.f32.mrb[0].mxu0
    %v4669 = vadd.f32 %v4582, %v4668
    %v4670 = vpop.f32.mrb[0].mxu0
    %4671 = vdwg.mxu0
    %v4672 = vadd.f32 %v4666, %v4430
    %v4673 = vadd.f32 %v4669, %v4431
    %4674 = vadd.xlane.f32.xlu0 %v4672
    %v4675 = vpop.xlane.xlu0 %4674
    %4676 = vadd.xlane.f32.xlu0 %v4673
    %v4677 = vpop.xlane.xlu0 %4676
    %v4678 = vmul.f32 %v4672, %v4672
    %v4679 = vmul.f32 %v4673, %v4673
    %4680 = vadd.xlane.f32.xlu0 %v4678
    %v4681 = vpop.xlane.xlu0 %4680
    %4682 = vadd.xlane.f32.xlu0 %v4679
    %v4683 = vpop.xlane.xlu0 %4682
    %v4684 = vmul.f32 %v4675, 0.03125
    %v4685 = vmul.f32 %v4677, 0.03125
    %v4686 = vmul.f32 %v4681, 0.03125
    %v4687 = vmul.f32 %v4683, 0.03125
    %v4688 = vmul.f32 %v4684, %v4684
    %v4689 = vmul.f32 %v4685, %v4685
    %v4690 = vsub.f32 %v4686, %v4688
    %v4691 = vsub.f32 %v4687, %v4689
    %v4692 = vmax.f32 %v4690, 0.0
    %v4693 = vmax.f32 %v4691, 0.0
    %v4694 = vsub.f32 %v4672, %v4684
    %v4695 = vsub.f32 %v4673, %v4685
    %v4696 = vadd.f32 %v4692, 1e-12
    %v4697 = vadd.f32 %v4693, 1e-12
    %v4698 = vrsqrt.pop %v4696
    %v4699 = vrsqrt.pop %v4697
    %v4700 = vmul.f32 %v4694, %v4698
    %v4701 = vmul.f32 %v4695, %v4699
    %v4702 = vlaneseq
    %v4703 = vshrl.u32 %v4702, 7
    %v4704 = vsub.s32 0, %v4703
    %v4705 = vrot.slane %v37, %v4704
    %v4706 = vmul.f32 %v4700, %v4705
    %v4707 = vmul.f32 %v4701, %v4705
    %v4708 = vlaneseq
    %v4709 = vshrl.u32 %v4708, 7
    %v4710 = vsub.s32 1, %v4709
    %v4711 = vrot.slane %v37, %v4710
    %v4712 = vadd.f32 %v4706, %v4711
    %v4713 = vadd.f32 %v4707, %v4711
    %s4714 = scalar_lea.vmem [#allocation2], 384
    %v4715 = vld [vmem:[%s4714] sm:$0xf]
    %v4716 = vld [vmem:[%s4714 + $0x4] sm:$0xf]
    %v4717 = vld [vmem:[%s4714 + $0x8] sm:$0xf]
    %v4718 = vld [vmem:[%s4714 + $0xc] sm:$0xf]
    %v4719 = vld [vmem:[%s4714 + $0x10] sm:$0xf]
    %v4720 = vld [vmem:[%s4714 + $0x14] sm:$0xf]
    %v4721 = vld [vmem:[%s4714 + $0x18] sm:$0xf]
    %v4722 = vld [vmem:[%s4714 + $0x1c] sm:$0xf]
    %v4723 = vld [vmem:[%s4714 + $0x20] sm:$0xf]
    %v4724 = vld [vmem:[%s4714 + $0x24] sm:$0xf]
    %v4725 = vld [vmem:[%s4714 + $0x28] sm:$0xf]
    %v4726 = vld [vmem:[%s4714 + $0x2c] sm:$0xf]
    %v4727 = vld [vmem:[%s4714 + $0x30] sm:$0xf]
    %v4728 = vld [vmem:[%s4714 + $0x34] sm:$0xf]
    %v4729 = vld [vmem:[%s4714 + $0x38] sm:$0xf]
    %v4730 = vld [vmem:[%s4714 + $0x3c] sm:$0xf]
    %v4731 = vpack.c.bf16 %v4713, %v4712
    %v4732 = vlaneseq
    %v4733 = vshrl.u32 %v4732, 7
    %v4734 = vsub.s32 2, %v4733
    %v4735 = vrot.slane %v37, %v4734
    %v4752 = vunpack.c.l.b16 %v4715
    %v4753 = vunpack.c.l.b16 %v4716
    %v4754 = vunpack.c.l.b16 %v4717
    %v4755 = vunpack.c.l.b16 %v4718
    %v4756 = vunpack.c.l.b16 %v4719
    %v4757 = vunpack.c.l.b16 %v4720
    %v4758 = vunpack.c.l.b16 %v4721
    %v4759 = vunpack.c.l.b16 %v4722
    %v4760 = vunpack.c.l.b16 %v4723
    %v4761 = vunpack.c.l.b16 %v4724
    %v4762 = vunpack.c.l.b16 %v4725
    %v4763 = vunpack.c.l.b16 %v4726
    %v4764 = vunpack.c.l.b16 %v4727
    %v4765 = vunpack.c.l.b16 %v4728
    %v4766 = vunpack.c.l.b16 %v4729
    %v4767 = vunpack.c.l.b16 %v4730
    %v4768 = vpack.c.b16 %v4753, %v4752
    %v4769 = vpack.c.b16 %v4755, %v4754
    %v4770 = vpack.c.b16 %v4757, %v4756
    %v4771 = vpack.c.b16 %v4759, %v4758
    %v4772 = vpack.c.b16 %v4761, %v4760
    %v4773 = vpack.c.b16 %v4763, %v4762
    %v4774 = vpack.c.b16 %v4765, %v4764
    %v4775 = vpack.c.b16 %v4767, %v4766
    %4784 = vmatprep.subr.bf16.mxu0 0
    %4785 = vmatpush1.bf16.msra.mxu0 %v4768
    %4786 = vmatprep.subr.bf16.mxu0 0
    %4787 = vmatpush1.bf16.msra.mxu0 %v4769
    %4788 = vmatprep.subr.bf16.mxu0 0
    %4789 = vmatpush1.bf16.msra.mxu0 %v4770
    %4790 = vmatprep.subr.bf16.mxu0 0
    %4791 = vmatpush1.bf16.msra.mxu0 %v4771
    %4792 = vmatprep.subr.bf16.mxu0 0
    %4793 = vmatpush1.bf16.msra.mxu0 %v4772
    %4794 = vmatprep.subr.bf16.mxu0 0
    %4795 = vmatpush1.bf16.msra.mxu0 %v4773
    %4796 = vmatprep.subr.bf16.mxu0 0
    %4797 = vmatpush1.bf16.msra.mxu0 %v4774
    %4798 = vmatprep.subr.bf16.mxu0 0
    %4799 = vmatpush1.bf16.msra.mxu0 %v4775
    %4800 = vmatprep.subr.bf16.mxu0 0
    %4801 = vmatpush1.bf16.msra.mxu0 0
    %4802 = vmatprep.subr.bf16.mxu0 0
    %4803 = vmatpush1.bf16.msra.mxu0 0
    %4804 = vmatprep.subr.bf16.mxu0 0
    %4805 = vmatpush1.bf16.msra.mxu0 0
    %4806 = vmatprep.subr.bf16.mxu0 0
    %4807 = vmatpush1.bf16.msra.mxu0 0
    %4808 = vmatprep.subr.bf16.mxu0 0
    %4809 = vmatpush1.bf16.msra.mxu0 0
    %4810 = vmatprep.subr.bf16.mxu0 0
    %4811 = vmatpush1.bf16.msra.mxu0 0
    %4812 = vmatprep.subr.bf16.mxu0 0
    %4813 = vmatpush1.bf16.msra.mxu0 0
    %4814 = vmatprep.subr.bf16.mxu0 0
    %4815 = vmatpush1.bf16.msra.mxu0 0
    %4816 = vmatprep.mubr.bf16.mxu0 0
    %4817 = vmatmul.mubr.bf16.gmra.mrb[0].mxu0 %v4731
    %v4818 = vpop.f32.mrb[0].mxu0
    %v4819 = vadd.f32 %v4735, %v4818
    %v4820 = vpop.f32.mrb[0].mxu0
    %v4821 = vpop.f32.mrb[0].mxu0
    %v4822 = vadd.f32 %v4735, %v4821
    %v4823 = vpop.f32.mrb[0].mxu0
    %4824 = vdwg.mxu0
    %v4825 = vtanh.pop %v4819
    %v4826 = vtanh.pop %v4822
    %s4827 = scalar_lea.vmem [#allocation2], 448
    %v4828 = vld [vmem:[%s4827] sm:$0xf]
    %v4829 = vld [vmem:[%s4827 + $0x4] sm:$0xf]
    %v4830 = vld [vmem:[%s4827 + $0x8] sm:$0xf]
    %v4831 = vld [vmem:[%s4827 + $0xc] sm:$0xf]
    %v4832 = vld [vmem:[%s4827 + $0x10] sm:$0xf]
    %v4833 = vld [vmem:[%s4827 + $0x14] sm:$0xf]
    %v4834 = vld [vmem:[%s4827 + $0x18] sm:$0xf]
    %v4835 = vld [vmem:[%s4827 + $0x1c] sm:$0xf]
    %v4836 = vld [vmem:[%s4827 + $0x20] sm:$0xf]
    %v4837 = vld [vmem:[%s4827 + $0x24] sm:$0xf]
    %v4838 = vld [vmem:[%s4827 + $0x28] sm:$0xf]
    %v4839 = vld [vmem:[%s4827 + $0x2c] sm:$0xf]
    %v4840 = vld [vmem:[%s4827 + $0x30] sm:$0xf]
    %v4841 = vld [vmem:[%s4827 + $0x34] sm:$0xf]
    %v4842 = vld [vmem:[%s4827 + $0x38] sm:$0xf]
    %v4843 = vld [vmem:[%s4827 + $0x3c] sm:$0xf]
    %v4844 = vpack.c.bf16 %v4826, %v4825
    %v4845 = vlaneseq
    %v4846 = vshrl.u32 %v4845, 7
    %v4847 = vsub.s32 3, %v4846
    %v4848 = vrot.slane %v37, %v4847
    %v4865 = vunpack.c.l.b16 %v4828
    %v4866 = vunpack.c.l.b16 %v4829
    %v4867 = vunpack.c.l.b16 %v4830
    %v4868 = vunpack.c.l.b16 %v4831
    %v4869 = vunpack.c.l.b16 %v4832
    %v4870 = vunpack.c.l.b16 %v4833
    %v4871 = vunpack.c.l.b16 %v4834
    %v4872 = vunpack.c.l.b16 %v4835
    %v4873 = vunpack.c.l.b16 %v4836
    %v4874 = vunpack.c.l.b16 %v4837
    %v4875 = vunpack.c.l.b16 %v4838
    %v4876 = vunpack.c.l.b16 %v4839
    %v4877 = vunpack.c.l.b16 %v4840
    %v4878 = vunpack.c.l.b16 %v4841
    %v4879 = vunpack.c.l.b16 %v4842
    %v4880 = vunpack.c.l.b16 %v4843
    %v4881 = vpack.c.b16 %v4866, %v4865
    %v4882 = vpack.c.b16 %v4868, %v4867
    %v4883 = vpack.c.b16 %v4870, %v4869
    %v4884 = vpack.c.b16 %v4872, %v4871
    %v4885 = vpack.c.b16 %v4874, %v4873
    %v4886 = vpack.c.b16 %v4876, %v4875
    %v4887 = vpack.c.b16 %v4878, %v4877
    %v4888 = vpack.c.b16 %v4880, %v4879
    %4897 = vmatprep.subr.bf16.mxu0 0
    %4898 = vmatpush1.bf16.msra.mxu0 %v4881
    %4899 = vmatprep.subr.bf16.mxu0 0
    %4900 = vmatpush1.bf16.msra.mxu0 %v4882
    %4901 = vmatprep.subr.bf16.mxu0 0
    %4902 = vmatpush1.bf16.msra.mxu0 %v4883
    %4903 = vmatprep.subr.bf16.mxu0 0
    %4904 = vmatpush1.bf16.msra.mxu0 %v4884
    %4905 = vmatprep.subr.bf16.mxu0 0
    %4906 = vmatpush1.bf16.msra.mxu0 %v4885
    %4907 = vmatprep.subr.bf16.mxu0 0
    %4908 = vmatpush1.bf16.msra.mxu0 %v4886
    %4909 = vmatprep.subr.bf16.mxu0 0
    %4910 = vmatpush1.bf16.msra.mxu0 %v4887
    %4911 = vmatprep.subr.bf16.mxu0 0
    %4912 = vmatpush1.bf16.msra.mxu0 %v4888
    %4913 = vmatprep.subr.bf16.mxu0 0
    %4914 = vmatpush1.bf16.msra.mxu0 0
    %4915 = vmatprep.subr.bf16.mxu0 0
    %4916 = vmatpush1.bf16.msra.mxu0 0
    %4917 = vmatprep.subr.bf16.mxu0 0
    %4918 = vmatpush1.bf16.msra.mxu0 0
    %4919 = vmatprep.subr.bf16.mxu0 0
    %4920 = vmatpush1.bf16.msra.mxu0 0
    %4921 = vmatprep.subr.bf16.mxu0 0
    %4922 = vmatpush1.bf16.msra.mxu0 0
    %4923 = vmatprep.subr.bf16.mxu0 0
    %4924 = vmatpush1.bf16.msra.mxu0 0
    %4925 = vmatprep.subr.bf16.mxu0 0
    %4926 = vmatpush1.bf16.msra.mxu0 0
    %4927 = vmatprep.subr.bf16.mxu0 0
    %4928 = vmatpush1.bf16.msra.mxu0 0
    %4929 = vmatprep.mubr.bf16.mxu0 0
    %4930 = vmatmul.mubr.bf16.gmra.mrb[0].mxu0 %v4844
    %v4931 = vpop.f32.mrb[0].mxu0
    %v4932 = vadd.f32 %v4848, %v4931
    %v4933 = vpop.f32.mrb[0].mxu0
    %v4934 = vpop.f32.mrb[0].mxu0
    %v4935 = vadd.f32 %v4848, %v4934
    %v4936 = vpop.f32.mrb[0].mxu0
    %4937 = vdwg.mxu0
    %4938 = vst [vmem:[%s5] sm:$0xff] %v4932
    %4939 = vst [vmem:[%s5 + $0x8] sm:$0xff] %v4935
    // Predicated region
    $region26: #{classifier_forward.1} parent=1 // pred_check
      _
    $region27: #{classifier_forward.1} parent=1 // pred_check_branch
      %4941 = sbr.rel (0) target = $region29
    $region28: #{classifier_forward.1} parent=1 // pred_region
      _
    $region29: #{classifier_forward.1} parent=1 // pred_fallthru
      _
    // Predicated region
    $region30: #{classifier_forward.1} parent=1 // pred_check
      _
    $region31: #{classifier_forward.1} parent=1 // pred_check_branch
      %4943 = sbr.rel (0) target = $region33
    $region32: #{classifier_forward.1} parent=1 // pred_region
      _
    $region33: #{classifier_forward.1} parent=1 // pred_fallthru
      _
    %4944 = vsyncpa [#allocation3], 1

</llo_original>
